<compile_context>
chip_gen: v5e
topology: v5e:2x2
jax: 0.10.0
libtpu: 0.0.40
codegen_flags: <defaults>
</compile_context>

<pallas_src>
import numpy as np
import jax
import jax.numpy as jnp
from jax.experimental import pallas as pl
from jax.experimental.pallas import tpu as pltpu

LRELU_SLOPE = 0.01   # nn.LeakyReLU default
BN_EPS = 1e-5        # nn.BatchNorm2d default
HIDDEN_DIMS = [32, 64, 128, 256]


# --------------------------- in-kernel building blocks ---------------------------

def _bn_lrelu(y, g_ref, b_ref):
    """Training-mode BatchNorm2d (batch statistics, biased variance) folded into a
    single scale/shift, then LeakyReLU.  Two-pass stats for robustness."""
    inv_r = 1.0 / y.shape[0]
    mean = jnp.sum(y, axis=0, keepdims=True) * inv_r
    d = y - mean
    var = jnp.sum(d * d, axis=0, keepdims=True) * inv_r
    scale = g_ref[...] * jax.lax.rsqrt(var + BN_EPS)
    y = d * scale + b_ref[...]
    return jnp.where(y > 0, y, LRELU_SLOPE * y)


def _conv_taps(a, s_ref, w_ref):
    """3x3 conv as an accumulation over valid kernel taps.

    a      : (R_in, Cin)      activation rows (flattened N*H*W, channel-minor)
    s_ref  : (T, R_out, R_in) constant 0/1 row-selection matrices (one per valid tap)
    w_ref  : (T, Cin, Cout)   per-tap weight slices
    returns: (R_out, Cout) float32
    """
    T = s_ref.shape[0]
    y = None
    for t in range(T):  # T <= 9, unrolled at trace time; all operands VMEM-resident
        rows = jnp.dot(s_ref[t], a, preferred_element_type=jnp.float32)      # (R_out, Cin)
        yt = jnp.dot(rows, w_ref[t], preferred_element_type=jnp.float32)     # (R_out, Cout)
        y = yt if y is None else y + yt
    return y


def _make_kernel(plan):
    """Build the fused-encoder kernel for a static layer plan.

    refs layout: [patches_l1, <per-layer args...>, out]
      'first'       : w_flat, gamma, beta            (patch matmul + BN + LeakyReLU)
      'mid'         : S, W, gamma, beta              (tap conv + BN + LeakyReLU)
      'final_dense' : W, bias                        (1x1 spatial: centre tap only)
      'final_taps'  : S, W, bias
    """
    def kernel(*refs):
        o_ref = refs[-1]
        a = refs[0][...]          # (N*H1*W1, 9*Cin) layer-1 patch matrix
        idx = 1
        for kind in plan:
            if kind == "first":
                w, g, b = refs[idx], refs[idx + 1], refs[idx + 2]
                idx += 3
                y = jnp.dot(a, w[...], preferred_element_type=jnp.float32)
                a = _bn_lrelu(y, g, b)
            elif kind == "mid":
                s, w, g, b = refs[idx], refs[idx + 1], refs[idx + 2], refs[idx + 3]
                idx += 4
                a = _bn_lrelu(_conv_taps(a, s, w), g, b)
            elif kind == "final_dense":
                w, bias = refs[idx], refs[idx + 1]
                idx += 2
                o_ref[...] = jnp.dot(a, w[...], preferred_element_type=jnp.float32) + bias[...]
            else:  # "final_taps"
                s, w, bias = refs[idx], refs[idx + 1], refs[idx + 2]
                idx += 3
                o_ref[...] = _conv_taps(a, s, w) + bias[...]
    return kernel


# -------------------------- host-side (trace-time) prep --------------------------

def _out_size(n, stride):
    # k=3, pad=1
    return (n + 2 - 3) // stride + 1


def _build_taps(N, H, W, Ho, Wo, stride):
    """For a 3x3 / pad=1 conv, return [((dh, dw), S)] for every tap that touches at
    least one real (non-padding) input element.  S is the 0/1 row-selection matrix
    mapping flattened input rows (N*H*W) to flattened output rows (N*Ho*Wo)."""
    taps = []
    for dh in range(3):
        for dw in range(3):
            S = np.zeros((N * Ho * Wo, N * H * W), np.float32)
            valid = False
            for ho in range(Ho):
                hi = stride * ho + dh - 1
                if hi < 0 or hi >= H:
                    continue
                for wo in range(Wo):
                    wi = stride * wo + dw - 1
                    if wi < 0 or wi >= W:
                        continue
                    valid = True
                    for n in range(N):
                        S[n * Ho * Wo + ho * Wo + wo, n * H * W + hi * W + wi] = 1.0
            if valid:
                taps.append(((dh, dw), S))
    return taps


def _full_spec(arr):
    nd = arr.ndim
    return pl.BlockSpec(arr.shape, lambda nd=nd: (0,) * nd)


# ------------------------------ parameter creation -------------------------------

def init_params(key, in_channels, hidden_dims):
    """Deterministic synthetic parameters matching the PyTorch module's shapes."""
    params = []
    ch = in_channels
    for h in hidden_dims:
        key, kw, kb, kg, kbt = jax.random.split(key, 5)
        w = jax.random.normal(kw, (h, ch, 3, 3), jnp.float32) * 0.1
        b = jax.random.normal(kb, (h,), jnp.float32) * 0.1      # cancelled by BN mean-sub
        gamma = 1.0 + 0.1 * jax.random.normal(kg, (h,), jnp.float32)
        beta = 0.1 * jax.random.normal(kbt, (h,), jnp.float32)
        params.append((w, b, gamma, beta))
        ch = h
    key, kw, kb = jax.random.split(key, 3)
    wf = jax.random.normal(kw, (hidden_dims[-1], hidden_dims[-1], 3, 3), jnp.float32) * 0.1
    bf = jax.random.normal(kb, (hidden_dims[-1],), jnp.float32) * 0.1
    params.append((wf, bf))
    return params


# --------------------------------- full forward ----------------------------------

def vae_encoder(x_nchw, params):
    """Forward pass equivalent to VAEEncoder(...)(x) with BatchNorm in training mode
    (batch statistics).  Input/output are NCHW float32."""
    N, Cin, H, W = map(int, x_nchw.shape)
    x = jnp.transpose(x_nchw, (0, 2, 3, 1)).astype(jnp.float32)     # NHWC

    plan, inputs = [], []
    flops = 0

    # ---- layer 1: patch extraction via XLA strided slices on the tiny HBM input ----
    w0, _b0, g0, bt0 = params[0]
    C1 = int(w0.shape[0])
    H1, W1 = _out_size(H, 2), _out_size(W, 2)
    xp = jnp.pad(x, ((0, 0), (1, 1), (1, 1), (0, 0)))
    patches = [xp[:, dh:dh + 2 * H1 - 1:2, dw:dw + 2 * W1 - 1:2, :]
               for dh in range(3) for dw in range(3)]
    p1 = jnp.concatenate(patches, axis=-1).reshape(N * H1 * W1, 9 * Cin)
    w0_flat = jnp.transpose(w0, (2, 3, 1, 0)).reshape(9 * Cin, C1).astype(jnp.float32)
    inputs += [p1, w0_flat,
               g0.reshape(1, C1).astype(jnp.float32),
               bt0.reshape(1, C1).astype(jnp.float32)]
    plan.append("first")
    flops += 2 * (N * H1 * W1) * (9 * Cin) * C1
    cur_h, cur_w = H1, W1

    # ---- layers 2..4: stride-2 conv + BN + LeakyReLU, in-kernel tap gathers ----
    for (w, _b, gamma, beta) in params[1:-1]:
        cout, cin = int(w.shape[0]), int(w.shape[1])
        ho, wo = _out_size(cur_h, 2), _out_size(cur_w, 2)
        taps = _build_taps(N, cur_h, cur_w, ho, wo, stride=2)
        S = jnp.asarray(np.stack([m for _, m in taps], axis=0))
        Wm = jnp.stack([jnp.transpose(w[:, :, dh, dw]) for (dh, dw), _ in taps],
                       axis=0).astype(jnp.float32)
        inputs += [S, Wm,
                   gamma.reshape(1, cout).astype(jnp.float32),
                   beta.reshape(1, cout).astype(jnp.float32)]
        plan.append("mid")
        r_in, r_out = N * cur_h * cur_w, N * ho * wo
        flops += 2 * len(taps) * (r_out * r_in * cin + r_out * cin * cout)
        cur_h, cur_w = ho, wo

    # ---- final conv (stride 1, pad 1): bias, no BN / activation ----
    wf, bf = params[-1]
    coutf, cinf = int(wf.shape[0]), int(wf.shape[1])
    ho, wo = _out_size(cur_h, 1), _out_size(cur_w, 1)
    taps = _build_taps(N, cur_h, cur_w, ho, wo, stride=1)
    r_out, r_in = N * ho * wo, N * cur_h * cur_w
    only_center = (len(taps) == 1 and
                   np.array_equal(taps[0][1], np.eye(r_out, r_in, dtype=np.float32)))
    if only_center:
        (dh, dw), _ = taps[0]
        Wfm = jnp.transpose(wf[:, :, dh, dw]).astype(jnp.float32)
        inputs += [Wfm, bf.reshape(1, coutf).astype(jnp.float32)]
        plan.append("final_dense")
        flops += 2 * r_out * cinf * coutf
    else:
        Sf = jnp.asarray(np.stack([m for _, m in taps], axis=0))
        Wfm = jnp.stack([jnp.transpose(wf[:, :, dh, dw]) for (dh, dw), _ in taps],
                        axis=0).astype(jnp.float32)
        inputs += [Sf, Wfm, bf.reshape(1, coutf).astype(jnp.float32)]
        plan.append("final_taps")
        flops += 2 * len(taps) * (r_out * r_in * cinf + r_out * cinf * coutf)

    out_shape = jax.ShapeDtypeStruct((r_out, coutf), jnp.float32)
    bytes_accessed = sum(int(np.prod(a.shape)) * 4 for a in inputs) + r_out * coutf * 4

    out = pl.pallas_call(
        _make_kernel(tuple(plan)),
        out_shape=out_shape,
        in_specs=[_full_spec(a) for a in inputs],
        out_specs=pl.BlockSpec((r_out, coutf), lambda: (0, 0)),
        compiler_params=pltpu.CompilerParams(vmem_limit_bytes=32 * 1024 * 1024),
        cost_estimate=pl.CostEstimate(flops=int(flops), transcendentals=512,
                                      bytes_accessed=int(bytes_accessed)),
    )(*inputs)

    # rows -> NHWC -> NCHW (match PyTorch output layout)
    return jnp.transpose(out.reshape(N, ho, wo, coutf), (0, 3, 1, 2))


# ------------------------------- pure-JAX reference ------------------------------

def _reference(x, params):
    a = x.astype(jnp.float32)
    for (w, b, gamma, beta) in params[:-1]:
        a = jax.lax.conv_general_dilated(a, w, (2, 2), ((1, 1), (1, 1)),
                                         dimension_numbers=("NCHW", "OIHW", "NCHW"),
                                         precision=jax.lax.Precision.HIGHEST)
        a = a + b.reshape(1, -1, 1, 1)
        mean = jnp.mean(a, axis=(0, 2, 3), keepdims=True)
        var = jnp.var(a, axis=(0, 2, 3), keepdims=True)      # biased (train-mode BN)
        a = (a - mean) * jax.lax.rsqrt(var + BN_EPS) * gamma.reshape(1, -1, 1, 1) \
            + beta.reshape(1, -1, 1, 1)
        a = jnp.where(a > 0, a, LRELU_SLOPE * a)
    wf, bf = params[-1]
    a = jax.lax.conv_general_dilated(a, wf, (1, 1), ((1, 1), (1, 1)),
                                     dimension_numbers=("NCHW", "OIHW", "NCHW"),
                                     precision=jax.lax.Precision.HIGHEST)
    return a + bf.reshape(1, -1, 1, 1)


if __name__ == "__main__":
    key = jax.random.PRNGKey(0)
    k_x, k_p = jax.random.split(key)
    # batch=2, in_channels=4, spatial=16  (16 -> 8 -> 4 -> 2 -> 1 after 4 stride-2 convs)
    x = jax.random.normal(k_x, (2, 4, 16, 16), jnp.float32)
    params = init_params(k_p, in_channels=4, hidden_dims=HIDDEN_DIMS)

    out = jax.jit(lambda xx: vae_encoder(xx, params))(x)
    out = jax.block_until_ready(out)
    assert out.shape == (2, HIDDEN_DIMS[-1], 1, 1), out.shape

    ref = jax.block_until_ready(_reference(x, params))
    max_err = float(jnp.max(jnp.abs(out - ref)))
    assert max_err < 5e-2, f"max abs err vs reference: {max_err}"
    print("KERNEL_OK")
</pallas_src>

<mosaic_0001>
module attributes {stable_mosaic.version = 11 : i64} {
  func.func @kernel(%arg0: memref<128x36xf32, #tpu.memory_space<vmem>>, %arg1: memref<36x32xf32, #tpu.memory_space<vmem>>, %arg2: memref<1x32xf32, #tpu.memory_space<vmem>>, %arg3: memref<1x32xf32, #tpu.memory_space<vmem>>, %arg4: memref<9x32x128xf32, #tpu.memory_space<vmem>>, %arg5: memref<9x32x64xf32, #tpu.memory_space<vmem>>, %arg6: memref<1x64xf32, #tpu.memory_space<vmem>>, %arg7: memref<1x64xf32, #tpu.memory_space<vmem>>, %arg8: memref<9x8x32xf32, #tpu.memory_space<vmem>>, %arg9: memref<9x64x128xf32, #tpu.memory_space<vmem>>, %arg10: memref<1x128xf32, #tpu.memory_space<vmem>>, %arg11: memref<1x128xf32, #tpu.memory_space<vmem>>, %arg12: memref<4x2x8xf32, #tpu.memory_space<vmem>>, %arg13: memref<4x128x256xf32, #tpu.memory_space<vmem>>, %arg14: memref<1x256xf32, #tpu.memory_space<vmem>>, %arg15: memref<1x256xf32, #tpu.memory_space<vmem>>, %arg16: memref<256x256xf32, #tpu.memory_space<vmem>>, %arg17: memref<1x256xf32, #tpu.memory_space<vmem>>, %arg18: memref<2x256xf32, #tpu.memory_space<vmem>>) attributes {dimension_semantics = [], scalar_prefetch = 0 : i64, scratch_operands = 0 : i64, tpu.core_type = #tpu.core_type<tc>} {
    %c0 = arith.constant 0 : index
    %c0_0 = arith.constant 0 : index
    %0 = vector.load %arg0[%c0, %c0_0] : memref<128x36xf32, #tpu.memory_space<vmem>>, vector<128x36xf32>
    %c0_1 = arith.constant 0 : index
    %c0_2 = arith.constant 0 : index
    %1 = vector.load %arg1[%c0_1, %c0_2] : memref<36x32xf32, #tpu.memory_space<vmem>>, vector<36x32xf32>
    %cst = arith.constant dense<0.000000e+00> : vector<128x32xf32>
    %2 = tpu.matmul %0, %1, %cst {dimension_numbers = #tpu.dot_dimension_numbers<[1], [0], [0], [1], [0, 0, 1, 1], [], []>} : vector<128x36xf32>, vector<36x32xf32>, vector<128x32xf32> -> vector<128x32xf32>
    %cst_3 = arith.constant dense<0.000000e+00> : vector<32xf32>
    %3 = vector.multi_reduction <add>, %2, %cst_3 [0] : vector<128x32xf32> to vector<32xf32>
    %4 = vector.shape_cast %3 : vector<32xf32> to vector<1x32xf32>
    %cst_4 = arith.constant 7.812500e-03 : f32
    %5 = vector.broadcast %cst_4 : f32 to vector<1x32xf32>
    %6 = arith.mulf %4, %5 : vector<1x32xf32>
    %7 = vector.broadcast %6 : vector<1x32xf32> to vector<128x32xf32>
    %8 = arith.subf %2, %7 : vector<128x32xf32>
    %9 = arith.mulf %8, %8 : vector<128x32xf32>
    %cst_5 = arith.constant dense<0.000000e+00> : vector<32xf32>
    %10 = vector.multi_reduction <add>, %9, %cst_5 [0] : vector<128x32xf32> to vector<32xf32>
    %11 = vector.shape_cast %10 : vector<32xf32> to vector<1x32xf32>
    %cst_6 = arith.constant 7.812500e-03 : f32
    %12 = vector.broadcast %cst_6 : f32 to vector<1x32xf32>
    %13 = arith.mulf %11, %12 : vector<1x32xf32>
    %c0_7 = arith.constant 0 : index
    %c0_8 = arith.constant 0 : index
    %14 = vector.load %arg2[%c0_7, %c0_8] : memref<1x32xf32, #tpu.memory_space<vmem>>, vector<1x32xf32>
    %cst_9 = arith.constant 9.99999974E-6 : f32
    %15 = vector.broadcast %cst_9 : f32 to vector<1x32xf32>
    %16 = arith.addf %13, %15 : vector<1x32xf32>
    %17 = math.rsqrt %16 : vector<1x32xf32>
    %18 = arith.mulf %14, %17 : vector<1x32xf32>
    %19 = vector.broadcast %18 : vector<1x32xf32> to vector<128x32xf32>
    %20 = arith.mulf %8, %19 : vector<128x32xf32>
    %c0_10 = arith.constant 0 : index
    %c0_11 = arith.constant 0 : index
    %21 = vector.load %arg3[%c0_10, %c0_11] : memref<1x32xf32, #tpu.memory_space<vmem>>, vector<1x32xf32>
    %22 = vector.broadcast %21 : vector<1x32xf32> to vector<128x32xf32>
    %23 = arith.addf %20, %22 : vector<128x32xf32>
    %cst_12 = arith.constant 0.000000e+00 : f32
    %24 = vector.broadcast %cst_12 : f32 to vector<128x32xf32>
    %25 = arith.cmpf ogt, %23, %24 : vector<128x32xf32>
    %cst_13 = arith.constant 0.00999999977 : f32
    %26 = vector.broadcast %cst_13 : f32 to vector<128x32xf32>
    %27 = arith.mulf %26, %23 : vector<128x32xf32>
    %28 = arith.select %25, %23, %27 : vector<128x32xi1>, vector<128x32xf32>
    %c0_14 = arith.constant 0 : index
    %c0_15 = arith.constant 0 : index
    %c0_16 = arith.constant 0 : index
    %29 = vector.load %arg4[%c0_14, %c0_15, %c0_16] : memref<9x32x128xf32, #tpu.memory_space<vmem>>, vector<1x32x128xf32>
    %30 = vector.shape_cast %29 : vector<1x32x128xf32> to vector<32x128xf32>
    %cst_17 = arith.constant dense<0.000000e+00> : vector<32x32xf32>
    %31 = tpu.matmul %30, %28, %cst_17 {dimension_numbers = #tpu.dot_dimension_numbers<[1], [0], [0], [1], [0, 0, 1, 1], [], []>} : vector<32x128xf32>, vector<128x32xf32>, vector<32x32xf32> -> vector<32x32xf32>
    %c0_18 = arith.constant 0 : index
    %c0_19 = arith.constant 0 : index
    %c0_20 = arith.constant 0 : index
    %32 = vector.load %arg5[%c0_18, %c0_19, %c0_20] : memref<9x32x64xf32, #tpu.memory_space<vmem>>, vector<1x32x64xf32>
    %33 = vector.shape_cast %32 : vector<1x32x64xf32> to vector<32x64xf32>
    %cst_21 = arith.constant dense<0.000000e+00> : vector<32x64xf32>
    %34 = tpu.matmul %31, %33, %cst_21 {dimension_numbers = #tpu.dot_dimension_numbers<[1], [0], [0], [1], [0, 0, 1, 1], [], []>} : vector<32x32xf32>, vector<32x64xf32>, vector<32x64xf32> -> vector<32x64xf32>
    %c1 = arith.constant 1 : index
    %c0_22 = arith.constant 0 : index
    %c0_23 = arith.constant 0 : index
    %35 = vector.load %arg4[%c1, %c0_22, %c0_23] : memref<9x32x128xf32, #tpu.memory_space<vmem>>, vector<1x32x128xf32>
    %36 = vector.shape_cast %35 : vector<1x32x128xf32> to vector<32x128xf32>
    %cst_24 = arith.constant dense<0.000000e+00> : vector<32x32xf32>
    %37 = tpu.matmul %36, %28, %cst_24 {dimension_numbers = #tpu.dot_dimension_numbers<[1], [0], [0], [1], [0, 0, 1, 1], [], []>} : vector<32x128xf32>, vector<128x32xf32>, vector<32x32xf32> -> vector<32x32xf32>
    %c1_25 = arith.constant 1 : index
    %c0_26 = arith.constant 0 : index
    %c0_27 = arith.constant 0 : index
    %38 = vector.load %arg5[%c1_25, %c0_26, %c0_27] : memref<9x32x64xf32, #tpu.memory_space<vmem>>, vector<1x32x64xf32>
    %39 = vector.shape_cast %38 : vector<1x32x64xf32> to vector<32x64xf32>
    %cst_28 = arith.constant dense<0.000000e+00> : vector<32x64xf32>
    %40 = tpu.matmul %37, %39, %cst_28 {dimension_numbers = #tpu.dot_dimension_numbers<[1], [0], [0], [1], [0, 0, 1, 1], [], []>} : vector<32x32xf32>, vector<32x64xf32>, vector<32x64xf32> -> vector<32x64xf32>
    %41 = arith.addf %34, %40 : vector<32x64xf32>
    %c2 = arith.constant 2 : index
    %c0_29 = arith.constant 0 : index
    %c0_30 = arith.constant 0 : index
    %42 = vector.load %arg4[%c2, %c0_29, %c0_30] : memref<9x32x128xf32, #tpu.memory_space<vmem>>, vector<1x32x128xf32>
    %43 = vector.shape_cast %42 : vector<1x32x128xf32> to vector<32x128xf32>
    %cst_31 = arith.constant dense<0.000000e+00> : vector<32x32xf32>
    %44 = tpu.matmul %43, %28, %cst_31 {dimension_numbers = #tpu.dot_dimension_numbers<[1], [0], [0], [1], [0, 0, 1, 1], [], []>} : vector<32x128xf32>, vector<128x32xf32>, vector<32x32xf32> -> vector<32x32xf32>
    %c2_32 = arith.constant 2 : index
    %c0_33 = arith.constant 0 : index
    %c0_34 = arith.constant 0 : index
    %45 = vector.load %arg5[%c2_32, %c0_33, %c0_34] : memref<9x32x64xf32, #tpu.memory_space<vmem>>, vector<1x32x64xf32>
    %46 = vector.shape_cast %45 : vector<1x32x64xf32> to vector<32x64xf32>
    %cst_35 = arith.constant dense<0.000000e+00> : vector<32x64xf32>
    %47 = tpu.matmul %44, %46, %cst_35 {dimension_numbers = #tpu.dot_dimension_numbers<[1], [0], [0], [1], [0, 0, 1, 1], [], []>} : vector<32x32xf32>, vector<32x64xf32>, vector<32x64xf32> -> vector<32x64xf32>
    %48 = arith.addf %41, %47 : vector<32x64xf32>
    %c3 = arith.constant 3 : index
    %c0_36 = arith.constant 0 : index
    %c0_37 = arith.constant 0 : index
    %49 = vector.load %arg4[%c3, %c0_36, %c0_37] : memref<9x32x128xf32, #tpu.memory_space<vmem>>, vector<1x32x128xf32>
    %50 = vector.shape_cast %49 : vector<1x32x128xf32> to vector<32x128xf32>
    %cst_38 = arith.constant dense<0.000000e+00> : vector<32x32xf32>
    %51 = tpu.matmul %50, %28, %cst_38 {dimension_numbers = #tpu.dot_dimension_numbers<[1], [0], [0], [1], [0, 0, 1, 1], [], []>} : vector<32x128xf32>, vector<128x32xf32>, vector<32x32xf32> -> vector<32x32xf32>
    %c3_39 = arith.constant 3 : index
    %c0_40 = arith.constant 0 : index
    %c0_41 = arith.constant 0 : index
    %52 = vector.load %arg5[%c3_39, %c0_40, %c0_41] : memref<9x32x64xf32, #tpu.memory_space<vmem>>, vector<1x32x64xf32>
    %53 = vector.shape_cast %52 : vector<1x32x64xf32> to vector<32x64xf32>
    %cst_42 = arith.constant dense<0.000000e+00> : vector<32x64xf32>
    %54 = tpu.matmul %51, %53, %cst_42 {dimension_numbers = #tpu.dot_dimension_numbers<[1], [0], [0], [1], [0, 0, 1, 1], [], []>} : vector<32x32xf32>, vector<32x64xf32>, vector<32x64xf32> -> vector<32x64xf32>
    %55 = arith.addf %48, %54 : vector<32x64xf32>
    %c4 = arith.constant 4 : index
    %c0_43 = arith.constant 0 : index
    %c0_44 = arith.constant 0 : index
    %56 = vector.load %arg4[%c4, %c0_43, %c0_44] : memref<9x32x128xf32, #tpu.memory_space<vmem>>, vector<1x32x128xf32>
    %57 = vector.shape_cast %56 : vector<1x32x128xf32> to vector<32x128xf32>
    %cst_45 = arith.constant dense<0.000000e+00> : vector<32x32xf32>
    %58 = tpu.matmul %57, %28, %cst_45 {dimension_numbers = #tpu.dot_dimension_numbers<[1], [0], [0], [1], [0, 0, 1, 1], [], []>} : vector<32x128xf32>, vector<128x32xf32>, vector<32x32xf32> -> vector<32x32xf32>
    %c4_46 = arith.constant 4 : index
    %c0_47 = arith.constant 0 : index
    %c0_48 = arith.constant 0 : index
    %59 = vector.load %arg5[%c4_46, %c0_47, %c0_48] : memref<9x32x64xf32, #tpu.memory_space<vmem>>, vector<1x32x64xf32>
    %60 = vector.shape_cast %59 : vector<1x32x64xf32> to vector<32x64xf32>
    %cst_49 = arith.constant dense<0.000000e+00> : vector<32x64xf32>
    %61 = tpu.matmul %58, %60, %cst_49 {dimension_numbers = #tpu.dot_dimension_numbers<[1], [0], [0], [1], [0, 0, 1, 1], [], []>} : vector<32x32xf32>, vector<32x64xf32>, vector<32x64xf32> -> vector<32x64xf32>
    %62 = arith.addf %55, %61 : vector<32x64xf32>
    %c5 = arith.constant 5 : index
    %c0_50 = arith.constant 0 : index
    %c0_51 = arith.constant 0 : index
    %63 = vector.load %arg4[%c5, %c0_50, %c0_51] : memref<9x32x128xf32, #tpu.memory_space<vmem>>, vector<1x32x128xf32>
    %64 = vector.shape_cast %63 : vector<1x32x128xf32> to vector<32x128xf32>
    %cst_52 = arith.constant dense<0.000000e+00> : vector<32x32xf32>
    %65 = tpu.matmul %64, %28, %cst_52 {dimension_numbers = #tpu.dot_dimension_numbers<[1], [0], [0], [1], [0, 0, 1, 1], [], []>} : vector<32x128xf32>, vector<128x32xf32>, vector<32x32xf32> -> vector<32x32xf32>
    %c5_53 = arith.constant 5 : index
    %c0_54 = arith.constant 0 : index
    %c0_55 = arith.constant 0 : index
    %66 = vector.load %arg5[%c5_53, %c0_54, %c0_55] : memref<9x32x64xf32, #tpu.memory_space<vmem>>, vector<1x32x64xf32>
    %67 = vector.shape_cast %66 : vector<1x32x64xf32> to vector<32x64xf32>
    %cst_56 = arith.constant dense<0.000000e+00> : vector<32x64xf32>
    %68 = tpu.matmul %65, %67, %cst_56 {dimension_numbers = #tpu.dot_dimension_numbers<[1], [0], [0], [1], [0, 0, 1, 1], [], []>} : vector<32x32xf32>, vector<32x64xf32>, vector<32x64xf32> -> vector<32x64xf32>
    %69 = arith.addf %62, %68 : vector<32x64xf32>
    %c6 = arith.constant 6 : index
    %c0_57 = arith.constant 0 : index
    %c0_58 = arith.constant 0 : index
    %70 = vector.load %arg4[%c6, %c0_57, %c0_58] : memref<9x32x128xf32, #tpu.memory_space<vmem>>, vector<1x32x128xf32>
    %71 = vector.shape_cast %70 : vector<1x32x128xf32> to vector<32x128xf32>
    %cst_59 = arith.constant dense<0.000000e+00> : vector<32x32xf32>
    %72 = tpu.matmul %71, %28, %cst_59 {dimension_numbers = #tpu.dot_dimension_numbers<[1], [0], [0], [1], [0, 0, 1, 1], [], []>} : vector<32x128xf32>, vector<128x32xf32>, vector<32x32xf32> -> vector<32x32xf32>
    %c6_60 = arith.constant 6 : index
    %c0_61 = arith.constant 0 : index
    %c0_62 = arith.constant 0 : index
    %73 = vector.load %arg5[%c6_60, %c0_61, %c0_62] : memref<9x32x64xf32, #tpu.memory_space<vmem>>, vector<1x32x64xf32>
    %74 = vector.shape_cast %73 : vector<1x32x64xf32> to vector<32x64xf32>
    %cst_63 = arith.constant dense<0.000000e+00> : vector<32x64xf32>
    %75 = tpu.matmul %72, %74, %cst_63 {dimension_numbers = #tpu.dot_dimension_numbers<[1], [0], [0], [1], [0, 0, 1, 1], [], []>} : vector<32x32xf32>, vector<32x64xf32>, vector<32x64xf32> -> vector<32x64xf32>
    %76 = arith.addf %69, %75 : vector<32x64xf32>
    %c7 = arith.constant 7 : index
    %c0_64 = arith.constant 0 : index
    %c0_65 = arith.constant 0 : index
    %77 = vector.load %arg4[%c7, %c0_64, %c0_65] : memref<9x32x128xf32, #tpu.memory_space<vmem>>, vector<1x32x128xf32>
    %78 = vector.shape_cast %77 : vector<1x32x128xf32> to vector<32x128xf32>
    %cst_66 = arith.constant dense<0.000000e+00> : vector<32x32xf32>
    %79 = tpu.matmul %78, %28, %cst_66 {dimension_numbers = #tpu.dot_dimension_numbers<[1], [0], [0], [1], [0, 0, 1, 1], [], []>} : vector<32x128xf32>, vector<128x32xf32>, vector<32x32xf32> -> vector<32x32xf32>
    %c7_67 = arith.constant 7 : index
    %c0_68 = arith.constant 0 : index
    %c0_69 = arith.constant 0 : index
    %80 = vector.load %arg5[%c7_67, %c0_68, %c0_69] : memref<9x32x64xf32, #tpu.memory_space<vmem>>, vector<1x32x64xf32>
    %81 = vector.shape_cast %80 : vector<1x32x64xf32> to vector<32x64xf32>
    %cst_70 = arith.constant dense<0.000000e+00> : vector<32x64xf32>
    %82 = tpu.matmul %79, %81, %cst_70 {dimension_numbers = #tpu.dot_dimension_numbers<[1], [0], [0], [1], [0, 0, 1, 1], [], []>} : vector<32x32xf32>, vector<32x64xf32>, vector<32x64xf32> -> vector<32x64xf32>
    %83 = arith.addf %76, %82 : vector<32x64xf32>
    %c8 = arith.constant 8 : index
    %c0_71 = arith.constant 0 : index
    %c0_72 = arith.constant 0 : index
    %84 = vector.load %arg4[%c8, %c0_71, %c0_72] : memref<9x32x128xf32, #tpu.memory_space<vmem>>, vector<1x32x128xf32>
    %85 = vector.shape_cast %84 : vector<1x32x128xf32> to vector<32x128xf32>
    %cst_73 = arith.constant dense<0.000000e+00> : vector<32x32xf32>
    %86 = tpu.matmul %85, %28, %cst_73 {dimension_numbers = #tpu.dot_dimension_numbers<[1], [0], [0], [1], [0, 0, 1, 1], [], []>} : vector<32x128xf32>, vector<128x32xf32>, vector<32x32xf32> -> vector<32x32xf32>
    %c8_74 = arith.constant 8 : index
    %c0_75 = arith.constant 0 : index
    %c0_76 = arith.constant 0 : index
    %87 = vector.load %arg5[%c8_74, %c0_75, %c0_76] : memref<9x32x64xf32, #tpu.memory_space<vmem>>, vector<1x32x64xf32>
    %88 = vector.shape_cast %87 : vector<1x32x64xf32> to vector<32x64xf32>
    %cst_77 = arith.constant dense<0.000000e+00> : vector<32x64xf32>
    %89 = tpu.matmul %86, %88, %cst_77 {dimension_numbers = #tpu.dot_dimension_numbers<[1], [0], [0], [1], [0, 0, 1, 1], [], []>} : vector<32x32xf32>, vector<32x64xf32>, vector<32x64xf32> -> vector<32x64xf32>
    %90 = arith.addf %83, %89 : vector<32x64xf32>
    %cst_78 = arith.constant dense<0.000000e+00> : vector<64xf32>
    %91 = vector.multi_reduction <add>, %90, %cst_78 [0] : vector<32x64xf32> to vector<64xf32>
    %92 = vector.shape_cast %91 : vector<64xf32> to vector<1x64xf32>
    %cst_79 = arith.constant 3.125000e-02 : f32
    %93 = vector.broadcast %cst_79 : f32 to vector<1x64xf32>
    %94 = arith.mulf %92, %93 : vector<1x64xf32>
    %95 = vector.broadcast %94 : vector<1x64xf32> to vector<32x64xf32>
    %96 = arith.subf %90, %95 : vector<32x64xf32>
    %97 = arith.mulf %96, %96 : vector<32x64xf32>
    %cst_80 = arith.constant dense<0.000000e+00> : vector<64xf32>
    %98 = vector.multi_reduction <add>, %97, %cst_80 [0] : vector<32x64xf32> to vector<64xf32>
    %99 = vector.shape_cast %98 : vector<64xf32> to vector<1x64xf32>
    %cst_81 = arith.constant 3.125000e-02 : f32
    %100 = vector.broadcast %cst_81 : f32 to vector<1x64xf32>
    %101 = arith.mulf %99, %100 : vector<1x64xf32>
    %c0_82 = arith.constant 0 : index
    %c0_83 = arith.constant 0 : index
    %102 = vector.load %arg6[%c0_82, %c0_83] : memref<1x64xf32, #tpu.memory_space<vmem>>, vector<1x64xf32>
    %cst_84 = arith.constant 9.99999974E-6 : f32
    %103 = vector.broadcast %cst_84 : f32 to vector<1x64xf32>
    %104 = arith.addf %101, %103 : vector<1x64xf32>
    %105 = math.rsqrt %104 : vector<1x64xf32>
    %106 = arith.mulf %102, %105 : vector<1x64xf32>
    %107 = vector.broadcast %106 : vector<1x64xf32> to vector<32x64xf32>
    %108 = arith.mulf %96, %107 : vector<32x64xf32>
    %c0_85 = arith.constant 0 : index
    %c0_86 = arith.constant 0 : index
    %109 = vector.load %arg7[%c0_85, %c0_86] : memref<1x64xf32, #tpu.memory_space<vmem>>, vector<1x64xf32>
    %110 = vector.broadcast %109 : vector<1x64xf32> to vector<32x64xf32>
    %111 = arith.addf %108, %110 : vector<32x64xf32>
    %cst_87 = arith.constant 0.000000e+00 : f32
    %112 = vector.broadcast %cst_87 : f32 to vector<32x64xf32>
    %113 = arith.cmpf ogt, %111, %112 : vector<32x64xf32>
    %cst_88 = arith.constant 0.00999999977 : f32
    %114 = vector.broadcast %cst_88 : f32 to vector<32x64xf32>
    %115 = arith.mulf %114, %111 : vector<32x64xf32>
    %116 = arith.select %113, %111, %115 : vector<32x64xi1>, vector<32x64xf32>
    %c0_89 = arith.constant 0 : index
    %c0_90 = arith.constant 0 : index
    %c0_91 = arith.constant 0 : index
    %117 = vector.load %arg8[%c0_89, %c0_90, %c0_91] : memref<9x8x32xf32, #tpu.memory_space<vmem>>, vector<1x8x32xf32>
    %118 = vector.shape_cast %117 : vector<1x8x32xf32> to vector<8x32xf32>
    %cst_92 = arith.constant dense<0.000000e+00> : vector<8x64xf32>
    %119 = tpu.matmul %118, %116, %cst_92 {dimension_numbers = #tpu.dot_dimension_numbers<[1], [0], [0], [1], [0, 0, 1, 1], [], []>} : vector<8x32xf32>, vector<32x64xf32>, vector<8x64xf32> -> vector<8x64xf32>
    %c0_93 = arith.constant 0 : index
    %c0_94 = arith.constant 0 : index
    %c0_95 = arith.constant 0 : index
    %120 = vector.load %arg9[%c0_93, %c0_94, %c0_95] : memref<9x64x128xf32, #tpu.memory_space<vmem>>, vector<1x64x128xf32>
    %121 = vector.shape_cast %120 : vector<1x64x128xf32> to vector<64x128xf32>
    %cst_96 = arith.constant dense<0.000000e+00> : vector<8x128xf32>
    %122 = tpu.matmul %119, %121, %cst_96 {dimension_numbers = #tpu.dot_dimension_numbers<[1], [0], [0], [1], [0, 0, 1, 1], [], []>} : vector<8x64xf32>, vector<64x128xf32>, vector<8x128xf32> -> vector<8x128xf32>
    %c1_97 = arith.constant 1 : index
    %c0_98 = arith.constant 0 : index
    %c0_99 = arith.constant 0 : index
    %123 = vector.load %arg8[%c1_97, %c0_98, %c0_99] : memref<9x8x32xf32, #tpu.memory_space<vmem>>, vector<1x8x32xf32>
    %124 = vector.shape_cast %123 : vector<1x8x32xf32> to vector<8x32xf32>
    %cst_100 = arith.constant dense<0.000000e+00> : vector<8x64xf32>
    %125 = tpu.matmul %124, %116, %cst_100 {dimension_numbers = #tpu.dot_dimension_numbers<[1], [0], [0], [1], [0, 0, 1, 1], [], []>} : vector<8x32xf32>, vector<32x64xf32>, vector<8x64xf32> -> vector<8x64xf32>
    %c1_101 = arith.constant 1 : index
    %c0_102 = arith.constant 0 : index
    %c0_103 = arith.constant 0 : index
    %126 = vector.load %arg9[%c1_101, %c0_102, %c0_103] : memref<9x64x128xf32, #tpu.memory_space<vmem>>, vector<1x64x128xf32>
    %127 = vector.shape_cast %126 : vector<1x64x128xf32> to vector<64x128xf32>
    %cst_104 = arith.constant dense<0.000000e+00> : vector<8x128xf32>
    %128 = tpu.matmul %125, %127, %cst_104 {dimension_numbers = #tpu.dot_dimension_numbers<[1], [0], [0], [1], [0, 0, 1, 1], [], []>} : vector<8x64xf32>, vector<64x128xf32>, vector<8x128xf32> -> vector<8x128xf32>
    %129 = arith.addf %122, %128 : vector<8x128xf32>
    %c2_105 = arith.constant 2 : index
    %c0_106 = arith.constant 0 : index
    %c0_107 = arith.constant 0 : index
    %130 = vector.load %arg8[%c2_105, %c0_106, %c0_107] : memref<9x8x32xf32, #tpu.memory_space<vmem>>, vector<1x8x32xf32>
    %131 = vector.shape_cast %130 : vector<1x8x32xf32> to vector<8x32xf32>
    %cst_108 = arith.constant dense<0.000000e+00> : vector<8x64xf32>
    %132 = tpu.matmul %131, %116, %cst_108 {dimension_numbers = #tpu.dot_dimension_numbers<[1], [0], [0], [1], [0, 0, 1, 1], [], []>} : vector<8x32xf32>, vector<32x64xf32>, vector<8x64xf32> -> vector<8x64xf32>
    %c2_109 = arith.constant 2 : index
    %c0_110 = arith.constant 0 : index
    %c0_111 = arith.constant 0 : index
    %133 = vector.load %arg9[%c2_109, %c0_110, %c0_111] : memref<9x64x128xf32, #tpu.memory_space<vmem>>, vector<1x64x128xf32>
    %134 = vector.shape_cast %133 : vector<1x64x128xf32> to vector<64x128xf32>
    %cst_112 = arith.constant dense<0.000000e+00> : vector<8x128xf32>
    %135 = tpu.matmul %132, %134, %cst_112 {dimension_numbers = #tpu.dot_dimension_numbers<[1], [0], [0], [1], [0, 0, 1, 1], [], []>} : vector<8x64xf32>, vector<64x128xf32>, vector<8x128xf32> -> vector<8x128xf32>
    %136 = arith.addf %129, %135 : vector<8x128xf32>
    %c3_113 = arith.constant 3 : index
    %c0_114 = arith.constant 0 : index
    %c0_115 = arith.constant 0 : index
    %137 = vector.load %arg8[%c3_113, %c0_114, %c0_115] : memref<9x8x32xf32, #tpu.memory_space<vmem>>, vector<1x8x32xf32>
    %138 = vector.shape_cast %137 : vector<1x8x32xf32> to vector<8x32xf32>
    %cst_116 = arith.constant dense<0.000000e+00> : vector<8x64xf32>
    %139 = tpu.matmul %138, %116, %cst_116 {dimension_numbers = #tpu.dot_dimension_numbers<[1], [0], [0], [1], [0, 0, 1, 1], [], []>} : vector<8x32xf32>, vector<32x64xf32>, vector<8x64xf32> -> vector<8x64xf32>
    %c3_117 = arith.constant 3 : index
    %c0_118 = arith.constant 0 : index
    %c0_119 = arith.constant 0 : index
    %140 = vector.load %arg9[%c3_117, %c0_118, %c0_119] : memref<9x64x128xf32, #tpu.memory_space<vmem>>, vector<1x64x128xf32>
    %141 = vector.shape_cast %140 : vector<1x64x128xf32> to vector<64x128xf32>
    %cst_120 = arith.constant dense<0.000000e+00> : vector<8x128xf32>
    %142 = tpu.matmul %139, %141, %cst_120 {dimension_numbers = #tpu.dot_dimension_numbers<[1], [0], [0], [1], [0, 0, 1, 1], [], []>} : vector<8x64xf32>, vector<64x128xf32>, vector<8x128xf32> -> vector<8x128xf32>
    %143 = arith.addf %136, %142 : vector<8x128xf32>
    %c4_121 = arith.constant 4 : index
    %c0_122 = arith.constant 0 : index
    %c0_123 = arith.constant 0 : index
    %144 = vector.load %arg8[%c4_121, %c0_122, %c0_123] : memref<9x8x32xf32, #tpu.memory_space<vmem>>, vector<1x8x32xf32>
    %145 = vector.shape_cast %144 : vector<1x8x32xf32> to vector<8x32xf32>
    %cst_124 = arith.constant dense<0.000000e+00> : vector<8x64xf32>
    %146 = tpu.matmul %145, %116, %cst_124 {dimension_numbers = #tpu.dot_dimension_numbers<[1], [0], [0], [1], [0, 0, 1, 1], [], []>} : vector<8x32xf32>, vector<32x64xf32>, vector<8x64xf32> -> vector<8x64xf32>
    %c4_125 = arith.constant 4 : index
    %c0_126 = arith.constant 0 : index
    %c0_127 = arith.constant 0 : index
    %147 = vector.load %arg9[%c4_125, %c0_126, %c0_127] : memref<9x64x128xf32, #tpu.memory_space<vmem>>, vector<1x64x128xf32>
    %148 = vector.shape_cast %147 : vector<1x64x128xf32> to vector<64x128xf32>
    %cst_128 = arith.constant dense<0.000000e+00> : vector<8x128xf32>
    %149 = tpu.matmul %146, %148, %cst_128 {dimension_numbers = #tpu.dot_dimension_numbers<[1], [0], [0], [1], [0, 0, 1, 1], [], []>} : vector<8x64xf32>, vector<64x128xf32>, vector<8x128xf32> -> vector<8x128xf32>
    %150 = arith.addf %143, %149 : vector<8x128xf32>
    %c5_129 = arith.constant 5 : index
    %c0_130 = arith.constant 0 : index
    %c0_131 = arith.constant 0 : index
    %151 = vector.load %arg8[%c5_129, %c0_130, %c0_131] : memref<9x8x32xf32, #tpu.memory_space<vmem>>, vector<1x8x32xf32>
    %152 = vector.shape_cast %151 : vector<1x8x32xf32> to vector<8x32xf32>
    %cst_132 = arith.constant dense<0.000000e+00> : vector<8x64xf32>
    %153 = tpu.matmul %152, %116, %cst_132 {dimension_numbers = #tpu.dot_dimension_numbers<[1], [0], [0], [1], [0, 0, 1, 1], [], []>} : vector<8x32xf32>, vector<32x64xf32>, vector<8x64xf32> -> vector<8x64xf32>
    %c5_133 = arith.constant 5 : index
    %c0_134 = arith.constant 0 : index
    %c0_135 = arith.constant 0 : index
    %154 = vector.load %arg9[%c5_133, %c0_134, %c0_135] : memref<9x64x128xf32, #tpu.memory_space<vmem>>, vector<1x64x128xf32>
    %155 = vector.shape_cast %154 : vector<1x64x128xf32> to vector<64x128xf32>
    %cst_136 = arith.constant dense<0.000000e+00> : vector<8x128xf32>
    %156 = tpu.matmul %153, %155, %cst_136 {dimension_numbers = #tpu.dot_dimension_numbers<[1], [0], [0], [1], [0, 0, 1, 1], [], []>} : vector<8x64xf32>, vector<64x128xf32>, vector<8x128xf32> -> vector<8x128xf32>
    %157 = arith.addf %150, %156 : vector<8x128xf32>
    %c6_137 = arith.constant 6 : index
    %c0_138 = arith.constant 0 : index
    %c0_139 = arith.constant 0 : index
    %158 = vector.load %arg8[%c6_137, %c0_138, %c0_139] : memref<9x8x32xf32, #tpu.memory_space<vmem>>, vector<1x8x32xf32>
    %159 = vector.shape_cast %158 : vector<1x8x32xf32> to vector<8x32xf32>
    %cst_140 = arith.constant dense<0.000000e+00> : vector<8x64xf32>
    %160 = tpu.matmul %159, %116, %cst_140 {dimension_numbers = #tpu.dot_dimension_numbers<[1], [0], [0], [1], [0, 0, 1, 1], [], []>} : vector<8x32xf32>, vector<32x64xf32>, vector<8x64xf32> -> vector<8x64xf32>
    %c6_141 = arith.constant 6 : index
    %c0_142 = arith.constant 0 : index
    %c0_143 = arith.constant 0 : index
    %161 = vector.load %arg9[%c6_141, %c0_142, %c0_143] : memref<9x64x128xf32, #tpu.memory_space<vmem>>, vector<1x64x128xf32>
    %162 = vector.shape_cast %161 : vector<1x64x128xf32> to vector<64x128xf32>
    %cst_144 = arith.constant dense<0.000000e+00> : vector<8x128xf32>
    %163 = tpu.matmul %160, %162, %cst_144 {dimension_numbers = #tpu.dot_dimension_numbers<[1], [0], [0], [1], [0, 0, 1, 1], [], []>} : vector<8x64xf32>, vector<64x128xf32>, vector<8x128xf32> -> vector<8x128xf32>
    %164 = arith.addf %157, %163 : vector<8x128xf32>
    %c7_145 = arith.constant 7 : index
    %c0_146 = arith.constant 0 : index
    %c0_147 = arith.constant 0 : index
    %165 = vector.load %arg8[%c7_145, %c0_146, %c0_147] : memref<9x8x32xf32, #tpu.memory_space<vmem>>, vector<1x8x32xf32>
    %166 = vector.shape_cast %165 : vector<1x8x32xf32> to vector<8x32xf32>
    %cst_148 = arith.constant dense<0.000000e+00> : vector<8x64xf32>
    %167 = tpu.matmul %166, %116, %cst_148 {dimension_numbers = #tpu.dot_dimension_numbers<[1], [0], [0], [1], [0, 0, 1, 1], [], []>} : vector<8x32xf32>, vector<32x64xf32>, vector<8x64xf32> -> vector<8x64xf32>
    %c7_149 = arith.constant 7 : index
    %c0_150 = arith.constant 0 : index
    %c0_151 = arith.constant 0 : index
    %168 = vector.load %arg9[%c7_149, %c0_150, %c0_151] : memref<9x64x128xf32, #tpu.memory_space<vmem>>, vector<1x64x128xf32>
    %169 = vector.shape_cast %168 : vector<1x64x128xf32> to vector<64x128xf32>
    %cst_152 = arith.constant dense<0.000000e+00> : vector<8x128xf32>
    %170 = tpu.matmul %167, %169, %cst_152 {dimension_numbers = #tpu.dot_dimension_numbers<[1], [0], [0], [1], [0, 0, 1, 1], [], []>} : vector<8x64xf32>, vector<64x128xf32>, vector<8x128xf32> -> vector<8x128xf32>
    %171 = arith.addf %164, %170 : vector<8x128xf32>
    %c8_153 = arith.constant 8 : index
    %c0_154 = arith.constant 0 : index
    %c0_155 = arith.constant 0 : index
    %172 = vector.load %arg8[%c8_153, %c0_154, %c0_155] : memref<9x8x32xf32, #tpu.memory_space<vmem>>, vector<1x8x32xf32>
    %173 = vector.shape_cast %172 : vector<1x8x32xf32> to vector<8x32xf32>
    %cst_156 = arith.constant dense<0.000000e+00> : vector<8x64xf32>
    %174 = tpu.matmul %173, %116, %cst_156 {dimension_numbers = #tpu.dot_dimension_numbers<[1], [0], [0], [1], [0, 0, 1, 1], [], []>} : vector<8x32xf32>, vector<32x64xf32>, vector<8x64xf32> -> vector<8x64xf32>
    %c8_157 = arith.constant 8 : index
    %c0_158 = arith.constant 0 : index
    %c0_159 = arith.constant 0 : index
    %175 = vector.load %arg9[%c8_157, %c0_158, %c0_159] : memref<9x64x128xf32, #tpu.memory_space<vmem>>, vector<1x64x128xf32>
    %176 = vector.shape_cast %175 : vector<1x64x128xf32> to vector<64x128xf32>
    %cst_160 = arith.constant dense<0.000000e+00> : vector<8x128xf32>
    %177 = tpu.matmul %174, %176, %cst_160 {dimension_numbers = #tpu.dot_dimension_numbers<[1], [0], [0], [1], [0, 0, 1, 1], [], []>} : vector<8x64xf32>, vector<64x128xf32>, vector<8x128xf32> -> vector<8x128xf32>
    %178 = arith.addf %171, %177 : vector<8x128xf32>
    %cst_161 = arith.constant dense<0.000000e+00> : vector<128xf32>
    %179 = vector.multi_reduction <add>, %178, %cst_161 [0] : vector<8x128xf32> to vector<128xf32>
    %180 = vector.shape_cast %179 : vector<128xf32> to vector<1x128xf32>
    %cst_162 = arith.constant 1.250000e-01 : f32
    %181 = vector.broadcast %cst_162 : f32 to vector<1x128xf32>
    %182 = arith.mulf %180, %181 : vector<1x128xf32>
    %183 = vector.broadcast %182 : vector<1x128xf32> to vector<8x128xf32>
    %184 = arith.subf %178, %183 : vector<8x128xf32>
    %185 = arith.mulf %184, %184 : vector<8x128xf32>
    %cst_163 = arith.constant dense<0.000000e+00> : vector<128xf32>
    %186 = vector.multi_reduction <add>, %185, %cst_163 [0] : vector<8x128xf32> to vector<128xf32>
    %187 = vector.shape_cast %186 : vector<128xf32> to vector<1x128xf32>
    %cst_164 = arith.constant 1.250000e-01 : f32
    %188 = vector.broadcast %cst_164 : f32 to vector<1x128xf32>
    %189 = arith.mulf %187, %188 : vector<1x128xf32>
    %c0_165 = arith.constant 0 : index
    %c0_166 = arith.constant 0 : index
    %190 = vector.load %arg10[%c0_165, %c0_166] : memref<1x128xf32, #tpu.memory_space<vmem>>, vector<1x128xf32>
    %cst_167 = arith.constant 9.99999974E-6 : f32
    %191 = vector.broadcast %cst_167 : f32 to vector<1x128xf32>
    %192 = arith.addf %189, %191 : vector<1x128xf32>
    %193 = math.rsqrt %192 : vector<1x128xf32>
    %194 = arith.mulf %190, %193 : vector<1x128xf32>
    %195 = vector.broadcast %194 : vector<1x128xf32> to vector<8x128xf32>
    %196 = arith.mulf %184, %195 : vector<8x128xf32>
    %c0_168 = arith.constant 0 : index
    %c0_169 = arith.constant 0 : index
    %197 = vector.load %arg11[%c0_168, %c0_169] : memref<1x128xf32, #tpu.memory_space<vmem>>, vector<1x128xf32>
    %198 = vector.broadcast %197 : vector<1x128xf32> to vector<8x128xf32>
    %199 = arith.addf %196, %198 : vector<8x128xf32>
    %cst_170 = arith.constant 0.000000e+00 : f32
    %200 = vector.broadcast %cst_170 : f32 to vector<8x128xf32>
    %201 = arith.cmpf ogt, %199, %200 : vector<8x128xf32>
    %cst_171 = arith.constant 0.00999999977 : f32
    %202 = vector.broadcast %cst_171 : f32 to vector<8x128xf32>
    %203 = arith.mulf %202, %199 : vector<8x128xf32>
    %204 = arith.select %201, %199, %203 : vector<8x128xi1>, vector<8x128xf32>
    %c0_172 = arith.constant 0 : index
    %c0_173 = arith.constant 0 : index
    %c0_174 = arith.constant 0 : index
    %205 = vector.load %arg12[%c0_172, %c0_173, %c0_174] : memref<4x2x8xf32, #tpu.memory_space<vmem>>, vector<1x2x8xf32>
    %206 = vector.shape_cast %205 : vector<1x2x8xf32> to vector<2x8xf32>
    %cst_175 = arith.constant dense<0.000000e+00> : vector<2x128xf32>
    %207 = tpu.matmul %206, %204, %cst_175 {dimension_numbers = #tpu.dot_dimension_numbers<[1], [0], [0], [1], [0, 0, 1, 1], [], []>} : vector<2x8xf32>, vector<8x128xf32>, vector<2x128xf32> -> vector<2x128xf32>
    %c0_176 = arith.constant 0 : index
    %c0_177 = arith.constant 0 : index
    %c0_178 = arith.constant 0 : index
    %208 = vector.load %arg13[%c0_176, %c0_177, %c0_178] : memref<4x128x256xf32, #tpu.memory_space<vmem>>, vector<1x128x256xf32>
    %209 = vector.shape_cast %208 : vector<1x128x256xf32> to vector<128x256xf32>
    %cst_179 = arith.constant dense<0.000000e+00> : vector<2x256xf32>
    %210 = tpu.matmul %207, %209, %cst_179 {dimension_numbers = #tpu.dot_dimension_numbers<[1], [0], [0], [1], [0, 0, 1, 1], [], []>} : vector<2x128xf32>, vector<128x256xf32>, vector<2x256xf32> -> vector<2x256xf32>
    %c1_180 = arith.constant 1 : index
    %c0_181 = arith.constant 0 : index
    %c0_182 = arith.constant 0 : index
    %211 = vector.load %arg12[%c1_180, %c0_181, %c0_182] : memref<4x2x8xf32, #tpu.memory_space<vmem>>, vector<1x2x8xf32>
    %212 = vector.shape_cast %211 : vector<1x2x8xf32> to vector<2x8xf32>
    %cst_183 = arith.constant dense<0.000000e+00> : vector<2x128xf32>
    %213 = tpu.matmul %212, %204, %cst_183 {dimension_numbers = #tpu.dot_dimension_numbers<[1], [0], [0], [1], [0, 0, 1, 1], [], []>} : vector<2x8xf32>, vector<8x128xf32>, vector<2x128xf32> -> vector<2x128xf32>
    %c1_184 = arith.constant 1 : index
    %c0_185 = arith.constant 0 : index
    %c0_186 = arith.constant 0 : index
    %214 = vector.load %arg13[%c1_184, %c0_185, %c0_186] : memref<4x128x256xf32, #tpu.memory_space<vmem>>, vector<1x128x256xf32>
    %215 = vector.shape_cast %214 : vector<1x128x256xf32> to vector<128x256xf32>
    %cst_187 = arith.constant dense<0.000000e+00> : vector<2x256xf32>
    %216 = tpu.matmul %213, %215, %cst_187 {dimension_numbers = #tpu.dot_dimension_numbers<[1], [0], [0], [1], [0, 0, 1, 1], [], []>} : vector<2x128xf32>, vector<128x256xf32>, vector<2x256xf32> -> vector<2x256xf32>
    %217 = arith.addf %210, %216 : vector<2x256xf32>
    %c2_188 = arith.constant 2 : index
    %c0_189 = arith.constant 0 : index
    %c0_190 = arith.constant 0 : index
    %218 = vector.load %arg12[%c2_188, %c0_189, %c0_190] : memref<4x2x8xf32, #tpu.memory_space<vmem>>, vector<1x2x8xf32>
    %219 = vector.shape_cast %218 : vector<1x2x8xf32> to vector<2x8xf32>
    %cst_191 = arith.constant dense<0.000000e+00> : vector<2x128xf32>
    %220 = tpu.matmul %219, %204, %cst_191 {dimension_numbers = #tpu.dot_dimension_numbers<[1], [0], [0], [1], [0, 0, 1, 1], [], []>} : vector<2x8xf32>, vector<8x128xf32>, vector<2x128xf32> -> vector<2x128xf32>
    %c2_192 = arith.constant 2 : index
    %c0_193 = arith.constant 0 : index
    %c0_194 = arith.constant 0 : index
    %221 = vector.load %arg13[%c2_192, %c0_193, %c0_194] : memref<4x128x256xf32, #tpu.memory_space<vmem>>, vector<1x128x256xf32>
    %222 = vector.shape_cast %221 : vector<1x128x256xf32> to vector<128x256xf32>
    %cst_195 = arith.constant dense<0.000000e+00> : vector<2x256xf32>
    %223 = tpu.matmul %220, %222, %cst_195 {dimension_numbers = #tpu.dot_dimension_numbers<[1], [0], [0], [1], [0, 0, 1, 1], [], []>} : vector<2x128xf32>, vector<128x256xf32>, vector<2x256xf32> -> vector<2x256xf32>
    %224 = arith.addf %217, %223 : vector<2x256xf32>
    %c3_196 = arith.constant 3 : index
    %c0_197 = arith.constant 0 : index
    %c0_198 = arith.constant 0 : index
    %225 = vector.load %arg12[%c3_196, %c0_197, %c0_198] : memref<4x2x8xf32, #tpu.memory_space<vmem>>, vector<1x2x8xf32>
    %226 = vector.shape_cast %225 : vector<1x2x8xf32> to vector<2x8xf32>
    %cst_199 = arith.constant dense<0.000000e+00> : vector<2x128xf32>
    %227 = tpu.matmul %226, %204, %cst_199 {dimension_numbers = #tpu.dot_dimension_numbers<[1], [0], [0], [1], [0, 0, 1, 1], [], []>} : vector<2x8xf32>, vector<8x128xf32>, vector<2x128xf32> -> vector<2x128xf32>
    %c3_200 = arith.constant 3 : index
    %c0_201 = arith.constant 0 : index
    %c0_202 = arith.constant 0 : index
    %228 = vector.load %arg13[%c3_200, %c0_201, %c0_202] : memref<4x128x256xf32, #tpu.memory_space<vmem>>, vector<1x128x256xf32>
    %229 = vector.shape_cast %228 : vector<1x128x256xf32> to vector<128x256xf32>
    %cst_203 = arith.constant dense<0.000000e+00> : vector<2x256xf32>
    %230 = tpu.matmul %227, %229, %cst_203 {dimension_numbers = #tpu.dot_dimension_numbers<[1], [0], [0], [1], [0, 0, 1, 1], [], []>} : vector<2x128xf32>, vector<128x256xf32>, vector<2x256xf32> -> vector<2x256xf32>
    %231 = arith.addf %224, %230 : vector<2x256xf32>
    %cst_204 = arith.constant dense<0.000000e+00> : vector<256xf32>
    %232 = vector.multi_reduction <add>, %231, %cst_204 [0] : vector<2x256xf32> to vector<256xf32>
    %233 = vector.shape_cast %232 : vector<256xf32> to vector<1x256xf32>
    %cst_205 = arith.constant 5.000000e-01 : f32
    %234 = vector.broadcast %cst_205 : f32 to vector<1x256xf32>
    %235 = arith.mulf %233, %234 : vector<1x256xf32>
    %236 = vector.broadcast %235 : vector<1x256xf32> to vector<2x256xf32>
    %237 = arith.subf %231, %236 : vector<2x256xf32>
    %238 = arith.mulf %237, %237 : vector<2x256xf32>
    %cst_206 = arith.constant dense<0.000000e+00> : vector<256xf32>
    %239 = vector.multi_reduction <add>, %238, %cst_206 [0] : vector<2x256xf32> to vector<256xf32>
    %240 = vector.shape_cast %239 : vector<256xf32> to vector<1x256xf32>
    %cst_207 = arith.constant 5.000000e-01 : f32
    %241 = vector.broadcast %cst_207 : f32 to vector<1x256xf32>
    %242 = arith.mulf %240, %241 : vector<1x256xf32>
    %c0_208 = arith.constant 0 : index
    %c0_209 = arith.constant 0 : index
    %243 = vector.load %arg14[%c0_208, %c0_209] : memref<1x256xf32, #tpu.memory_space<vmem>>, vector<1x256xf32>
    %cst_210 = arith.constant 9.99999974E-6 : f32
    %244 = vector.broadcast %cst_210 : f32 to vector<1x256xf32>
    %245 = arith.addf %242, %244 : vector<1x256xf32>
    %246 = math.rsqrt %245 : vector<1x256xf32>
    %247 = arith.mulf %243, %246 : vector<1x256xf32>
    %248 = vector.broadcast %247 : vector<1x256xf32> to vector<2x256xf32>
    %249 = arith.mulf %237, %248 : vector<2x256xf32>
    %c0_211 = arith.constant 0 : index
    %c0_212 = arith.constant 0 : index
    %250 = vector.load %arg15[%c0_211, %c0_212] : memref<1x256xf32, #tpu.memory_space<vmem>>, vector<1x256xf32>
    %251 = vector.broadcast %250 : vector<1x256xf32> to vector<2x256xf32>
    %252 = arith.addf %249, %251 : vector<2x256xf32>
    %cst_213 = arith.constant 0.000000e+00 : f32
    %253 = vector.broadcast %cst_213 : f32 to vector<2x256xf32>
    %254 = arith.cmpf ogt, %252, %253 : vector<2x256xf32>
    %cst_214 = arith.constant 0.00999999977 : f32
    %255 = vector.broadcast %cst_214 : f32 to vector<2x256xf32>
    %256 = arith.mulf %255, %252 : vector<2x256xf32>
    %257 = arith.select %254, %252, %256 : vector<2x256xi1>, vector<2x256xf32>
    %c0_215 = arith.constant 0 : index
    %c0_216 = arith.constant 0 : index
    %258 = vector.load %arg16[%c0_215, %c0_216] : memref<256x256xf32, #tpu.memory_space<vmem>>, vector<256x256xf32>
    %cst_217 = arith.constant dense<0.000000e+00> : vector<2x256xf32>
    %259 = tpu.matmul %257, %258, %cst_217 {dimension_numbers = #tpu.dot_dimension_numbers<[1], [0], [0], [1], [0, 0, 1, 1], [], []>} : vector<2x256xf32>, vector<256x256xf32>, vector<2x256xf32> -> vector<2x256xf32>
    %c0_218 = arith.constant 0 : index
    %c0_219 = arith.constant 0 : index
    %260 = vector.load %arg17[%c0_218, %c0_219] : memref<1x256xf32, #tpu.memory_space<vmem>>, vector<1x256xf32>
    %261 = vector.broadcast %260 : vector<1x256xf32> to vector<2x256xf32>
    %262 = arith.addf %259, %261 : vector<2x256xf32>
    %c0_220 = arith.constant 0 : index
    %c0_221 = arith.constant 0 : index
    %263 = vector.load %arg18[%c0_220, %c0_221] : memref<2x256xf32, #tpu.memory_space<vmem>>, vector<2x256xf32>
    tpu.vector_store %arg18[%c0_220, %c0_221], %262 {strides = array<i32>} : memref<2x256xf32, #tpu.memory_space<vmem>>, vector<2x256xf32>,
    return
  }
}

</mosaic_0001>

<llo_original>
// kernel: _lambda_.1
$region0: #{_lambda_.1}
  #allocation0 [shape = 'u32[]', space=smem, size = 0x4, offset = 0x4, fixed_abs, tag = 'smem constant byte address 0x4 - core index']
  #allocation1 [shape = 'u32[72,128]{1,0:T(1,128)}', space=vmem, size = 0x9000, scoped, tag = 'internal scratch']
  %s0 = inlined_call_operand.vmem [shape: f32[128,36], index: 0, kind: input, shape index: {}]
  %s1 = inlined_call_operand.vmem [shape: f32[36,32], index: 1, kind: input, shape index: {}]
  %s2 = inlined_call_operand.vmem [shape: f32[1,32], index: 2, kind: input, shape index: {}]
  %s3 = inlined_call_operand.vmem [shape: f32[1,32], index: 3, kind: input, shape index: {}]
  %s4 = inlined_call_operand.vmem [shape: f32[9,32,128], index: 4, kind: input, shape index: {}]
  %s5 = inlined_call_operand.vmem [shape: f32[9,32,64], index: 5, kind: input, shape index: {}]
  %s6 = inlined_call_operand.vmem [shape: f32[1,64], index: 6, kind: input, shape index: {}]
  %s7 = inlined_call_operand.vmem [shape: f32[1,64], index: 7, kind: input, shape index: {}]
  %s8 = inlined_call_operand.vmem [shape: f32[9,8,32], index: 8, kind: input, shape index: {}]
  %s9 = inlined_call_operand.vmem [shape: f32[9,64,128], index: 9, kind: input, shape index: {}]
  %s10 = inlined_call_operand.vmem [shape: f32[1,128], index: 10, kind: input, shape index: {}]
  %s11 = inlined_call_operand.vmem [shape: f32[1,128], index: 11, kind: input, shape index: {}]
  %s12 = inlined_call_operand.vmem [shape: f32[4,2,8], index: 12, kind: input, shape index: {}]
  %s13 = inlined_call_operand.vmem [shape: f32[4,128,256], index: 13, kind: input, shape index: {}]
  %s14 = inlined_call_operand.vmem [shape: f32[1,256], index: 14, kind: input, shape index: {}]
  %s15 = inlined_call_operand.vmem [shape: f32[1,256], index: 15, kind: input, shape index: {}]
  %s16 = inlined_call_operand.vmem [shape: f32[256,256], index: 16, kind: input, shape index: {}]
  %s17 = inlined_call_operand.vmem [shape: f32[1,256], index: 17, kind: input, shape index: {}]
  %s18 = inlined_call_operand.vmem [shape: f32[2,256], index: 18, kind: output, shape index: {}]
  %s19 = sld [smem:[#allocation0]]
  $region82: #{_lambda_.1} parent=0
    _
  %s21 = ssub.s32 1, %s19
  %s22 = scalar_select 0, %s21, %s19
  // Predicated region
  $region2: #{_lambda_.1} parent=0 // pred_check
    _
  $region3: #{_lambda_.1} parent=0 // pred_check_branch
    %24 = sbr.rel (0) target = $region5
  $region4: #{_lambda_.1} parent=0 // pred_region
    _
  $region5: #{_lambda_.1} parent=0 // pred_fallthru
    _
  // Predicated region
  $region6: #{_lambda_.1} parent=0 // pred_check
    _
  $region7: #{_lambda_.1} parent=0 // pred_check_branch
    %26 = sbr.rel (0) target = $region9
  $region8: #{_lambda_.1} parent=0 // pred_region
    _
  $region9: #{_lambda_.1} parent=0 // pred_fallthru
    _
  // Predicated region
  $region10: #{_lambda_.1} parent=0 // pred_check
    _
  $region11: #{_lambda_.1} parent=0 // pred_check_branch
    %28 = sbr.rel (0) target = $region13
  $region12: #{_lambda_.1} parent=0 // pred_region
    _
  $region13: #{_lambda_.1} parent=0 // pred_fallthru
    _
  // Predicated region
  $region14: #{_lambda_.1} parent=0 // pred_check
    _
  $region15: #{_lambda_.1} parent=0 // pred_check_branch
    %30 = sbr.rel (0) target = $region17
  $region16: #{_lambda_.1} parent=0 // pred_region
    _
  $region17: #{_lambda_.1} parent=0 // pred_fallthru
    _
  // Predicated region
  $region18: #{_lambda_.1} parent=0 // pred_check
    _
  $region19: #{_lambda_.1} parent=0 // pred_check_branch
    %32 = sbr.rel (0) target = $region21
  $region20: #{_lambda_.1} parent=0 // pred_region
    _
  $region21: #{_lambda_.1} parent=0 // pred_fallthru
    _
  // Predicated region
  $region22: #{_lambda_.1} parent=0 // pred_check
    _
  $region23: #{_lambda_.1} parent=0 // pred_check_branch
    %34 = sbr.rel (0) target = $region25
  $region24: #{_lambda_.1} parent=0 // pred_region
    _
  $region25: #{_lambda_.1} parent=0 // pred_fallthru
    _
  // Predicated region
  $region26: #{_lambda_.1} parent=0 // pred_check
    _
  $region27: #{_lambda_.1} parent=0 // pred_check_branch
    %36 = sbr.rel (0) target = $region29
  $region28: #{_lambda_.1} parent=0 // pred_region
    _
  $region29: #{_lambda_.1} parent=0 // pred_fallthru
    _
  // Predicated region
  $region30: #{_lambda_.1} parent=0 // pred_check
    _
  $region31: #{_lambda_.1} parent=0 // pred_check_branch
    %38 = sbr.rel (0) target = $region33
  $region32: #{_lambda_.1} parent=0 // pred_region
    _
  $region33: #{_lambda_.1} parent=0 // pred_fallthru
    _
  // Predicated region
  $region34: #{_lambda_.1} parent=0 // pred_check
    _
  $region35: #{_lambda_.1} parent=0 // pred_check_branch
    %40 = sbr.rel (0) target = $region37
  $region36: #{_lambda_.1} parent=0 // pred_region
    _
  $region37: #{_lambda_.1} parent=0 // pred_fallthru
    _
  // Predicated region
  $region38: #{_lambda_.1} parent=0 // pred_check
    _
  $region39: #{_lambda_.1} parent=0 // pred_check_branch
    %42 = sbr.rel (0) target = $region41
  $region40: #{_lambda_.1} parent=0 // pred_region
    _
  $region41: #{_lambda_.1} parent=0 // pred_fallthru
    _
  // Predicated region
  $region42: #{_lambda_.1} parent=0 // pred_check
    _
  $region43: #{_lambda_.1} parent=0 // pred_check_branch
    %44 = sbr.rel (0) target = $region45
  $region44: #{_lambda_.1} parent=0 // pred_region
    _
  $region45: #{_lambda_.1} parent=0 // pred_fallthru
    _
  // Predicated region
  $region46: #{_lambda_.1} parent=0 // pred_check
    _
  $region47: #{_lambda_.1} parent=0 // pred_check_branch
    %46 = sbr.rel (0) target = $region49
  $region48: #{_lambda_.1} parent=0 // pred_region
    _
  $region49: #{_lambda_.1} parent=0 // pred_fallthru
    _
  // Predicated region
  $region50: #{_lambda_.1} parent=0 // pred_check
    _
  $region51: #{_lambda_.1} parent=0 // pred_check_branch
    %48 = sbr.rel (0) target = $region53
  $region52: #{_lambda_.1} parent=0 // pred_region
    _
  $region53: #{_lambda_.1} parent=0 // pred_fallthru
    _
  // Predicated region
  $region54: #{_lambda_.1} parent=0 // pred_check
    _
  $region55: #{_lambda_.1} parent=0 // pred_check_branch
    %50 = sbr.rel (0) target = $region57
  $region56: #{_lambda_.1} parent=0 // pred_region
    _
  $region57: #{_lambda_.1} parent=0 // pred_fallthru
    _
  // Predicated region
  $region58: #{_lambda_.1} parent=0 // pred_check
    _
  $region59: #{_lambda_.1} parent=0 // pred_check_branch
    %52 = sbr.rel (0) target = $region61
  $region60: #{_lambda_.1} parent=0 // pred_region
    _
  $region61: #{_lambda_.1} parent=0 // pred_fallthru
    _
  // Predicated region
  $region62: #{_lambda_.1} parent=0 // pred_check
    _
  $region63: #{_lambda_.1} parent=0 // pred_check_branch
    %54 = sbr.rel (0) target = $region65
  $region64: #{_lambda_.1} parent=0 // pred_region
    _
  $region65: #{_lambda_.1} parent=0 // pred_fallthru
    _
  // Predicated region
  $region66: #{_lambda_.1} parent=0 // pred_check
    _
  $region67: #{_lambda_.1} parent=0 // pred_check_branch
    %56 = sbr.rel (0) target = $region69
  $region68: #{_lambda_.1} parent=0 // pred_region
    _
  $region69: #{_lambda_.1} parent=0 // pred_fallthru
    _
  // Predicated region
  $region70: #{_lambda_.1} parent=0 // pred_check
    _
  $region71: #{_lambda_.1} parent=0 // pred_check_branch
    %58 = sbr.rel (0) target = $region73
  $region72: #{_lambda_.1} parent=0 // pred_region
    _
  $region73: #{_lambda_.1} parent=0 // pred_fallthru
    _
  %v59 = vld [vmem:[%s0] sm:$0xff]
  %v60 = vld [vmem:[%s0 + $0x8] sm:$0xff]
  %v61 = vld [vmem:[%s0 + $0x10] sm:$0xff]
  %v62 = vld [vmem:[%s0 + $0x18] sm:$0xff]
  %v63 = vld [vmem:[%s0 + $0x20] sm:$0xff]
  %v64 = vld [vmem:[%s0 + $0x28] sm:$0xff]
  %v65 = vld [vmem:[%s0 + $0x30] sm:$0xff]
  %v66 = vld [vmem:[%s0 + $0x38] sm:$0xff]
  %v67 = vld [vmem:[%s0 + $0x40] sm:$0xff]
  %v68 = vld [vmem:[%s0 + $0x48] sm:$0xff]
  %v69 = vld [vmem:[%s0 + $0x50] sm:$0xff]
  %v70 = vld [vmem:[%s0 + $0x58] sm:$0xff]
  %v71 = vld [vmem:[%s0 + $0x60] sm:$0xff]
  %v72 = vld [vmem:[%s0 + $0x68] sm:$0xff]
  %v73 = vld [vmem:[%s0 + $0x70] sm:$0xff]
  %v74 = vld [vmem:[%s0 + $0x78] sm:$0xff]
  %v75 = vld [vmem:[%s1] sm:$0xff]
  %v76 = vld [vmem:[%s1 + $0x8] sm:$0xff]
  %v77 = vld [vmem:[%s1 + $0x10] sm:$0xff]
  %v78 = vld [vmem:[%s1 + $0x18] sm:$0xff]
  %v79 = vld [vmem:[%s1 + $0x20] sm:$0xf]
  %vm80 = vcmask 293888
  %v82 = vsel %vm80, %v59, 0
  %v85 = vsel %vm80, %v60, 0
  %v88 = vsel %vm80, %v61, 0
  %v91 = vsel %vm80, %v62, 0
  %v94 = vsel %vm80, %v63, 0
  %v97 = vsel %vm80, %v64, 0
  %v100 = vsel %vm80, %v65, 0
  %v103 = vsel %vm80, %v66, 0
  %v106 = vsel %vm80, %v67, 0
  %v109 = vsel %vm80, %v68, 0
  %v112 = vsel %vm80, %v69, 0
  %v115 = vsel %vm80, %v70, 0
  %v118 = vsel %vm80, %v71, 0
  %v121 = vsel %vm80, %v72, 0
  %v124 = vsel %vm80, %v73, 0
  %v127 = vsel %vm80, %v74, 0
  %vm129 = vcmask 1043456
  %v131 = vsel %vm129, %v79, 0
  %133 = vmatpush.msra.mxu0 0.0
  %134 = vmatpush.msra.mxu0 0.0
  %135 = vmatpush.msra.mxu0 0.0
  %136 = vmatpush.msra.mxu0 0.0
  %137 = vmatpush.msra.mxu0 0.0
  %138 = vmatpush.msra.mxu0 0.0
  %139 = vmatpush.msra.mxu0 0.0
  %140 = vmatpush.msra.mxu0 0.0
  %141 = vmatpush.msra.mxu0 0.0
  %142 = vmatpush.msra.mxu0 0.0
  %143 = vmatpush.msra.mxu0 0.0
  %144 = vmatpush.msra.mxu0 %v131
  %145 = vmatpush.msra.mxu0 %v78
  %146 = vmatpush.msra.mxu0 %v77
  %147 = vmatpush.msra.mxu0 %v76
  %148 = vmatpush.msra.mxu0 %v75
  %149 = vmatmul.f32.gmra.mxu0 %v82
  %v150 = vpop.f32.mrf.mxu0
  %v151 = vadd.f32 0.0, %v150
  %152 = vmatmul.f32.gmra.mxu0 %v85
  %v153 = vpop.f32.mrf.mxu0
  %v154 = vadd.f32 0.0, %v153
  %155 = vmatmul.f32.gmra.mxu0 %v88
  %v156 = vpop.f32.mrf.mxu0
  %v157 = vadd.f32 0.0, %v156
  %158 = vmatmul.f32.gmra.mxu0 %v91
  %v159 = vpop.f32.mrf.mxu0
  %v160 = vadd.f32 0.0, %v159
  %161 = vmatmul.f32.gmra.mxu0 %v94
  %v162 = vpop.f32.mrf.mxu0
  %v163 = vadd.f32 0.0, %v162
  %164 = vmatmul.f32.gmra.mxu0 %v97
  %v165 = vpop.f32.mrf.mxu0
  %v166 = vadd.f32 0.0, %v165
  %167 = vmatmul.f32.gmra.mxu0 %v100
  %v168 = vpop.f32.mrf.mxu0
  %v169 = vadd.f32 0.0, %v168
  %170 = vmatmul.f32.gmra.mxu0 %v103
  %v171 = vpop.f32.mrf.mxu0
  %v172 = vadd.f32 0.0, %v171
  %173 = vmatmul.f32.gmra.mxu0 %v106
  %v174 = vpop.f32.mrf.mxu0
  %v175 = vadd.f32 0.0, %v174
  %176 = vmatmul.f32.gmra.mxu0 %v109
  %v177 = vpop.f32.mrf.mxu0
  %v178 = vadd.f32 0.0, %v177
  %179 = vmatmul.f32.gmra.mxu0 %v112
  %v180 = vpop.f32.mrf.mxu0
  %v181 = vadd.f32 0.0, %v180
  %182 = vmatmul.f32.gmra.mxu0 %v115
  %v183 = vpop.f32.mrf.mxu0
  %v184 = vadd.f32 0.0, %v183
  %185 = vmatmul.f32.gmra.mxu0 %v118
  %v186 = vpop.f32.mrf.mxu0
  %v187 = vadd.f32 0.0, %v186
  %188 = vmatmul.f32.gmra.mxu0 %v121
  %v189 = vpop.f32.mrf.mxu0
  %v190 = vadd.f32 0.0, %v189
  %191 = vmatmul.f32.gmra.mxu0 %v124
  %v192 = vpop.f32.mrf.mxu0
  %v193 = vadd.f32 0.0, %v192
  %194 = vmatmul.f32.gmra.mxu0 %v127
  %v195 = vpop.f32.mrf.mxu0
  %v196 = vadd.f32 0.0, %v195
  %197 = vdwg.mxu0
  %vm198 = vcmask 261120
  %v199 = vsel %vm198, %v151, 0.0
  %v200 = vsel %vm198, %v154, 0.0
  %v201 = vadd.f32 %v199, %v200
  %v202 = vsel %vm198, %v157, 0.0
  %v203 = vadd.f32 %v201, %v202
  %v204 = vsel %vm198, %v160, 0.0
  %v205 = vadd.f32 %v203, %v204
  %v206 = vsel %vm198, %v163, 0.0
  %v207 = vadd.f32 %v205, %v206
  %v208 = vsel %vm198, %v166, 0.0
  %v209 = vadd.f32 %v207, %v208
  %v210 = vsel %vm198, %v169, 0.0
  %v211 = vadd.f32 %v209, %v210
  %v212 = vsel %vm198, %v172, 0.0
  %v213 = vadd.f32 %v211, %v212
  %v214 = vsel %vm198, %v175, 0.0
  %v215 = vadd.f32 %v213, %v214
  %v216 = vsel %vm198, %v178, 0.0
  %v217 = vadd.f32 %v215, %v216
  %v218 = vsel %vm198, %v181, 0.0
  %v219 = vadd.f32 %v217, %v218
  %v220 = vsel %vm198, %v184, 0.0
  %v221 = vadd.f32 %v219, %v220
  %v222 = vsel %vm198, %v187, 0.0
  %v223 = vadd.f32 %v221, %v222
  %v224 = vsel %vm198, %v190, 0.0
  %v225 = vadd.f32 %v223, %v224
  %v226 = vsel %vm198, %v193, 0.0
  %v227 = vadd.f32 %v225, %v226
  %v228 = vsel %vm198, %v196, 0.0
  %v229 = vadd.f32 %v227, %v228
  %v230 = vrot.slane %v229, 4
  %v231 = vadd.f32 %v229, %v230
  %v232 = vrot.slane %v231, 2
  %v233 = vadd.f32 %v231, %v232
  %v234 = vrot.slane %v233, 1
  %v235 = vadd.f32 %v233, %v234
  %v236 = vmul.f32 %v235, 0.0078125
  %v237 = vsub.f32 %v151, %v236
  %v238 = vsub.f32 %v154, %v236
  %v239 = vsub.f32 %v157, %v236
  %v240 = vsub.f32 %v160, %v236
  %v241 = vsub.f32 %v163, %v236
  %v242 = vsub.f32 %v166, %v236
  %v243 = vsub.f32 %v169, %v236
  %v244 = vsub.f32 %v172, %v236
  %v245 = vsub.f32 %v175, %v236
  %v246 = vsub.f32 %v178, %v236
  %v247 = vsub.f32 %v181, %v236
  %v248 = vsub.f32 %v184, %v236
  %v249 = vsub.f32 %v187, %v236
  %v250 = vsub.f32 %v190, %v236
  %v251 = vsub.f32 %v193, %v236
  %v252 = vsub.f32 %v196, %v236
  %v253 = vmul.f32 %v237, %v237
  %v254 = vmul.f32 %v238, %v238
  %v255 = vmul.f32 %v239, %v239
  %v256 = vmul.f32 %v240, %v240
  %v257 = vmul.f32 %v241, %v241
  %v258 = vmul.f32 %v242, %v242
  %v259 = vmul.f32 %v243, %v243
  %v260 = vmul.f32 %v244, %v244
  %v261 = vmul.f32 %v245, %v245
  %v262 = vmul.f32 %v246, %v246
  %v263 = vmul.f32 %v247, %v247
  %v264 = vmul.f32 %v248, %v248
  %v265 = vmul.f32 %v249, %v249
  %v266 = vmul.f32 %v250, %v250
  %v267 = vmul.f32 %v251, %v251
  %v268 = vmul.f32 %v252, %v252
  %v269 = vsel %vm198, %v253, 0.0
  %v270 = vsel %vm198, %v254, 0.0
  %v271 = vadd.f32 %v269, %v270
  %v272 = vsel %vm198, %v255, 0.0
  %v273 = vadd.f32 %v271, %v272
  %v274 = vsel %vm198, %v256, 0.0
  %v275 = vadd.f32 %v273, %v274
  %v276 = vsel %vm198, %v257, 0.0
  %v277 = vadd.f32 %v275, %v276
  %v278 = vsel %vm198, %v258, 0.0
  %v279 = vadd.f32 %v277, %v278
  %v280 = vsel %vm198, %v259, 0.0
  %v281 = vadd.f32 %v279, %v280
  %v282 = vsel %vm198, %v260, 0.0
  %v283 = vadd.f32 %v281, %v282
  %v284 = vsel %vm198, %v261, 0.0
  %v285 = vadd.f32 %v283, %v284
  %v286 = vsel %vm198, %v262, 0.0
  %v287 = vadd.f32 %v285, %v286
  %v288 = vsel %vm198, %v263, 0.0
  %v289 = vadd.f32 %v287, %v288
  %v290 = vsel %vm198, %v264, 0.0
  %v291 = vadd.f32 %v289, %v290
  %v292 = vsel %vm198, %v265, 0.0
  %v293 = vadd.f32 %v291, %v292
  %v294 = vsel %vm198, %v266, 0.0
  %v295 = vadd.f32 %v293, %v294
  %v296 = vsel %vm198, %v267, 0.0
  %v297 = vadd.f32 %v295, %v296
  %v298 = vsel %vm198, %v268, 0.0
  %v299 = vadd.f32 %v297, %v298
  %v300 = vrot.slane %v299, 4
  %v301 = vadd.f32 %v299, %v300
  %v302 = vrot.slane %v301, 2
  %v303 = vadd.f32 %v301, %v302
  %v304 = vrot.slane %v303, 1
  %v305 = vadd.f32 %v303, %v304
  %v306 = vmul.f32 %v305, 0.0078125
  %v307 = vld [vmem:[%s2] sm:$0x1]
  %v308 = vadd.f32 %v306, 1e-05
  %v309 = vrsqrt.pop %v308
  %v310 = vmul.f32 %v309, %v308
  %v311 = vmul.f32 %v310, %v309
  %v312 = vmul.f32 0.5, %v311
  %v313 = vsub.f32 1.5, %v312
  %v314 = vmul.f32 %v309, %v313
  %vm315 = vweird.f32 %v308
  %vm316 = vweird.f32 %v309
  %vm317 = vmor %vm315, %vm316
  %v318 = vsel %vm317, %v309, %v314
  %v319 = vmul.f32 %v307, %v318
  %v321 = vperm.slane %v319, 0
  %v323 = vmul.f32 %v237, %v321
  %v324 = vmul.f32 %v238, %v321
  %v325 = vmul.f32 %v239, %v321
  %v326 = vmul.f32 %v240, %v321
  %v327 = vmul.f32 %v241, %v321
  %v328 = vmul.f32 %v242, %v321
  %v329 = vmul.f32 %v243, %v321
  %v330 = vmul.f32 %v244, %v321
  %v331 = vmul.f32 %v245, %v321
  %v332 = vmul.f32 %v246, %v321
  %v333 = vmul.f32 %v247, %v321
  %v334 = vmul.f32 %v248, %v321
  %v335 = vmul.f32 %v249, %v321
  %v336 = vmul.f32 %v250, %v321
  %v337 = vmul.f32 %v251, %v321
  %v338 = vmul.f32 %v252, %v321
  %v339 = vld [vmem:[%s3] sm:$0x1]
  %v341 = vperm.slane %v339, 0
  %v343 = vadd.f32 %v323, %v341
  %v344 = vadd.f32 %v324, %v341
  %v345 = vadd.f32 %v325, %v341
  %v346 = vadd.f32 %v326, %v341
  %v347 = vadd.f32 %v327, %v341
  %v348 = vadd.f32 %v328, %v341
  %v349 = vadd.f32 %v329, %v341
  %v350 = vadd.f32 %v330, %v341
  %v351 = vadd.f32 %v331, %v341
  %v352 = vadd.f32 %v332, %v341
  %v353 = vadd.f32 %v333, %v341
  %v354 = vadd.f32 %v334, %v341
  %v355 = vadd.f32 %v335, %v341
  %v356 = vadd.f32 %v336, %v341
  %v357 = vadd.f32 %v337, %v341
  %v358 = vadd.f32 %v338, %v341
  %vm359 = vcmp.gt.f32.partialorder %v343, 0.0
  %vm360 = vcmp.gt.f32.partialorder %v344, 0.0
  %vm361 = vcmp.gt.f32.partialorder %v345, 0.0
  %vm362 = vcmp.gt.f32.partialorder %v346, 0.0
  %vm363 = vcmp.gt.f32.partialorder %v347, 0.0
  %vm364 = vcmp.gt.f32.partialorder %v348, 0.0
  %vm365 = vcmp.gt.f32.partialorder %v349, 0.0
  %vm366 = vcmp.gt.f32.partialorder %v350, 0.0
  %vm367 = vcmp.gt.f32.partialorder %v351, 0.0
  %vm368 = vcmp.gt.f32.partialorder %v352, 0.0
  %vm369 = vcmp.gt.f32.partialorder %v353, 0.0
  %vm370 = vcmp.gt.f32.partialorder %v354, 0.0
  %vm371 = vcmp.gt.f32.partialorder %v355, 0.0
  %vm372 = vcmp.gt.f32.partialorder %v356, 0.0
  %vm373 = vcmp.gt.f32.partialorder %v357, 0.0
  %vm374 = vcmp.gt.f32.partialorder %v358, 0.0
  %v375 = vmul.f32 %v343, 0.01
  %v376 = vmul.f32 %v344, 0.01
  %v377 = vmul.f32 %v345, 0.01
  %v378 = vmul.f32 %v346, 0.01
  %v379 = vmul.f32 %v347, 0.01
  %v380 = vmul.f32 %v348, 0.01
  %v381 = vmul.f32 %v349, 0.01
  %v382 = vmul.f32 %v350, 0.01
  %v383 = vmul.f32 %v351, 0.01
  %v384 = vmul.f32 %v352, 0.01
  %v385 = vmul.f32 %v353, 0.01
  %v386 = vmul.f32 %v354, 0.01
  %v387 = vmul.f32 %v355, 0.01
  %v388 = vmul.f32 %v356, 0.01
  %v389 = vmul.f32 %v357, 0.01
  %v390 = vmul.f32 %v358, 0.01
  %v391 = vsel %vm359, %v343, %v375
  %v392 = vsel %vm360, %v344, %v376
  %v393 = vsel %vm361, %v345, %v377
  %v394 = vsel %vm362, %v346, %v378
  %v395 = vsel %vm363, %v347, %v379
  %v396 = vsel %vm364, %v348, %v380
  %v397 = vsel %vm365, %v349, %v381
  %v398 = vsel %vm366, %v350, %v382
  %v399 = vsel %vm367, %v351, %v383
  %v400 = vsel %vm368, %v352, %v384
  %v401 = vsel %vm369, %v353, %v385
  %v402 = vsel %vm370, %v354, %v386
  %v403 = vsel %vm371, %v355, %v387
  %v404 = vsel %vm372, %v356, %v388
  %v405 = vsel %vm373, %v357, %v389
  %v406 = vsel %vm374, %v358, %v390
  %v407 = vld [vmem:[%s4] sm:$0xff]
  %v408 = vld [vmem:[%s4 + $0x8] sm:$0xff]
  %v409 = vld [vmem:[%s4 + $0x10] sm:$0xff]
  %v410 = vld [vmem:[%s4 + $0x18] sm:$0xff]
  %411 = vmatpush.msra.mxu0 %v406
  %412 = vmatpush.msra.mxu0 %v405
  %413 = vmatpush.msra.mxu0 %v404
  %414 = vmatpush.msra.mxu0 %v403
  %415 = vmatpush.msra.mxu0 %v402
  %416 = vmatpush.msra.mxu0 %v401
  %417 = vmatpush.msra.mxu0 %v400
  %418 = vmatpush.msra.mxu0 %v399
  %419 = vmatpush.msra.mxu0 %v398
  %420 = vmatpush.msra.mxu0 %v397
  %421 = vmatpush.msra.mxu0 %v396
  %422 = vmatpush.msra.mxu0 %v395
  %423 = vmatpush.msra.mxu0 %v394
  %424 = vmatpush.msra.mxu0 %v393
  %425 = vmatpush.msra.mxu0 %v392
  %426 = vmatpush.msra.mxu0 %v391
  %427 = vmatmul.f32.gmra.mxu0 %v407
  %v428 = vpop.f32.mrf.mxu0
  %v429 = vadd.f32 0.0, %v428
  %430 = vmatmul.f32.gmra.mxu0 %v408
  %v431 = vpop.f32.mrf.mxu0
  %v432 = vadd.f32 0.0, %v431
  %433 = vmatmul.f32.gmra.mxu0 %v409
  %v434 = vpop.f32.mrf.mxu0
  %v435 = vadd.f32 0.0, %v434
  %436 = vmatmul.f32.gmra.mxu0 %v410
  %v437 = vpop.f32.mrf.mxu0
  %v438 = vadd.f32 0.0, %v437
  %439 = vdwg.mxu0
  %v440 = vld [vmem:[%s5] sm:$0xff]
  %v441 = vld [vmem:[%s5 + $0x8] sm:$0xff]
  %v442 = vld [vmem:[%s5 + $0x10] sm:$0xff]
  %v443 = vld [vmem:[%s5 + $0x18] sm:$0xff]
  %s444 = scalar_lea.vmem %s4, 32
  %v445 = vld [vmem:[%s444] sm:$0xff]
  %v446 = vld [vmem:[%s444 + $0x8] sm:$0xff]
  %v447 = vld [vmem:[%s444 + $0x10] sm:$0xff]
  %v448 = vld [vmem:[%s444 + $0x18] sm:$0xff]
  %449 = vmatpush.msra.mxu0 %v406
  %450 = vmatpush.msra.mxu0 %v405
  %451 = vmatpush.msra.mxu0 %v404
  %452 = vmatpush.msra.mxu0 %v403
  %453 = vmatpush.msra.mxu0 %v402
  %454 = vmatpush.msra.mxu0 %v401
  %455 = vmatpush.msra.mxu0 %v400
  %456 = vmatpush.msra.mxu0 %v399
  %457 = vmatpush.msra.mxu0 %v398
  %458 = vmatpush.msra.mxu0 %v397
  %459 = vmatpush.msra.mxu0 %v396
  %460 = vmatpush.msra.mxu0 %v395
  %461 = vmatpush.msra.mxu0 %v394
  %462 = vmatpush.msra.mxu0 %v393
  %463 = vmatpush.msra.mxu0 %v392
  %464 = vmatpush.msra.mxu0 %v391
  %465 = vmatmul.f32.gmra.mxu0 %v445
  %v466 = vpop.f32.mrf.mxu0
  %v467 = vadd.f32 0.0, %v466
  %468 = vmatmul.f32.gmra.mxu0 %v446
  %v469 = vpop.f32.mrf.mxu0
  %v470 = vadd.f32 0.0, %v469
  %471 = vmatmul.f32.gmra.mxu0 %v447
  %v472 = vpop.f32.mrf.mxu0
  %v473 = vadd.f32 0.0, %v472
  %474 = vmatmul.f32.gmra.mxu0 %v448
  %v475 = vpop.f32.mrf.mxu0
  %v476 = vadd.f32 0.0, %v475
  %477 = vdwg.mxu0
  %s478 = scalar_lea.vmem %s5, 32
  %v479 = vld [vmem:[%s478] sm:$0xff]
  %v480 = vld [vmem:[%s478 + $0x8] sm:$0xff]
  %v481 = vld [vmem:[%s478 + $0x10] sm:$0xff]
  %v482 = vld [vmem:[%s478 + $0x18] sm:$0xff]
  %v484 = vsel %vm198, %v467, 0
  %v487 = vsel %vm198, %v470, 0
  %v490 = vsel %vm198, %v473, 0
  %v493 = vsel %vm198, %v476, 0
  %495 = vmatpush.msra.mxu0 0.0
  %496 = vmatpush.msra.mxu0 0.0
  %497 = vmatpush.msra.mxu0 0.0
  %498 = vmatpush.msra.mxu0 0.0
  %499 = vmatpush.msra.mxu0 0.0
  %500 = vmatpush.msra.mxu0 0.0
  %501 = vmatpush.msra.mxu0 0.0
  %502 = vmatpush.msra.mxu0 0.0
  %503 = vmatpush.msra.mxu0 0.0
  %504 = vmatpush.msra.mxu0 0.0
  %505 = vmatpush.msra.mxu0 0.0
  %506 = vmatpush.msra.mxu0 0.0
  %507 = vmatpush.msra.mxu0 %v482
  %508 = vmatpush.msra.mxu0 %v481
  %509 = vmatpush.msra.mxu0 %v480
  %510 = vmatpush.msra.mxu0 %v479
  %511 = vmatmul.f32.gmra.mxu0 %v484
  %v512 = vpop.f32.mrf.mxu0
  %v513 = vadd.f32 0.0, %v512
  %514 = vmatmul.f32.gmra.mxu0 %v487
  %v515 = vpop.f32.mrf.mxu0
  %v516 = vadd.f32 0.0, %v515
  %517 = vmatmul.f32.gmra.mxu0 %v490
  %v518 = vpop.f32.mrf.mxu0
  %v519 = vadd.f32 0.0, %v518
  %520 = vmatmul.f32.gmra.mxu0 %v493
  %v521 = vpop.f32.mrf.mxu0
  %v522 = vadd.f32 0.0, %v521
  %523 = vdwg.mxu0
  %v525 = vsel %vm198, %v429, 0
  %v528 = vsel %vm198, %v432, 0
  %v531 = vsel %vm198, %v435, 0
  %v534 = vsel %vm198, %v438, 0
  %536 = vmatpush.msra.mxu0 0.0
  %537 = vmatpush.msra.mxu0 0.0
  %538 = vmatpush.msra.mxu0 0.0
  %539 = vmatpush.msra.mxu0 0.0
  %540 = vmatpush.msra.mxu0 0.0
  %541 = vmatpush.msra.mxu0 0.0
  %542 = vmatpush.msra.mxu0 0.0
  %543 = vmatpush.msra.mxu0 0.0
  %544 = vmatpush.msra.mxu0 0.0
  %545 = vmatpush.msra.mxu0 0.0
  %546 = vmatpush.msra.mxu0 0.0
  %547 = vmatpush.msra.mxu0 0.0
  %548 = vmatpush.msra.mxu0 %v443
  %549 = vmatpush.msra.mxu0 %v442
  %550 = vmatpush.msra.mxu0 %v441
  %551 = vmatpush.msra.mxu0 %v440
  %552 = vmatmul.f32.gmra.mxu0 %v525
  %v553 = vpop.f32.mrf.mxu0
  %v554 = vadd.f32 %v513, %v553
  %555 = vmatmul.f32.gmra.mxu0 %v528
  %v556 = vpop.f32.mrf.mxu0
  %v557 = vadd.f32 %v516, %v556
  %558 = vmatmul.f32.gmra.mxu0 %v531
  %v559 = vpop.f32.mrf.mxu0
  %v560 = vadd.f32 %v519, %v559
  %561 = vmatmul.f32.gmra.mxu0 %v534
  %v562 = vpop.f32.mrf.mxu0
  %v563 = vadd.f32 %v522, %v562
  %564 = vdwg.mxu0
  %s565 = scalar_lea.vmem %s4, 64
  %v566 = vld [vmem:[%s565] sm:$0xff]
  %v567 = vld [vmem:[%s565 + $0x8] sm:$0xff]
  %v568 = vld [vmem:[%s565 + $0x10] sm:$0xff]
  %v569 = vld [vmem:[%s565 + $0x18] sm:$0xff]
  %570 = vmatpush.msra.mxu0 %v406
  %571 = vmatpush.msra.mxu0 %v405
  %572 = vmatpush.msra.mxu0 %v404
  %573 = vmatpush.msra.mxu0 %v403
  %574 = vmatpush.msra.mxu0 %v402
  %575 = vmatpush.msra.mxu0 %v401
  %576 = vmatpush.msra.mxu0 %v400
  %577 = vmatpush.msra.mxu0 %v399
  %578 = vmatpush.msra.mxu0 %v398
  %579 = vmatpush.msra.mxu0 %v397
  %580 = vmatpush.msra.mxu0 %v396
  %581 = vmatpush.msra.mxu0 %v395
  %582 = vmatpush.msra.mxu0 %v394
  %583 = vmatpush.msra.mxu0 %v393
  %584 = vmatpush.msra.mxu0 %v392
  %585 = vmatpush.msra.mxu0 %v391
  %586 = vmatmul.f32.gmra.mxu0 %v566
  %v587 = vpop.f32.mrf.mxu0
  %v588 = vadd.f32 0.0, %v587
  %589 = vmatmul.f32.gmra.mxu0 %v567
  %v590 = vpop.f32.mrf.mxu0
  %v591 = vadd.f32 0.0, %v590
  %592 = vmatmul.f32.gmra.mxu0 %v568
  %v593 = vpop.f32.mrf.mxu0
  %v594 = vadd.f32 0.0, %v593
  %595 = vmatmul.f32.gmra.mxu0 %v569
  %v596 = vpop.f32.mrf.mxu0
  %v597 = vadd.f32 0.0, %v596
  %598 = vdwg.mxu0
  %s599 = scalar_lea.vmem %s5, 64
  %v600 = vld [vmem:[%s599] sm:$0xff]
  %v601 = vld [vmem:[%s599 + $0x8] sm:$0xff]
  %v602 = vld [vmem:[%s599 + $0x10] sm:$0xff]
  %v603 = vld [vmem:[%s599 + $0x18] sm:$0xff]
  %v605 = vsel %vm198, %v588, 0
  %v608 = vsel %vm198, %v591, 0
  %v611 = vsel %vm198, %v594, 0
  %v614 = vsel %vm198, %v597, 0
  %616 = vmatpush.msra.mxu0 0.0
  %617 = vmatpush.msra.mxu0 0.0
  %618 = vmatpush.msra.mxu0 0.0
  %619 = vmatpush.msra.mxu0 0.0
  %620 = vmatpush.msra.mxu0 0.0
  %621 = vmatpush.msra.mxu0 0.0
  %622 = vmatpush.msra.mxu0 0.0
  %623 = vmatpush.msra.mxu0 0.0
  %624 = vmatpush.msra.mxu0 0.0
  %625 = vmatpush.msra.mxu0 0.0
  %626 = vmatpush.msra.mxu0 0.0
  %627 = vmatpush.msra.mxu0 0.0
  %628 = vmatpush.msra.mxu0 %v603
  %629 = vmatpush.msra.mxu0 %v602
  %630 = vmatpush.msra.mxu0 %v601
  %631 = vmatpush.msra.mxu0 %v600
  %632 = vmatmul.f32.gmra.mxu0 %v605
  %v633 = vpop.f32.mrf.mxu0
  %v634 = vadd.f32 0.0, %v633
  %635 = vmatmul.f32.gmra.mxu0 %v608
  %v636 = vpop.f32.mrf.mxu0
  %v637 = vadd.f32 0.0, %v636
  %638 = vmatmul.f32.gmra.mxu0 %v611
  %v639 = vpop.f32.mrf.mxu0
  %v640 = vadd.f32 0.0, %v639
  %641 = vmatmul.f32.gmra.mxu0 %v614
  %v642 = vpop.f32.mrf.mxu0
  %v643 = vadd.f32 0.0, %v642
  %644 = vdwg.mxu0
  %v645 = vadd.f32 %v554, %v634
  %v646 = vadd.f32 %v557, %v637
  %v647 = vadd.f32 %v560, %v640
  %v648 = vadd.f32 %v563, %v643
  %s649 = scalar_lea.vmem %s4, 96
  %v650 = vld [vmem:[%s649] sm:$0xff]
  %v651 = vld [vmem:[%s649 + $0x8] sm:$0xff]
  %v652 = vld [vmem:[%s649 + $0x10] sm:$0xff]
  %v653 = vld [vmem:[%s649 + $0x18] sm:$0xff]
  %654 = vmatpush.msra.mxu0 %v406
  %655 = vmatpush.msra.mxu0 %v405
  %656 = vmatpush.msra.mxu0 %v404
  %657 = vmatpush.msra.mxu0 %v403
  %658 = vmatpush.msra.mxu0 %v402
  %659 = vmatpush.msra.mxu0 %v401
  %660 = vmatpush.msra.mxu0 %v400
  %661 = vmatpush.msra.mxu0 %v399
  %662 = vmatpush.msra.mxu0 %v398
  %663 = vmatpush.msra.mxu0 %v397
  %664 = vmatpush.msra.mxu0 %v396
  %665 = vmatpush.msra.mxu0 %v395
  %666 = vmatpush.msra.mxu0 %v394
  %667 = vmatpush.msra.mxu0 %v393
  %668 = vmatpush.msra.mxu0 %v392
  %669 = vmatpush.msra.mxu0 %v391
  %670 = vmatmul.f32.gmra.mxu0 %v650
  %v671 = vpop.f32.mrf.mxu0
  %v672 = vadd.f32 0.0, %v671
  %673 = vmatmul.f32.gmra.mxu0 %v651
  %v674 = vpop.f32.mrf.mxu0
  %v675 = vadd.f32 0.0, %v674
  %676 = vmatmul.f32.gmra.mxu0 %v652
  %v677 = vpop.f32.mrf.mxu0
  %v678 = vadd.f32 0.0, %v677
  %679 = vmatmul.f32.gmra.mxu0 %v653
  %v680 = vpop.f32.mrf.mxu0
  %v681 = vadd.f32 0.0, %v680
  %682 = vdwg.mxu0
  %s683 = scalar_lea.vmem %s5, 96
  %v684 = vld [vmem:[%s683] sm:$0xff]
  %v685 = vld [vmem:[%s683 + $0x8] sm:$0xff]
  %v686 = vld [vmem:[%s683 + $0x10] sm:$0xff]
  %v687 = vld [vmem:[%s683 + $0x18] sm:$0xff]
  %v689 = vsel %vm198, %v672, 0
  %v692 = vsel %vm198, %v675, 0
  %v695 = vsel %vm198, %v678, 0
  %v698 = vsel %vm198, %v681, 0
  %700 = vmatpush.msra.mxu0 0.0
  %701 = vmatpush.msra.mxu0 0.0
  %702 = vmatpush.msra.mxu0 0.0
  %703 = vmatpush.msra.mxu0 0.0
  %704 = vmatpush.msra.mxu0 0.0
  %705 = vmatpush.msra.mxu0 0.0
  %706 = vmatpush.msra.mxu0 0.0
  %707 = vmatpush.msra.mxu0 0.0
  %708 = vmatpush.msra.mxu0 0.0
  %709 = vmatpush.msra.mxu0 0.0
  %710 = vmatpush.msra.mxu0 0.0
  %711 = vmatpush.msra.mxu0 0.0
  %712 = vmatpush.msra.mxu0 %v687
  %713 = vmatpush.msra.mxu0 %v686
  %714 = vmatpush.msra.mxu0 %v685
  %715 = vmatpush.msra.mxu0 %v684
  %716 = vmatmul.f32.gmra.mxu0 %v689
  %v717 = vpop.f32.mrf.mxu0
  %v718 = vadd.f32 0.0, %v717
  %719 = vmatmul.f32.gmra.mxu0 %v692
  %v720 = vpop.f32.mrf.mxu0
  %v721 = vadd.f32 0.0, %v720
  %722 = vmatmul.f32.gmra.mxu0 %v695
  %v723 = vpop.f32.mrf.mxu0
  %v724 = vadd.f32 0.0, %v723
  %725 = vmatmul.f32.gmra.mxu0 %v698
  %v726 = vpop.f32.mrf.mxu0
  %v727 = vadd.f32 0.0, %v726
  %728 = vdwg.mxu0
  %v729 = vadd.f32 %v645, %v718
  %v730 = vadd.f32 %v646, %v721
  %v731 = vadd.f32 %v647, %v724
  %v732 = vadd.f32 %v648, %v727
  %s733 = scalar_lea.vmem %s4, 128
  %v734 = vld [vmem:[%s733] sm:$0xff]
  %v735 = vld [vmem:[%s733 + $0x8] sm:$0xff]
  %v736 = vld [vmem:[%s733 + $0x10] sm:$0xff]
  %v737 = vld [vmem:[%s733 + $0x18] sm:$0xff]
  %738 = vmatpush.msra.mxu0 %v406
  %739 = vmatpush.msra.mxu0 %v405
  %740 = vmatpush.msra.mxu0 %v404
  %741 = vmatpush.msra.mxu0 %v403
  %742 = vmatpush.msra.mxu0 %v402
  %743 = vmatpush.msra.mxu0 %v401
  %744 = vmatpush.msra.mxu0 %v400
  %745 = vmatpush.msra.mxu0 %v399
  %746 = vmatpush.msra.mxu0 %v398
  %747 = vmatpush.msra.mxu0 %v397
  %748 = vmatpush.msra.mxu0 %v396
  %749 = vmatpush.msra.mxu0 %v395
  %750 = vmatpush.msra.mxu0 %v394
  %751 = vmatpush.msra.mxu0 %v393
  %752 = vmatpush.msra.mxu0 %v392
  %753 = vmatpush.msra.mxu0 %v391
  %754 = vmatmul.f32.gmra.mxu0 %v734
  %v755 = vpop.f32.mrf.mxu0
  %v756 = vadd.f32 0.0, %v755
  %757 = vmatmul.f32.gmra.mxu0 %v735
  %v758 = vpop.f32.mrf.mxu0
  %v759 = vadd.f32 0.0, %v758
  %760 = vmatmul.f32.gmra.mxu0 %v736
  %v761 = vpop.f32.mrf.mxu0
  %v762 = vadd.f32 0.0, %v761
  %763 = vmatmul.f32.gmra.mxu0 %v737
  %v764 = vpop.f32.mrf.mxu0
  %v765 = vadd.f32 0.0, %v764
  %766 = vdwg.mxu0
  %s767 = scalar_lea.vmem %s5, 128
  %v768 = vld [vmem:[%s767] sm:$0xff]
  %v769 = vld [vmem:[%s767 + $0x8] sm:$0xff]
  %v770 = vld [vmem:[%s767 + $0x10] sm:$0xff]
  %v771 = vld [vmem:[%s767 + $0x18] sm:$0xff]
  %v773 = vsel %vm198, %v756, 0
  %v776 = vsel %vm198, %v759, 0
  %v779 = vsel %vm198, %v762, 0
  %v782 = vsel %vm198, %v765, 0
  %784 = vmatpush.msra.mxu0 0.0
  %785 = vmatpush.msra.mxu0 0.0
  %786 = vmatpush.msra.mxu0 0.0
  %787 = vmatpush.msra.mxu0 0.0
  %788 = vmatpush.msra.mxu0 0.0
  %789 = vmatpush.msra.mxu0 0.0
  %790 = vmatpush.msra.mxu0 0.0
  %791 = vmatpush.msra.mxu0 0.0
  %792 = vmatpush.msra.mxu0 0.0
  %793 = vmatpush.msra.mxu0 0.0
  %794 = vmatpush.msra.mxu0 0.0
  %795 = vmatpush.msra.mxu0 0.0
  %796 = vmatpush.msra.mxu0 %v771
  %797 = vmatpush.msra.mxu0 %v770
  %798 = vmatpush.msra.mxu0 %v769
  %799 = vmatpush.msra.mxu0 %v768
  %800 = vmatmul.f32.gmra.mxu0 %v773
  %v801 = vpop.f32.mrf.mxu0
  %v802 = vadd.f32 0.0, %v801
  %803 = vmatmul.f32.gmra.mxu0 %v776
  %v804 = vpop.f32.mrf.mxu0
  %v805 = vadd.f32 0.0, %v804
  %806 = vmatmul.f32.gmra.mxu0 %v779
  %v807 = vpop.f32.mrf.mxu0
  %v808 = vadd.f32 0.0, %v807
  %809 = vmatmul.f32.gmra.mxu0 %v782
  %v810 = vpop.f32.mrf.mxu0
  %v811 = vadd.f32 0.0, %v810
  %812 = vdwg.mxu0
  %v813 = vadd.f32 %v729, %v802
  %v814 = vadd.f32 %v730, %v805
  %v815 = vadd.f32 %v731, %v808
  %v816 = vadd.f32 %v732, %v811
  %s817 = scalar_lea.vmem %s4, 160
  %v818 = vld [vmem:[%s817] sm:$0xff]
  %v819 = vld [vmem:[%s817 + $0x8] sm:$0xff]
  %v820 = vld [vmem:[%s817 + $0x10] sm:$0xff]
  %v821 = vld [vmem:[%s817 + $0x18] sm:$0xff]
  %822 = vmatpush.msra.mxu0 %v406
  %823 = vmatpush.msra.mxu0 %v405
  %824 = vmatpush.msra.mxu0 %v404
  %825 = vmatpush.msra.mxu0 %v403
  %826 = vmatpush.msra.mxu0 %v402
  %827 = vmatpush.msra.mxu0 %v401
  %828 = vmatpush.msra.mxu0 %v400
  %829 = vmatpush.msra.mxu0 %v399
  %830 = vmatpush.msra.mxu0 %v398
  %831 = vmatpush.msra.mxu0 %v397
  %832 = vmatpush.msra.mxu0 %v396
  %833 = vmatpush.msra.mxu0 %v395
  %834 = vmatpush.msra.mxu0 %v394
  %835 = vmatpush.msra.mxu0 %v393
  %836 = vmatpush.msra.mxu0 %v392
  %837 = vmatpush.msra.mxu0 %v391
  %838 = vmatmul.f32.gmra.mxu0 %v818
  %v839 = vpop.f32.mrf.mxu0
  %v840 = vadd.f32 0.0, %v839
  %841 = vmatmul.f32.gmra.mxu0 %v819
  %v842 = vpop.f32.mrf.mxu0
  %v843 = vadd.f32 0.0, %v842
  %844 = vmatmul.f32.gmra.mxu0 %v820
  %v845 = vpop.f32.mrf.mxu0
  %v846 = vadd.f32 0.0, %v845
  %847 = vmatmul.f32.gmra.mxu0 %v821
  %v848 = vpop.f32.mrf.mxu0
  %v849 = vadd.f32 0.0, %v848
  %850 = vdwg.mxu0
  %s851 = scalar_lea.vmem %s5, 160
  %v852 = vld [vmem:[%s851] sm:$0xff]
  %v853 = vld [vmem:[%s851 + $0x8] sm:$0xff]
  %v854 = vld [vmem:[%s851 + $0x10] sm:$0xff]
  %v855 = vld [vmem:[%s851 + $0x18] sm:$0xff]
  %v857 = vsel %vm198, %v840, 0
  %v860 = vsel %vm198, %v843, 0
  %v863 = vsel %vm198, %v846, 0
  %v866 = vsel %vm198, %v849, 0
  %868 = vmatpush.msra.mxu0 0.0
  %869 = vmatpush.msra.mxu0 0.0
  %870 = vmatpush.msra.mxu0 0.0
  %871 = vmatpush.msra.mxu0 0.0
  %872 = vmatpush.msra.mxu0 0.0
  %873 = vmatpush.msra.mxu0 0.0
  %874 = vmatpush.msra.mxu0 0.0
  %875 = vmatpush.msra.mxu0 0.0
  %876 = vmatpush.msra.mxu0 0.0
  %877 = vmatpush.msra.mxu0 0.0
  %878 = vmatpush.msra.mxu0 0.0
  %879 = vmatpush.msra.mxu0 0.0
  %880 = vmatpush.msra.mxu0 %v855
  %881 = vmatpush.msra.mxu0 %v854
  %882 = vmatpush.msra.mxu0 %v853
  %883 = vmatpush.msra.mxu0 %v852
  %884 = vmatmul.f32.gmra.mxu0 %v857
  %v885 = vpop.f32.mrf.mxu0
  %v886 = vadd.f32 0.0, %v885
  %887 = vmatmul.f32.gmra.mxu0 %v860
  %v888 = vpop.f32.mrf.mxu0
  %v889 = vadd.f32 0.0, %v888
  %890 = vmatmul.f32.gmra.mxu0 %v863
  %v891 = vpop.f32.mrf.mxu0
  %v892 = vadd.f32 0.0, %v891
  %893 = vmatmul.f32.gmra.mxu0 %v866
  %v894 = vpop.f32.mrf.mxu0
  %v895 = vadd.f32 0.0, %v894
  %896 = vdwg.mxu0
  %v897 = vadd.f32 %v813, %v886
  %v898 = vadd.f32 %v814, %v889
  %v899 = vadd.f32 %v815, %v892
  %v900 = vadd.f32 %v816, %v895
  %s901 = scalar_lea.vmem %s4, 192
  %v902 = vld [vmem:[%s901] sm:$0xff]
  %v903 = vld [vmem:[%s901 + $0x8] sm:$0xff]
  %v904 = vld [vmem:[%s901 + $0x10] sm:$0xff]
  %v905 = vld [vmem:[%s901 + $0x18] sm:$0xff]
  %906 = vmatpush.msra.mxu0 %v406
  %907 = vmatpush.msra.mxu0 %v405
  %908 = vmatpush.msra.mxu0 %v404
  %909 = vmatpush.msra.mxu0 %v403
  %910 = vmatpush.msra.mxu0 %v402
  %911 = vmatpush.msra.mxu0 %v401
  %912 = vmatpush.msra.mxu0 %v400
  %913 = vmatpush.msra.mxu0 %v399
  %914 = vmatpush.msra.mxu0 %v398
  %915 = vmatpush.msra.mxu0 %v397
  %916 = vmatpush.msra.mxu0 %v396
  %917 = vmatpush.msra.mxu0 %v395
  %918 = vmatpush.msra.mxu0 %v394
  %919 = vmatpush.msra.mxu0 %v393
  %920 = vmatpush.msra.mxu0 %v392
  %921 = vmatpush.msra.mxu0 %v391
  %922 = vmatmul.f32.gmra.mxu0 %v902
  %v923 = vpop.f32.mrf.mxu0
  %v924 = vadd.f32 0.0, %v923
  %925 = vmatmul.f32.gmra.mxu0 %v903
  %v926 = vpop.f32.mrf.mxu0
  %v927 = vadd.f32 0.0, %v926
  %928 = vmatmul.f32.gmra.mxu0 %v904
  %v929 = vpop.f32.mrf.mxu0
  %v930 = vadd.f32 0.0, %v929
  %931 = vmatmul.f32.gmra.mxu0 %v905
  %v932 = vpop.f32.mrf.mxu0
  %v933 = vadd.f32 0.0, %v932
  %934 = vdwg.mxu0
  %s935 = scalar_lea.vmem %s5, 192
  %v936 = vld [vmem:[%s935] sm:$0xff]
  %v937 = vld [vmem:[%s935 + $0x8] sm:$0xff]
  %v938 = vld [vmem:[%s935 + $0x10] sm:$0xff]
  %v939 = vld [vmem:[%s935 + $0x18] sm:$0xff]
  %v941 = vsel %vm198, %v924, 0
  %v944 = vsel %vm198, %v927, 0
  %v947 = vsel %vm198, %v930, 0
  %v950 = vsel %vm198, %v933, 0
  %952 = vmatpush.msra.mxu0 0.0
  %953 = vmatpush.msra.mxu0 0.0
  %954 = vmatpush.msra.mxu0 0.0
  %955 = vmatpush.msra.mxu0 0.0
  %956 = vmatpush.msra.mxu0 0.0
  %957 = vmatpush.msra.mxu0 0.0
  %958 = vmatpush.msra.mxu0 0.0
  %959 = vmatpush.msra.mxu0 0.0
  %960 = vmatpush.msra.mxu0 0.0
  %961 = vmatpush.msra.mxu0 0.0
  %962 = vmatpush.msra.mxu0 0.0
  %963 = vmatpush.msra.mxu0 0.0
  %964 = vmatpush.msra.mxu0 %v939
  %965 = vmatpush.msra.mxu0 %v938
  %966 = vmatpush.msra.mxu0 %v937
  %967 = vmatpush.msra.mxu0 %v936
  %968 = vmatmul.f32.gmra.mxu0 %v941
  %v969 = vpop.f32.mrf.mxu0
  %v970 = vadd.f32 0.0, %v969
  %971 = vmatmul.f32.gmra.mxu0 %v944
  %v972 = vpop.f32.mrf.mxu0
  %v973 = vadd.f32 0.0, %v972
  %974 = vmatmul.f32.gmra.mxu0 %v947
  %v975 = vpop.f32.mrf.mxu0
  %v976 = vadd.f32 0.0, %v975
  %977 = vmatmul.f32.gmra.mxu0 %v950
  %v978 = vpop.f32.mrf.mxu0
  %v979 = vadd.f32 0.0, %v978
  %980 = vdwg.mxu0
  %v981 = vadd.f32 %v897, %v970
  %v982 = vadd.f32 %v898, %v973
  %v983 = vadd.f32 %v899, %v976
  %v984 = vadd.f32 %v900, %v979
  %s985 = scalar_lea.vmem %s4, 224
  %v986 = vld [vmem:[%s985] sm:$0xff]
  %v987 = vld [vmem:[%s985 + $0x8] sm:$0xff]
  %v988 = vld [vmem:[%s985 + $0x10] sm:$0xff]
  %v989 = vld [vmem:[%s985 + $0x18] sm:$0xff]
  %990 = vmatpush.msra.mxu0 %v406
  %991 = vmatpush.msra.mxu0 %v405
  %992 = vmatpush.msra.mxu0 %v404
  %993 = vmatpush.msra.mxu0 %v403
  %994 = vmatpush.msra.mxu0 %v402
  %995 = vmatpush.msra.mxu0 %v401
  %996 = vmatpush.msra.mxu0 %v400
  %997 = vmatpush.msra.mxu0 %v399
  %998 = vmatpush.msra.mxu0 %v398
  %999 = vmatpush.msra.mxu0 %v397
  %1000 = vmatpush.msra.mxu0 %v396
  %1001 = vmatpush.msra.mxu0 %v395
  %1002 = vmatpush.msra.mxu0 %v394
  %1003 = vmatpush.msra.mxu0 %v393
  %1004 = vmatpush.msra.mxu0 %v392
  %1005 = vmatpush.msra.mxu0 %v391
  %1006 = vmatmul.f32.gmra.mxu0 %v986
  %v1007 = vpop.f32.mrf.mxu0
  %v1008 = vadd.f32 0.0, %v1007
  %1009 = vmatmul.f32.gmra.mxu0 %v987
  %v1010 = vpop.f32.mrf.mxu0
  %v1011 = vadd.f32 0.0, %v1010
  %1012 = vmatmul.f32.gmra.mxu0 %v988
  %v1013 = vpop.f32.mrf.mxu0
  %v1014 = vadd.f32 0.0, %v1013
  %1015 = vmatmul.f32.gmra.mxu0 %v989
  %v1016 = vpop.f32.mrf.mxu0
  %v1017 = vadd.f32 0.0, %v1016
  %1018 = vdwg.mxu0
  %s1019 = scalar_lea.vmem %s5, 224
  %v1020 = vld [vmem:[%s1019] sm:$0xff]
  %v1021 = vld [vmem:[%s1019 + $0x8] sm:$0xff]
  %v1022 = vld [vmem:[%s1019 + $0x10] sm:$0xff]
  %v1023 = vld [vmem:[%s1019 + $0x18] sm:$0xff]
  %v1025 = vsel %vm198, %v1008, 0
  %v1028 = vsel %vm198, %v1011, 0
  %v1031 = vsel %vm198, %v1014, 0
  %v1034 = vsel %vm198, %v1017, 0
  %1036 = vmatpush.msra.mxu0 0.0
  %1037 = vmatpush.msra.mxu0 0.0
  %1038 = vmatpush.msra.mxu0 0.0
  %1039 = vmatpush.msra.mxu0 0.0
  %1040 = vmatpush.msra.mxu0 0.0
  %1041 = vmatpush.msra.mxu0 0.0
  %1042 = vmatpush.msra.mxu0 0.0
  %1043 = vmatpush.msra.mxu0 0.0
  %1044 = vmatpush.msra.mxu0 0.0
  %1045 = vmatpush.msra.mxu0 0.0
  %1046 = vmatpush.msra.mxu0 0.0
  %1047 = vmatpush.msra.mxu0 0.0
  %1048 = vmatpush.msra.mxu0 %v1023
  %1049 = vmatpush.msra.mxu0 %v1022
  %1050 = vmatpush.msra.mxu0 %v1021
  %1051 = vmatpush.msra.mxu0 %v1020
  %1052 = vmatmul.f32.gmra.mxu0 %v1025
  %v1053 = vpop.f32.mrf.mxu0
  %v1054 = vadd.f32 0.0, %v1053
  %1055 = vmatmul.f32.gmra.mxu0 %v1028
  %v1056 = vpop.f32.mrf.mxu0
  %v1057 = vadd.f32 0.0, %v1056
  %1058 = vmatmul.f32.gmra.mxu0 %v1031
  %v1059 = vpop.f32.mrf.mxu0
  %v1060 = vadd.f32 0.0, %v1059
  %1061 = vmatmul.f32.gmra.mxu0 %v1034
  %v1062 = vpop.f32.mrf.mxu0
  %v1063 = vadd.f32 0.0, %v1062
  %1064 = vdwg.mxu0
  %v1065 = vadd.f32 %v981, %v1054
  %v1066 = vadd.f32 %v982, %v1057
  %v1067 = vadd.f32 %v983, %v1060
  %v1068 = vadd.f32 %v984, %v1063
  %s1069 = scalar_lea.vmem %s4, 256
  %v1070 = vld [vmem:[%s1069] sm:$0xff]
  %v1071 = vld [vmem:[%s1069 + $0x8] sm:$0xff]
  %v1072 = vld [vmem:[%s1069 + $0x10] sm:$0xff]
  %v1073 = vld [vmem:[%s1069 + $0x18] sm:$0xff]
  %1074 = vmatpush.msra.mxu0 %v406
  %1075 = vmatpush.msra.mxu0 %v405
  %1076 = vmatpush.msra.mxu0 %v404
  %1077 = vmatpush.msra.mxu0 %v403
  %1078 = vmatpush.msra.mxu0 %v402
  %1079 = vmatpush.msra.mxu0 %v401
  %1080 = vmatpush.msra.mxu0 %v400
  %1081 = vmatpush.msra.mxu0 %v399
  %1082 = vmatpush.msra.mxu0 %v398
  %1083 = vmatpush.msra.mxu0 %v397
  %1084 = vmatpush.msra.mxu0 %v396
  %1085 = vmatpush.msra.mxu0 %v395
  %1086 = vmatpush.msra.mxu0 %v394
  %1087 = vmatpush.msra.mxu0 %v393
  %1088 = vmatpush.msra.mxu0 %v392
  %1089 = vmatpush.msra.mxu0 %v391
  %1090 = vmatmul.f32.gmra.mxu0 %v1070
  %v1091 = vpop.f32.mrf.mxu0
  %v1092 = vadd.f32 0.0, %v1091
  %1093 = vmatmul.f32.gmra.mxu0 %v1071
  %v1094 = vpop.f32.mrf.mxu0
  %v1095 = vadd.f32 0.0, %v1094
  %1096 = vmatmul.f32.gmra.mxu0 %v1072
  %v1097 = vpop.f32.mrf.mxu0
  %v1098 = vadd.f32 0.0, %v1097
  %1099 = vmatmul.f32.gmra.mxu0 %v1073
  %v1100 = vpop.f32.mrf.mxu0
  %v1101 = vadd.f32 0.0, %v1100
  %1102 = vdwg.mxu0
  %s1103 = scalar_lea.vmem %s5, 256
  %v1104 = vld [vmem:[%s1103] sm:$0xff]
  %v1105 = vld [vmem:[%s1103 + $0x8] sm:$0xff]
  %v1106 = vld [vmem:[%s1103 + $0x10] sm:$0xff]
  %v1107 = vld [vmem:[%s1103 + $0x18] sm:$0xff]
  %v1109 = vsel %vm198, %v1092, 0
  %v1112 = vsel %vm198, %v1095, 0
  %v1115 = vsel %vm198, %v1098, 0
  %v1118 = vsel %vm198, %v1101, 0
  %1120 = vmatpush.msra.mxu0 0.0
  %1121 = vmatpush.msra.mxu0 0.0
  %1122 = vmatpush.msra.mxu0 0.0
  %1123 = vmatpush.msra.mxu0 0.0
  %1124 = vmatpush.msra.mxu0 0.0
  %1125 = vmatpush.msra.mxu0 0.0
  %1126 = vmatpush.msra.mxu0 0.0
  %1127 = vmatpush.msra.mxu0 0.0
  %1128 = vmatpush.msra.mxu0 0.0
  %1129 = vmatpush.msra.mxu0 0.0
  %1130 = vmatpush.msra.mxu0 0.0
  %1131 = vmatpush.msra.mxu0 0.0
  %1132 = vmatpush.msra.mxu0 %v1107
  %1133 = vmatpush.msra.mxu0 %v1106
  %1134 = vmatpush.msra.mxu0 %v1105
  %1135 = vmatpush.msra.mxu0 %v1104
  %1136 = vmatmul.f32.gmra.mxu0 %v1109
  %v1137 = vpop.f32.mrf.mxu0
  %v1138 = vadd.f32 0.0, %v1137
  %1139 = vmatmul.f32.gmra.mxu0 %v1112
  %v1140 = vpop.f32.mrf.mxu0
  %v1141 = vadd.f32 0.0, %v1140
  %1142 = vmatmul.f32.gmra.mxu0 %v1115
  %v1143 = vpop.f32.mrf.mxu0
  %v1144 = vadd.f32 0.0, %v1143
  %1145 = vmatmul.f32.gmra.mxu0 %v1118
  %v1146 = vpop.f32.mrf.mxu0
  %v1147 = vadd.f32 0.0, %v1146
  %1148 = vdwg.mxu0
  %v1149 = vadd.f32 %v1065, %v1138
  %v1150 = vadd.f32 %v1066, %v1141
  %v1151 = vadd.f32 %v1067, %v1144
  %v1152 = vadd.f32 %v1068, %v1147
  %vm1153 = vcmask 523264
  %v1154 = vsel %vm1153, %v1149, 0.0
  %v1155 = vsel %vm1153, %v1150, 0.0
  %v1156 = vadd.f32 %v1154, %v1155
  %v1157 = vsel %vm1153, %v1151, 0.0
  %v1158 = vadd.f32 %v1156, %v1157
  %v1159 = vsel %vm1153, %v1152, 0.0
  %v1160 = vadd.f32 %v1158, %v1159
  %v1161 = vrot.slane %v1160, 4
  %v1162 = vadd.f32 %v1160, %v1161
  %v1163 = vrot.slane %v1162, 2
  %v1164 = vadd.f32 %v1162, %v1163
  %v1165 = vrot.slane %v1164, 1
  %v1166 = vadd.f32 %v1164, %v1165
  %v1167 = vmul.f32 %v1166, 0.03125
  %v1168 = vsub.f32 %v1149, %v1167
  %v1169 = vsub.f32 %v1150, %v1167
  %v1170 = vsub.f32 %v1151, %v1167
  %v1171 = vsub.f32 %v1152, %v1167
  %v1172 = vmul.f32 %v1168, %v1168
  %v1173 = vmul.f32 %v1169, %v1169
  %v1174 = vmul.f32 %v1170, %v1170
  %v1175 = vmul.f32 %v1171, %v1171
  %v1176 = vsel %vm1153, %v1172, 0.0
  %v1177 = vsel %vm1153, %v1173, 0.0
  %v1178 = vadd.f32 %v1176, %v1177
  %v1179 = vsel %vm1153, %v1174, 0.0
  %v1180 = vadd.f32 %v1178, %v1179
  %v1181 = vsel %vm1153, %v1175, 0.0
  %v1182 = vadd.f32 %v1180, %v1181
  %v1183 = vrot.slane %v1182, 4
  %v1184 = vadd.f32 %v1182, %v1183
  %v1185 = vrot.slane %v1184, 2
  %v1186 = vadd.f32 %v1184, %v1185
  %v1187 = vrot.slane %v1186, 1
  %v1188 = vadd.f32 %v1186, %v1187
  %v1189 = vmul.f32 %v1188, 0.03125
  %v1190 = vld [vmem:[%s6] sm:$0x1]
  %v1191 = vadd.f32 %v1189, 1e-05
  %v1192 = vrsqrt.pop %v1191
  %v1193 = vmul.f32 %v1192, %v1191
  %v1194 = vmul.f32 %v1193, %v1192
  %v1195 = vmul.f32 0.5, %v1194
  %v1196 = vsub.f32 1.5, %v1195
  %v1197 = vmul.f32 %v1192, %v1196
  %vm1198 = vweird.f32 %v1191
  %vm1199 = vweird.f32 %v1192
  %vm1200 = vmor %vm1198, %vm1199
  %v1201 = vsel %vm1200, %v1192, %v1197
  %v1202 = vmul.f32 %v1190, %v1201
  %v1204 = vperm.slane %v1202, 0
  %v1206 = vmul.f32 %v1168, %v1204
  %v1207 = vmul.f32 %v1169, %v1204
  %v1208 = vmul.f32 %v1170, %v1204
  %v1209 = vmul.f32 %v1171, %v1204
  %v1210 = vld [vmem:[%s7] sm:$0x1]
  %v1212 = vperm.slane %v1210, 0
  %v1214 = vadd.f32 %v1206, %v1212
  %v1215 = vadd.f32 %v1207, %v1212
  %v1216 = vadd.f32 %v1208, %v1212
  %v1217 = vadd.f32 %v1209, %v1212
  %vm1218 = vcmp.gt.f32.partialorder %v1214, 0.0
  %vm1219 = vcmp.gt.f32.partialorder %v1215, 0.0
  %vm1220 = vcmp.gt.f32.partialorder %v1216, 0.0
  %vm1221 = vcmp.gt.f32.partialorder %v1217, 0.0
  %v1222 = vmul.f32 %v1214, 0.01
  %v1223 = vmul.f32 %v1215, 0.01
  %v1224 = vmul.f32 %v1216, 0.01
  %v1225 = vmul.f32 %v1217, 0.01
  %v1226 = vsel %vm1218, %v1214, %v1222
  %v1227 = vsel %vm1219, %v1215, %v1223
  %v1228 = vsel %vm1220, %v1216, %v1224
  %v1229 = vsel %vm1221, %v1217, %v1225
  %v1230 = vld [vmem:[%s8] sm:$0xff]
  %v1232 = vsel %vm198, %v1230, 0
  %1234 = vmatpush.msra.mxu0 0.0
  %1235 = vmatpush.msra.mxu0 0.0
  %1236 = vmatpush.msra.mxu0 0.0
  %1237 = vmatpush.msra.mxu0 0.0
  %1238 = vmatpush.msra.mxu0 0.0
  %1239 = vmatpush.msra.mxu0 0.0
  %1240 = vmatpush.msra.mxu0 0.0
  %1241 = vmatpush.msra.mxu0 0.0
  %1242 = vmatpush.msra.mxu0 0.0
  %1243 = vmatpush.msra.mxu0 0.0
  %1244 = vmatpush.msra.mxu0 0.0
  %1245 = vmatpush.msra.mxu0 0.0
  %1246 = vmatpush.msra.mxu0 %v1229
  %1247 = vmatpush.msra.mxu0 %v1228
  %1248 = vmatpush.msra.mxu0 %v1227
  %1249 = vmatpush.msra.mxu0 %v1226
  %1250 = vmatmul.f32.gmra.mxu0 %v1232
  %v1251 = vpop.f32.mrf.mxu0
  %v1252 = vadd.f32 0.0, %v1251
  %1253 = vdwg.mxu0
  %v1254 = vld [vmem:[%s9] sm:$0xff]
  %v1255 = vld [vmem:[%s9 + $0x8] sm:$0xff]
  %v1256 = vld [vmem:[%s9 + $0x10] sm:$0xff]
  %v1257 = vld [vmem:[%s9 + $0x18] sm:$0xff]
  %v1258 = vld [vmem:[%s9 + $0x20] sm:$0xff]
  %v1259 = vld [vmem:[%s9 + $0x28] sm:$0xff]
  %v1260 = vld [vmem:[%s9 + $0x30] sm:$0xff]
  %v1261 = vld [vmem:[%s9 + $0x38] sm:$0xff]
  %s1262 = scalar_lea.vmem %s8, 8
  %v1263 = vld [vmem:[%s1262] sm:$0xff]
  %v1265 = vsel %vm198, %v1263, 0
  %1267 = vmatpush.msra.mxu0 0.0
  %1268 = vmatpush.msra.mxu0 0.0
  %1269 = vmatpush.msra.mxu0 0.0
  %1270 = vmatpush.msra.mxu0 0.0
  %1271 = vmatpush.msra.mxu0 0.0
  %1272 = vmatpush.msra.mxu0 0.0
  %1273 = vmatpush.msra.mxu0 0.0
  %1274 = vmatpush.msra.mxu0 0.0
  %1275 = vmatpush.msra.mxu0 0.0
  %1276 = vmatpush.msra.mxu0 0.0
  %1277 = vmatpush.msra.mxu0 0.0
  %1278 = vmatpush.msra.mxu0 0.0
  %1279 = vmatpush.msra.mxu0 %v1229
  %1280 = vmatpush.msra.mxu0 %v1228
  %1281 = vmatpush.msra.mxu0 %v1227
  %1282 = vmatpush.msra.mxu0 %v1226
  %1283 = vmatmul.f32.gmra.mxu0 %v1265
  %v1284 = vpop.f32.mrf.mxu0
  %v1285 = vadd.f32 0.0, %v1284
  %1286 = vdwg.mxu0
  %s1287 = scalar_lea.vmem %s9, 64
  %v1288 = vld [vmem:[%s1287] sm:$0xff]
  %v1289 = vld [vmem:[%s1287 + $0x8] sm:$0xff]
  %v1290 = vld [vmem:[%s1287 + $0x10] sm:$0xff]
  %v1291 = vld [vmem:[%s1287 + $0x18] sm:$0xff]
  %v1292 = vld [vmem:[%s1287 + $0x20] sm:$0xff]
  %v1293 = vld [vmem:[%s1287 + $0x28] sm:$0xff]
  %v1294 = vld [vmem:[%s1287 + $0x30] sm:$0xff]
  %v1295 = vld [vmem:[%s1287 + $0x38] sm:$0xff]
  %v1297 = vsel %vm1153, %v1285, 0
  %1299 = vmatpush.msra.mxu0 0.0
  %1300 = vmatpush.msra.mxu0 0.0
  %1301 = vmatpush.msra.mxu0 0.0
  %1302 = vmatpush.msra.mxu0 0.0
  %1303 = vmatpush.msra.mxu0 0.0
  %1304 = vmatpush.msra.mxu0 0.0
  %1305 = vmatpush.msra.mxu0 0.0
  %1306 = vmatpush.msra.mxu0 0.0
  %1307 = vmatpush.msra.mxu0 %v1295
  %1308 = vmatpush.msra.mxu0 %v1294
  %1309 = vmatpush.msra.mxu0 %v1293
  %1310 = vmatpush.msra.mxu0 %v1292
  %1311 = vmatpush.msra.mxu0 %v1291
  %1312 = vmatpush.msra.mxu0 %v1290
  %1313 = vmatpush.msra.mxu0 %v1289
  %1314 = vmatpush.msra.mxu0 %v1288
  %1315 = vmatmul.f32.gmra.mxu0 %v1297
  %v1316 = vpop.f32.mrf.mxu0
  %v1317 = vadd.f32 0.0, %v1316
  %1318 = vdwg.mxu0
  %v1320 = vsel %vm1153, %v1252, 0
  %1322 = vmatpush.msra.mxu0 0.0
  %1323 = vmatpush.msra.mxu0 0.0
  %1324 = vmatpush.msra.mxu0 0.0
  %1325 = vmatpush.msra.mxu0 0.0
  %1326 = vmatpush.msra.mxu0 0.0
  %1327 = vmatpush.msra.mxu0 0.0
  %1328 = vmatpush.msra.mxu0 0.0
  %1329 = vmatpush.msra.mxu0 0.0
  %1330 = vmatpush.msra.mxu0 %v1261
  %1331 = vmatpush.msra.mxu0 %v1260
  %1332 = vmatpush.msra.mxu0 %v1259
  %1333 = vmatpush.msra.mxu0 %v1258
  %1334 = vmatpush.msra.mxu0 %v1257
  %1335 = vmatpush.msra.mxu0 %v1256
  %1336 = vmatpush.msra.mxu0 %v1255
  %1337 = vmatpush.msra.mxu0 %v1254
  %1338 = vmatmul.f32.gmra.mxu0 %v1320
  %v1339 = vpop.f32.mrf.mxu0
  %v1340 = vadd.f32 %v1317, %v1339
  %1341 = vdwg.mxu0
  %s1342 = scalar_lea.vmem %s8, 16
  %v1343 = vld [vmem:[%s1342] sm:$0xff]
  %v1345 = vsel %vm198, %v1343, 0
  %1347 = vmatpush.msra.mxu0 0.0
  %1348 = vmatpush.msra.mxu0 0.0
  %1349 = vmatpush.msra.mxu0 0.0
  %1350 = vmatpush.msra.mxu0 0.0
  %1351 = vmatpush.msra.mxu0 0.0
  %1352 = vmatpush.msra.mxu0 0.0
  %1353 = vmatpush.msra.mxu0 0.0
  %1354 = vmatpush.msra.mxu0 0.0
  %1355 = vmatpush.msra.mxu0 0.0
  %1356 = vmatpush.msra.mxu0 0.0
  %1357 = vmatpush.msra.mxu0 0.0
  %1358 = vmatpush.msra.mxu0 0.0
  %1359 = vmatpush.msra.mxu0 %v1229
  %1360 = vmatpush.msra.mxu0 %v1228
  %1361 = vmatpush.msra.mxu0 %v1227
  %1362 = vmatpush.msra.mxu0 %v1226
  %1363 = vmatmul.f32.gmra.mxu0 %v1345
  %v1364 = vpop.f32.mrf.mxu0
  %v1365 = vadd.f32 0.0, %v1364
  %1366 = vdwg.mxu0
  %s1367 = scalar_lea.vmem %s9, 128
  %v1368 = vld [vmem:[%s1367] sm:$0xff]
  %v1369 = vld [vmem:[%s1367 + $0x8] sm:$0xff]
  %v1370 = vld [vmem:[%s1367 + $0x10] sm:$0xff]
  %v1371 = vld [vmem:[%s1367 + $0x18] sm:$0xff]
  %v1372 = vld [vmem:[%s1367 + $0x20] sm:$0xff]
  %v1373 = vld [vmem:[%s1367 + $0x28] sm:$0xff]
  %v1374 = vld [vmem:[%s1367 + $0x30] sm:$0xff]
  %v1375 = vld [vmem:[%s1367 + $0x38] sm:$0xff]
  %v1377 = vsel %vm1153, %v1365, 0
  %1379 = vmatpush.msra.mxu0 0.0
  %1380 = vmatpush.msra.mxu0 0.0
  %1381 = vmatpush.msra.mxu0 0.0
  %1382 = vmatpush.msra.mxu0 0.0
  %1383 = vmatpush.msra.mxu0 0.0
  %1384 = vmatpush.msra.mxu0 0.0
  %1385 = vmatpush.msra.mxu0 0.0
  %1386 = vmatpush.msra.mxu0 0.0
  %1387 = vmatpush.msra.mxu0 %v1375
  %1388 = vmatpush.msra.mxu0 %v1374
  %1389 = vmatpush.msra.mxu0 %v1373
  %1390 = vmatpush.msra.mxu0 %v1372
  %1391 = vmatpush.msra.mxu0 %v1371
  %1392 = vmatpush.msra.mxu0 %v1370
  %1393 = vmatpush.msra.mxu0 %v1369
  %1394 = vmatpush.msra.mxu0 %v1368
  %1395 = vmatmul.f32.gmra.mxu0 %v1377
  %v1396 = vpop.f32.mrf.mxu0
  %v1397 = vadd.f32 0.0, %v1396
  %1398 = vdwg.mxu0
  %v1399 = vadd.f32 %v1340, %v1397
  %s1400 = scalar_lea.vmem %s8, 24
  %v1401 = vld [vmem:[%s1400] sm:$0xff]
  %v1403 = vsel %vm198, %v1401, 0
  %1405 = vmatpush.msra.mxu0 0.0
  %1406 = vmatpush.msra.mxu0 0.0
  %1407 = vmatpush.msra.mxu0 0.0
  %1408 = vmatpush.msra.mxu0 0.0
  %1409 = vmatpush.msra.mxu0 0.0
  %1410 = vmatpush.msra.mxu0 0.0
  %1411 = vmatpush.msra.mxu0 0.0
  %1412 = vmatpush.msra.mxu0 0.0
  %1413 = vmatpush.msra.mxu0 0.0
  %1414 = vmatpush.msra.mxu0 0.0
  %1415 = vmatpush.msra.mxu0 0.0
  %1416 = vmatpush.msra.mxu0 0.0
  %1417 = vmatpush.msra.mxu0 %v1229
  %1418 = vmatpush.msra.mxu0 %v1228
  %1419 = vmatpush.msra.mxu0 %v1227
  %1420 = vmatpush.msra.mxu0 %v1226
  %1421 = vmatmul.f32.gmra.mxu0 %v1403
  %v1422 = vpop.f32.mrf.mxu0
  %v1423 = vadd.f32 0.0, %v1422
  %1424 = vdwg.mxu0
  %s1425 = scalar_lea.vmem %s9, 192
  %v1426 = vld [vmem:[%s1425] sm:$0xff]
  %v1427 = vld [vmem:[%s1425 + $0x8] sm:$0xff]
  %v1428 = vld [vmem:[%s1425 + $0x10] sm:$0xff]
  %v1429 = vld [vmem:[%s1425 + $0x18] sm:$0xff]
  %v1430 = vld [vmem:[%s1425 + $0x20] sm:$0xff]
  %v1431 = vld [vmem:[%s1425 + $0x28] sm:$0xff]
  %v1432 = vld [vmem:[%s1425 + $0x30] sm:$0xff]
  %v1433 = vld [vmem:[%s1425 + $0x38] sm:$0xff]
  %v1435 = vsel %vm1153, %v1423, 0
  %1437 = vmatpush.msra.mxu0 0.0
  %1438 = vmatpush.msra.mxu0 0.0
  %1439 = vmatpush.msra.mxu0 0.0
  %1440 = vmatpush.msra.mxu0 0.0
  %1441 = vmatpush.msra.mxu0 0.0
  %1442 = vmatpush.msra.mxu0 0.0
  %1443 = vmatpush.msra.mxu0 0.0
  %1444 = vmatpush.msra.mxu0 0.0
  %1445 = vmatpush.msra.mxu0 %v1433
  %1446 = vmatpush.msra.mxu0 %v1432
  %1447 = vmatpush.msra.mxu0 %v1431
  %1448 = vmatpush.msra.mxu0 %v1430
  %1449 = vmatpush.msra.mxu0 %v1429
  %1450 = vmatpush.msra.mxu0 %v1428
  %1451 = vmatpush.msra.mxu0 %v1427
  %1452 = vmatpush.msra.mxu0 %v1426
  %1453 = vmatmul.f32.gmra.mxu0 %v1435
  %v1454 = vpop.f32.mrf.mxu0
  %v1455 = vadd.f32 0.0, %v1454
  %1456 = vdwg.mxu0
  %v1457 = vadd.f32 %v1399, %v1455
  %s1458 = scalar_lea.vmem %s8, 32
  %v1459 = vld [vmem:[%s1458] sm:$0xff]
  %v1461 = vsel %vm198, %v1459, 0
  %1463 = vmatpush.msra.mxu0 0.0
  %1464 = vmatpush.msra.mxu0 0.0
  %1465 = vmatpush.msra.mxu0 0.0
  %1466 = vmatpush.msra.mxu0 0.0
  %1467 = vmatpush.msra.mxu0 0.0
  %1468 = vmatpush.msra.mxu0 0.0
  %1469 = vmatpush.msra.mxu0 0.0
  %1470 = vmatpush.msra.mxu0 0.0
  %1471 = vmatpush.msra.mxu0 0.0
  %1472 = vmatpush.msra.mxu0 0.0
  %1473 = vmatpush.msra.mxu0 0.0
  %1474 = vmatpush.msra.mxu0 0.0
  %1475 = vmatpush.msra.mxu0 %v1229
  %1476 = vmatpush.msra.mxu0 %v1228
  %1477 = vmatpush.msra.mxu0 %v1227
  %1478 = vmatpush.msra.mxu0 %v1226
  %1479 = vmatmul.f32.gmra.mxu0 %v1461
  %v1480 = vpop.f32.mrf.mxu0
  %v1481 = vadd.f32 0.0, %v1480
  %1482 = vdwg.mxu0
  %s1483 = scalar_lea.vmem %s9, 256
  %v1484 = vld [vmem:[%s1483] sm:$0xff]
  %v1485 = vld [vmem:[%s1483 + $0x8] sm:$0xff]
  %v1486 = vld [vmem:[%s1483 + $0x10] sm:$0xff]
  %v1487 = vld [vmem:[%s1483 + $0x18] sm:$0xff]
  %v1488 = vld [vmem:[%s1483 + $0x20] sm:$0xff]
  %v1489 = vld [vmem:[%s1483 + $0x28] sm:$0xff]
  %v1490 = vld [vmem:[%s1483 + $0x30] sm:$0xff]
  %v1491 = vld [vmem:[%s1483 + $0x38] sm:$0xff]
  %v1493 = vsel %vm1153, %v1481, 0
  %1495 = vmatpush.msra.mxu0 0.0
  %1496 = vmatpush.msra.mxu0 0.0
  %1497 = vmatpush.msra.mxu0 0.0
  %1498 = vmatpush.msra.mxu0 0.0
  %1499 = vmatpush.msra.mxu0 0.0
  %1500 = vmatpush.msra.mxu0 0.0
  %1501 = vmatpush.msra.mxu0 0.0
  %1502 = vmatpush.msra.mxu0 0.0
  %1503 = vmatpush.msra.mxu0 %v1491
  %1504 = vmatpush.msra.mxu0 %v1490
  %1505 = vmatpush.msra.mxu0 %v1489
  %1506 = vmatpush.msra.mxu0 %v1488
  %1507 = vmatpush.msra.mxu0 %v1487
  %1508 = vmatpush.msra.mxu0 %v1486
  %1509 = vmatpush.msra.mxu0 %v1485
  %1510 = vmatpush.msra.mxu0 %v1484
  %1511 = vmatmul.f32.gmra.mxu0 %v1493
  %v1512 = vpop.f32.mrf.mxu0
  %v1513 = vadd.f32 0.0, %v1512
  %1514 = vdwg.mxu0
  %v1515 = vadd.f32 %v1457, %v1513
  %s1516 = scalar_lea.vmem %s8, 40
  %v1517 = vld [vmem:[%s1516] sm:$0xff]
  %v1519 = vsel %vm198, %v1517, 0
  %1521 = vmatpush.msra.mxu0 0.0
  %1522 = vmatpush.msra.mxu0 0.0
  %1523 = vmatpush.msra.mxu0 0.0
  %1524 = vmatpush.msra.mxu0 0.0
  %1525 = vmatpush.msra.mxu0 0.0
  %1526 = vmatpush.msra.mxu0 0.0
  %1527 = vmatpush.msra.mxu0 0.0
  %1528 = vmatpush.msra.mxu0 0.0
  %1529 = vmatpush.msra.mxu0 0.0
  %1530 = vmatpush.msra.mxu0 0.0
  %1531 = vmatpush.msra.mxu0 0.0
  %1532 = vmatpush.msra.mxu0 0.0
  %1533 = vmatpush.msra.mxu0 %v1229
  %1534 = vmatpush.msra.mxu0 %v1228
  %1535 = vmatpush.msra.mxu0 %v1227
  %1536 = vmatpush.msra.mxu0 %v1226
  %1537 = vmatmul.f32.gmra.mxu0 %v1519
  %v1538 = vpop.f32.mrf.mxu0
  %v1539 = vadd.f32 0.0, %v1538
  %1540 = vdwg.mxu0
  %s1541 = scalar_lea.vmem %s9, 320
  %v1542 = vld [vmem:[%s1541] sm:$0xff]
  %v1543 = vld [vmem:[%s1541 + $0x8] sm:$0xff]
  %v1544 = vld [vmem:[%s1541 + $0x10] sm:$0xff]
  %v1545 = vld [vmem:[%s1541 + $0x18] sm:$0xff]
  %v1546 = vld [vmem:[%s1541 + $0x20] sm:$0xff]
  %v1547 = vld [vmem:[%s1541 + $0x28] sm:$0xff]
  %v1548 = vld [vmem:[%s1541 + $0x30] sm:$0xff]
  %v1549 = vld [vmem:[%s1541 + $0x38] sm:$0xff]
  %v1551 = vsel %vm1153, %v1539, 0
  %1553 = vmatpush.msra.mxu0 0.0
  %1554 = vmatpush.msra.mxu0 0.0
  %1555 = vmatpush.msra.mxu0 0.0
  %1556 = vmatpush.msra.mxu0 0.0
  %1557 = vmatpush.msra.mxu0 0.0
  %1558 = vmatpush.msra.mxu0 0.0
  %1559 = vmatpush.msra.mxu0 0.0
  %1560 = vmatpush.msra.mxu0 0.0
  %1561 = vmatpush.msra.mxu0 %v1549
  %1562 = vmatpush.msra.mxu0 %v1548
  %1563 = vmatpush.msra.mxu0 %v1547
  %1564 = vmatpush.msra.mxu0 %v1546
  %1565 = vmatpush.msra.mxu0 %v1545
  %1566 = vmatpush.msra.mxu0 %v1544
  %1567 = vmatpush.msra.mxu0 %v1543
  %1568 = vmatpush.msra.mxu0 %v1542
  %1569 = vmatmul.f32.gmra.mxu0 %v1551
  %v1570 = vpop.f32.mrf.mxu0
  %v1571 = vadd.f32 0.0, %v1570
  %1572 = vdwg.mxu0
  %v1573 = vadd.f32 %v1515, %v1571
  %s1574 = scalar_lea.vmem %s8, 48
  %v1575 = vld [vmem:[%s1574] sm:$0xff]
  %v1577 = vsel %vm198, %v1575, 0
  %1579 = vmatpush.msra.mxu0 0.0
  %1580 = vmatpush.msra.mxu0 0.0
  %1581 = vmatpush.msra.mxu0 0.0
  %1582 = vmatpush.msra.mxu0 0.0
  %1583 = vmatpush.msra.mxu0 0.0
  %1584 = vmatpush.msra.mxu0 0.0
  %1585 = vmatpush.msra.mxu0 0.0
  %1586 = vmatpush.msra.mxu0 0.0
  %1587 = vmatpush.msra.mxu0 0.0
  %1588 = vmatpush.msra.mxu0 0.0
  %1589 = vmatpush.msra.mxu0 0.0
  %1590 = vmatpush.msra.mxu0 0.0
  %1591 = vmatpush.msra.mxu0 %v1229
  %1592 = vmatpush.msra.mxu0 %v1228
  %1593 = vmatpush.msra.mxu0 %v1227
  %1594 = vmatpush.msra.mxu0 %v1226
  %1595 = vmatmul.f32.gmra.mxu0 %v1577
  %v1596 = vpop.f32.mrf.mxu0
  %v1597 = vadd.f32 0.0, %v1596
  %1598 = vdwg.mxu0
  %s1599 = scalar_lea.vmem %s9, 384
  %v1600 = vld [vmem:[%s1599] sm:$0xff]
  %v1601 = vld [vmem:[%s1599 + $0x8] sm:$0xff]
  %v1602 = vld [vmem:[%s1599 + $0x10] sm:$0xff]
  %v1603 = vld [vmem:[%s1599 + $0x18] sm:$0xff]
  %v1604 = vld [vmem:[%s1599 + $0x20] sm:$0xff]
  %v1605 = vld [vmem:[%s1599 + $0x28] sm:$0xff]
  %v1606 = vld [vmem:[%s1599 + $0x30] sm:$0xff]
  %v1607 = vld [vmem:[%s1599 + $0x38] sm:$0xff]
  %v1609 = vsel %vm1153, %v1597, 0
  %1611 = vmatpush.msra.mxu0 0.0
  %1612 = vmatpush.msra.mxu0 0.0
  %1613 = vmatpush.msra.mxu0 0.0
  %1614 = vmatpush.msra.mxu0 0.0
  %1615 = vmatpush.msra.mxu0 0.0
  %1616 = vmatpush.msra.mxu0 0.0
  %1617 = vmatpush.msra.mxu0 0.0
  %1618 = vmatpush.msra.mxu0 0.0
  %1619 = vmatpush.msra.mxu0 %v1607
  %1620 = vmatpush.msra.mxu0 %v1606
  %1621 = vmatpush.msra.mxu0 %v1605
  %1622 = vmatpush.msra.mxu0 %v1604
  %1623 = vmatpush.msra.mxu0 %v1603
  %1624 = vmatpush.msra.mxu0 %v1602
  %1625 = vmatpush.msra.mxu0 %v1601
  %1626 = vmatpush.msra.mxu0 %v1600
  %1627 = vmatmul.f32.gmra.mxu0 %v1609
  %v1628 = vpop.f32.mrf.mxu0
  %v1629 = vadd.f32 0.0, %v1628
  %1630 = vdwg.mxu0
  %v1631 = vadd.f32 %v1573, %v1629
  %s1632 = scalar_lea.vmem %s8, 56
  %v1633 = vld [vmem:[%s1632] sm:$0xff]
  %v1635 = vsel %vm198, %v1633, 0
  %1637 = vmatpush.msra.mxu0 0.0
  %1638 = vmatpush.msra.mxu0 0.0
  %1639 = vmatpush.msra.mxu0 0.0
  %1640 = vmatpush.msra.mxu0 0.0
  %1641 = vmatpush.msra.mxu0 0.0
  %1642 = vmatpush.msra.mxu0 0.0
  %1643 = vmatpush.msra.mxu0 0.0
  %1644 = vmatpush.msra.mxu0 0.0
  %1645 = vmatpush.msra.mxu0 0.0
  %1646 = vmatpush.msra.mxu0 0.0
  %1647 = vmatpush.msra.mxu0 0.0
  %1648 = vmatpush.msra.mxu0 0.0
  %1649 = vmatpush.msra.mxu0 %v1229
  %1650 = vmatpush.msra.mxu0 %v1228
  %1651 = vmatpush.msra.mxu0 %v1227
  %1652 = vmatpush.msra.mxu0 %v1226
  %1653 = vmatmul.f32.gmra.mxu0 %v1635
  %v1654 = vpop.f32.mrf.mxu0
  %v1655 = vadd.f32 0.0, %v1654
  %1656 = vdwg.mxu0
  %s1657 = scalar_lea.vmem %s9, 448
  %v1658 = vld [vmem:[%s1657] sm:$0xff]
  %v1659 = vld [vmem:[%s1657 + $0x8] sm:$0xff]
  %v1660 = vld [vmem:[%s1657 + $0x10] sm:$0xff]
  %v1661 = vld [vmem:[%s1657 + $0x18] sm:$0xff]
  %v1662 = vld [vmem:[%s1657 + $0x20] sm:$0xff]
  %v1663 = vld [vmem:[%s1657 + $0x28] sm:$0xff]
  %v1664 = vld [vmem:[%s1657 + $0x30] sm:$0xff]
  %v1665 = vld [vmem:[%s1657 + $0x38] sm:$0xff]
  %v1667 = vsel %vm1153, %v1655, 0
  %1669 = vmatpush.msra.mxu0 0.0
  %1670 = vmatpush.msra.mxu0 0.0
  %1671 = vmatpush.msra.mxu0 0.0
  %1672 = vmatpush.msra.mxu0 0.0
  %1673 = vmatpush.msra.mxu0 0.0
  %1674 = vmatpush.msra.mxu0 0.0
  %1675 = vmatpush.msra.mxu0 0.0
  %1676 = vmatpush.msra.mxu0 0.0
  %1677 = vmatpush.msra.mxu0 %v1665
  %1678 = vmatpush.msra.mxu0 %v1664
  %1679 = vmatpush.msra.mxu0 %v1663
  %1680 = vmatpush.msra.mxu0 %v1662
  %1681 = vmatpush.msra.mxu0 %v1661
  %1682 = vmatpush.msra.mxu0 %v1660
  %1683 = vmatpush.msra.mxu0 %v1659
  %1684 = vmatpush.msra.mxu0 %v1658
  %1685 = vmatmul.f32.gmra.mxu0 %v1667
  %v1686 = vpop.f32.mrf.mxu0
  %v1687 = vadd.f32 0.0, %v1686
  %1688 = vdwg.mxu0
  %v1689 = vadd.f32 %v1631, %v1687
  %s1690 = scalar_lea.vmem %s8, 64
  %v1691 = vld [vmem:[%s1690] sm:$0xff]
  %v1693 = vsel %vm198, %v1691, 0
  %1695 = vmatpush.msra.mxu0 0.0
  %1696 = vmatpush.msra.mxu0 0.0
  %1697 = vmatpush.msra.mxu0 0.0
  %1698 = vmatpush.msra.mxu0 0.0
  %1699 = vmatpush.msra.mxu0 0.0
  %1700 = vmatpush.msra.mxu0 0.0
  %1701 = vmatpush.msra.mxu0 0.0
  %1702 = vmatpush.msra.mxu0 0.0
  %1703 = vmatpush.msra.mxu0 0.0
  %1704 = vmatpush.msra.mxu0 0.0
  %1705 = vmatpush.msra.mxu0 0.0
  %1706 = vmatpush.msra.mxu0 0.0
  %1707 = vmatpush.msra.mxu0 %v1229
  %1708 = vmatpush.msra.mxu0 %v1228
  %1709 = vmatpush.msra.mxu0 %v1227
  %1710 = vmatpush.msra.mxu0 %v1226
  %1711 = vmatmul.f32.gmra.mxu0 %v1693
  %v1712 = vpop.f32.mrf.mxu0
  %v1713 = vadd.f32 0.0, %v1712
  %1714 = vdwg.mxu0
  %s1715 = scalar_lea.vmem %s9, 512
  %v1716 = vld [vmem:[%s1715] sm:$0xff]
  %v1717 = vld [vmem:[%s1715 + $0x8] sm:$0xff]
  %v1718 = vld [vmem:[%s1715 + $0x10] sm:$0xff]
  %v1719 = vld [vmem:[%s1715 + $0x18] sm:$0xff]
  %v1720 = vld [vmem:[%s1715 + $0x20] sm:$0xff]
  %v1721 = vld [vmem:[%s1715 + $0x28] sm:$0xff]
  %v1722 = vld [vmem:[%s1715 + $0x30] sm:$0xff]
  %v1723 = vld [vmem:[%s1715 + $0x38] sm:$0xff]
  %v1725 = vsel %vm1153, %v1713, 0
  %1727 = vmatpush.msra.mxu0 0.0
  %1728 = vmatpush.msra.mxu0 0.0
  %1729 = vmatpush.msra.mxu0 0.0
  %1730 = vmatpush.msra.mxu0 0.0
  %1731 = vmatpush.msra.mxu0 0.0
  %1732 = vmatpush.msra.mxu0 0.0
  %1733 = vmatpush.msra.mxu0 0.0
  %1734 = vmatpush.msra.mxu0 0.0
  %1735 = vmatpush.msra.mxu0 %v1723
  %1736 = vmatpush.msra.mxu0 %v1722
  %1737 = vmatpush.msra.mxu0 %v1721
  %1738 = vmatpush.msra.mxu0 %v1720
  %1739 = vmatpush.msra.mxu0 %v1719
  %1740 = vmatpush.msra.mxu0 %v1718
  %1741 = vmatpush.msra.mxu0 %v1717
  %1742 = vmatpush.msra.mxu0 %v1716
  %1743 = vmatmul.f32.gmra.mxu0 %v1725
  %v1744 = vpop.f32.mrf.mxu0
  %v1745 = vadd.f32 0.0, %v1744
  %1746 = vdwg.mxu0
  %v1747 = vadd.f32 %v1689, %v1745
  %v1748 = vrot.slane %v1747, 4
  %v1749 = vadd.f32 %v1747, %v1748
  %v1750 = vrot.slane %v1749, 2
  %v1751 = vadd.f32 %v1749, %v1750
  %v1752 = vrot.slane %v1751, 1
  %v1753 = vadd.f32 %v1751, %v1752
  %v1754 = vmul.f32 %v1753, 0.125
  %v1755 = vsub.f32 %v1747, %v1754
  %v1756 = vmul.f32 %v1755, %v1755
  %v1757 = vrot.slane %v1756, 4
  %v1758 = vadd.f32 %v1756, %v1757
  %v1759 = vrot.slane %v1758, 2
  %v1760 = vadd.f32 %v1758, %v1759
  %v1761 = vrot.slane %v1760, 1
  %v1762 = vadd.f32 %v1760, %v1761
  %v1763 = vmul.f32 %v1762, 0.125
  %v1764 = vld [vmem:[%s10] sm:$0x1]
  %v1765 = vadd.f32 %v1763, 1e-05
  %v1766 = vrsqrt.pop %v1765
  %v1767 = vmul.f32 %v1766, %v1765
  %v1768 = vmul.f32 %v1767, %v1766
  %v1769 = vmul.f32 0.5, %v1768
  %v1770 = vsub.f32 1.5, %v1769
  %v1771 = vmul.f32 %v1766, %v1770
  %vm1772 = vweird.f32 %v1765
  %vm1773 = vweird.f32 %v1766
  %vm1774 = vmor %vm1772, %vm1773
  %v1775 = vsel %vm1774, %v1766, %v1771
  %v1776 = vmul.f32 %v1764, %v1775
  %v1778 = vperm.slane %v1776, 0
  %v1780 = vmul.f32 %v1755, %v1778
  %v1781 = vld [vmem:[%s11] sm:$0x1]
  %v1783 = vperm.slane %v1781, 0
  %v1785 = vadd.f32 %v1780, %v1783
  %vm1786 = vcmp.gt.f32.partialorder %v1785, 0.0
  %v1787 = vmul.f32 %v1785, 0.01
  %v1788 = vsel %vm1786, %v1785, %v1787
  %v1789 = vld [vmem:[%s12] sm:$0x3]
  %vm1790 = vcmask 64512
  %v1792 = vsel %vm1790, %v1789, 0
  %1794 = vmatpush.msra.mxu0 0.0
  %1795 = vmatpush.msra.mxu0 0.0
  %1796 = vmatpush.msra.mxu0 0.0
  %1797 = vmatpush.msra.mxu0 0.0
  %1798 = vmatpush.msra.mxu0 0.0
  %1799 = vmatpush.msra.mxu0 0.0
  %1800 = vmatpush.msra.mxu0 0.0
  %1801 = vmatpush.msra.mxu0 0.0
  %1802 = vmatpush.msra.mxu0 0.0
  %1803 = vmatpush.msra.mxu0 0.0
  %1804 = vmatpush.msra.mxu0 0.0
  %1805 = vmatpush.msra.mxu0 0.0
  %1806 = vmatpush.msra.mxu0 0.0
  %1807 = vmatpush.msra.mxu0 0.0
  %1808 = vmatpush.msra.mxu0 0.0
  %1809 = vmatpush.msra.mxu0 %v1788
  %1810 = vmatmul.f32.gmra.mxu0 %v1792
  %v1811 = vpop.f32.mrf.mxu0
  %v1812 = vadd.f32 0.0, %v1811
  %1813 = vdwg.mxu0
  %v1814 = vld [vmem:[%s13] sm:$0xff]
  %v1815 = vld [vmem:[%s13 + $0x8] sm:$0xff]
  %v1816 = vld [vmem:[%s13 + $0x10] sm:$0xff]
  %v1817 = vld [vmem:[%s13 + $0x18] sm:$0xff]
  %v1818 = vld [vmem:[%s13 + $0x20] sm:$0xff]
  %v1819 = vld [vmem:[%s13 + $0x28] sm:$0xff]
  %v1820 = vld [vmem:[%s13 + $0x30] sm:$0xff]
  %v1821 = vld [vmem:[%s13 + $0x38] sm:$0xff]
  %v1822 = vld [vmem:[%s13 + $0x40] sm:$0xff]
  %v1823 = vld [vmem:[%s13 + $0x48] sm:$0xff]
  %v1824 = vld [vmem:[%s13 + $0x50] sm:$0xff]
  %v1825 = vld [vmem:[%s13 + $0x58] sm:$0xff]
  %v1826 = vld [vmem:[%s13 + $0x60] sm:$0xff]
  %v1827 = vld [vmem:[%s13 + $0x68] sm:$0xff]
  %v1828 = vld [vmem:[%s13 + $0x70] sm:$0xff]
  %v1829 = vld [vmem:[%s13 + $0x78] sm:$0xff]
  %v1830 = vld [vmem:[%s13 + $0x80] sm:$0xff]
  %v1831 = vld [vmem:[%s13 + $0x88] sm:$0xff]
  %v1832 = vld [vmem:[%s13 + $0x90] sm:$0xff]
  %v1833 = vld [vmem:[%s13 + $0x98] sm:$0xff]
  %v1834 = vld [vmem:[%s13 + $0xa0] sm:$0xff]
  %v1835 = vld [vmem:[%s13 + $0xa8] sm:$0xff]
  %v1836 = vld [vmem:[%s13 + $0xb0] sm:$0xff]
  %v1837 = vld [vmem:[%s13 + $0xb8] sm:$0xff]
  %v1838 = vld [vmem:[%s13 + $0xc0] sm:$0xff]
  %v1839 = vld [vmem:[%s13 + $0xc8] sm:$0xff]
  %v1840 = vld [vmem:[%s13 + $0xd0] sm:$0xff]
  %v1841 = vld [vmem:[%s13 + $0xd8] sm:$0xff]
  %v1842 = vld [vmem:[%s13 + $0xe0] sm:$0xff]
  %v1843 = vld [vmem:[%s13 + $0xe8] sm:$0xff]
  %v1844 = vld [vmem:[%s13 + $0xf0] sm:$0xff]
  %v1845 = vld [vmem:[%s13 + $0xf8] sm:$0xff]
  %s1846 = scalar_lea.vmem %s12, 2
  %v1847 = vld [vmem:[%s1846] sm:$0x3]
  %v1849 = vsel %vm1790, %v1847, 0
  %1851 = vmatpush.msra.mxu0 0.0
  %1852 = vmatpush.msra.mxu0 0.0
  %1853 = vmatpush.msra.mxu0 0.0
  %1854 = vmatpush.msra.mxu0 0.0
  %1855 = vmatpush.msra.mxu0 0.0
  %1856 = vmatpush.msra.mxu0 0.0
  %1857 = vmatpush.msra.mxu0 0.0
  %1858 = vmatpush.msra.mxu0 0.0
  %1859 = vmatpush.msra.mxu0 0.0
  %1860 = vmatpush.msra.mxu0 0.0
  %1861 = vmatpush.msra.mxu0 0.0
  %1862 = vmatpush.msra.mxu0 0.0
  %1863 = vmatpush.msra.mxu0 0.0
  %1864 = vmatpush.msra.mxu0 0.0
  %1865 = vmatpush.msra.mxu0 0.0
  %1866 = vmatpush.msra.mxu0 %v1788
  %1867 = vmatmul.f32.gmra.mxu0 %v1849
  %v1868 = vpop.f32.mrf.mxu0
  %v1869 = vadd.f32 0.0, %v1868
  %1870 = vdwg.mxu0
  %s1871 = scalar_lea.vmem %s13, 256
  %v1872 = vld [vmem:[%s1871] sm:$0xff]
  %v1873 = vld [vmem:[%s1871 + $0x8] sm:$0xff]
  %v1874 = vld [vmem:[%s1871 + $0x10] sm:$0xff]
  %v1875 = vld [vmem:[%s1871 + $0x18] sm:$0xff]
  %v1876 = vld [vmem:[%s1871 + $0x20] sm:$0xff]
  %v1877 = vld [vmem:[%s1871 + $0x28] sm:$0xff]
  %v1878 = vld [vmem:[%s1871 + $0x30] sm:$0xff]
  %v1879 = vld [vmem:[%s1871 + $0x38] sm:$0xff]
  %v1880 = vld [vmem:[%s1871 + $0x40] sm:$0xff]
  %v1881 = vld [vmem:[%s1871 + $0x48] sm:$0xff]
  %v1882 = vld [vmem:[%s1871 + $0x50] sm:$0xff]
  %v1883 = vld [vmem:[%s1871 + $0x58] sm:$0xff]
  %v1884 = vld [vmem:[%s1871 + $0x60] sm:$0xff]
  %v1885 = vld [vmem:[%s1871 + $0x68] sm:$0xff]
  %v1886 = vld [vmem:[%s1871 + $0x70] sm:$0xff]
  %v1887 = vld [vmem:[%s1871 + $0x78] sm:$0xff]
  %v1888 = vld [vmem:[%s1871 + $0x80] sm:$0xff]
  %v1889 = vld [vmem:[%s1871 + $0x88] sm:$0xff]
  %v1890 = vld [vmem:[%s1871 + $0x90] sm:$0xff]
  %v1891 = vld [vmem:[%s1871 + $0x98] sm:$0xff]
  %v1892 = vld [vmem:[%s1871 + $0xa0] sm:$0xff]
  %v1893 = vld [vmem:[%s1871 + $0xa8] sm:$0xff]
  %v1894 = vld [vmem:[%s1871 + $0xb0] sm:$0xff]
  %v1895 = vld [vmem:[%s1871 + $0xb8] sm:$0xff]
  %v1896 = vld [vmem:[%s1871 + $0xc0] sm:$0xff]
  %v1897 = vld [vmem:[%s1871 + $0xc8] sm:$0xff]
  %v1898 = vld [vmem:[%s1871 + $0xd0] sm:$0xff]
  %v1899 = vld [vmem:[%s1871 + $0xd8] sm:$0xff]
  %v1900 = vld [vmem:[%s1871 + $0xe0] sm:$0xff]
  %v1901 = vld [vmem:[%s1871 + $0xe8] sm:$0xff]
  %v1902 = vld [vmem:[%s1871 + $0xf0] sm:$0xff]
  %v1903 = vld [vmem:[%s1871 + $0xf8] sm:$0xff]
  %1904 = vmatpush.msra.mxu0 %v1902
  %1905 = vmatpush.msra.mxu0 %v1900
  %1906 = vmatpush.msra.mxu0 %v1898
  %1907 = vmatpush.msra.mxu0 %v1896
  %1908 = vmatpush.msra.mxu0 %v1894
  %1909 = vmatpush.msra.mxu0 %v1892
  %1910 = vmatpush.msra.mxu0 %v1890
  %1911 = vmatpush.msra.mxu0 %v1888
  %1912 = vmatpush.msra.mxu0 %v1886
  %1913 = vmatpush.msra.mxu0 %v1884
  %1914 = vmatpush.msra.mxu0 %v1882
  %1915 = vmatpush.msra.mxu0 %v1880
  %1916 = vmatpush.msra.mxu0 %v1878
  %1917 = vmatpush.msra.mxu0 %v1876
  %1918 = vmatpush.msra.mxu0 %v1874
  %1919 = vmatpush.msra.mxu0 %v1872
  %1920 = vmatmul.f32.gmra.mxu0 %v1869
  %v1921 = vpop.f32.mrf.mxu0
  %v1922 = vadd.f32 0.0, %v1921
  %1923 = vdwg.mxu0
  %1924 = vmatpush.msra.mxu0 %v1903
  %1925 = vmatpush.msra.mxu0 %v1901
  %1926 = vmatpush.msra.mxu0 %v1899
  %1927 = vmatpush.msra.mxu0 %v1897
  %1928 = vmatpush.msra.mxu0 %v1895
  %1929 = vmatpush.msra.mxu0 %v1893
  %1930 = vmatpush.msra.mxu0 %v1891
  %1931 = vmatpush.msra.mxu0 %v1889
  %1932 = vmatpush.msra.mxu0 %v1887
  %1933 = vmatpush.msra.mxu0 %v1885
  %1934 = vmatpush.msra.mxu0 %v1883
  %1935 = vmatpush.msra.mxu0 %v1881
  %1936 = vmatpush.msra.mxu0 %v1879
  %1937 = vmatpush.msra.mxu0 %v1877
  %1938 = vmatpush.msra.mxu0 %v1875
  %1939 = vmatpush.msra.mxu0 %v1873
  %1940 = vmatmul.f32.gmra.mxu0 %v1869
  %v1941 = vpop.f32.mrf.mxu0
  %v1942 = vadd.f32 0.0, %v1941
  %1943 = vdwg.mxu0
  %1944 = vmatpush.msra.mxu0 %v1844
  %1945 = vmatpush.msra.mxu0 %v1842
  %1946 = vmatpush.msra.mxu0 %v1840
  %1947 = vmatpush.msra.mxu0 %v1838
  %1948 = vmatpush.msra.mxu0 %v1836
  %1949 = vmatpush.msra.mxu0 %v1834
  %1950 = vmatpush.msra.mxu0 %v1832
  %1951 = vmatpush.msra.mxu0 %v1830
  %1952 = vmatpush.msra.mxu0 %v1828
  %1953 = vmatpush.msra.mxu0 %v1826
  %1954 = vmatpush.msra.mxu0 %v1824
  %1955 = vmatpush.msra.mxu0 %v1822
  %1956 = vmatpush.msra.mxu0 %v1820
  %1957 = vmatpush.msra.mxu0 %v1818
  %1958 = vmatpush.msra.mxu0 %v1816
  %1959 = vmatpush.msra.mxu0 %v1814
  %1960 = vmatmul.f32.gmra.mxu0 %v1812
  %v1961 = vpop.f32.mrf.mxu0
  %v1962 = vadd.f32 %v1922, %v1961
  %1963 = vdwg.mxu0
  %1964 = vmatpush.msra.mxu0 %v1845
  %1965 = vmatpush.msra.mxu0 %v1843
  %1966 = vmatpush.msra.mxu0 %v1841
  %1967 = vmatpush.msra.mxu0 %v1839
  %1968 = vmatpush.msra.mxu0 %v1837
  %1969 = vmatpush.msra.mxu0 %v1835
  %1970 = vmatpush.msra.mxu0 %v1833
  %1971 = vmatpush.msra.mxu0 %v1831
  %1972 = vmatpush.msra.mxu0 %v1829
  %1973 = vmatpush.msra.mxu0 %v1827
  %1974 = vmatpush.msra.mxu0 %v1825
  %1975 = vmatpush.msra.mxu0 %v1823
  %1976 = vmatpush.msra.mxu0 %v1821
  %1977 = vmatpush.msra.mxu0 %v1819
  %1978 = vmatpush.msra.mxu0 %v1817
  %1979 = vmatpush.msra.mxu0 %v1815
  %1980 = vmatmul.f32.gmra.mxu0 %v1812
  %v1981 = vpop.f32.mrf.mxu0
  %v1982 = vadd.f32 %v1942, %v1981
  %1983 = vdwg.mxu0
  %s1984 = scalar_lea.vmem %s12, 4
  %v1985 = vld [vmem:[%s1984] sm:$0x3]
  %v1987 = vsel %vm1790, %v1985, 0
  %1989 = vmatpush.msra.mxu0 0.0
  %1990 = vmatpush.msra.mxu0 0.0
  %1991 = vmatpush.msra.mxu0 0.0
  %1992 = vmatpush.msra.mxu0 0.0
  %1993 = vmatpush.msra.mxu0 0.0
  %1994 = vmatpush.msra.mxu0 0.0
  %1995 = vmatpush.msra.mxu0 0.0
  %1996 = vmatpush.msra.mxu0 0.0
  %1997 = vmatpush.msra.mxu0 0.0
  %1998 = vmatpush.msra.mxu0 0.0
  %1999 = vmatpush.msra.mxu0 0.0
  %2000 = vmatpush.msra.mxu0 0.0
  %2001 = vmatpush.msra.mxu0 0.0
  %2002 = vmatpush.msra.mxu0 0.0
  %2003 = vmatpush.msra.mxu0 0.0
  %2004 = vmatpush.msra.mxu0 %v1788
  %2005 = vmatmul.f32.gmra.mxu0 %v1987
  %v2006 = vpop.f32.mrf.mxu0
  %v2007 = vadd.f32 0.0, %v2006
  %2008 = vdwg.mxu0
  %s2009 = scalar_lea.vmem %s13, 512
  %v2010 = vld [vmem:[%s2009] sm:$0xff]
  %v2011 = vld [vmem:[%s2009 + $0x8] sm:$0xff]
  %v2012 = vld [vmem:[%s2009 + $0x10] sm:$0xff]
  %v2013 = vld [vmem:[%s2009 + $0x18] sm:$0xff]
  %v2014 = vld [vmem:[%s2009 + $0x20] sm:$0xff]
  %v2015 = vld [vmem:[%s2009 + $0x28] sm:$0xff]
  %v2016 = vld [vmem:[%s2009 + $0x30] sm:$0xff]
  %v2017 = vld [vmem:[%s2009 + $0x38] sm:$0xff]
  %v2018 = vld [vmem:[%s2009 + $0x40] sm:$0xff]
  %v2019 = vld [vmem:[%s2009 + $0x48] sm:$0xff]
  %v2020 = vld [vmem:[%s2009 + $0x50] sm:$0xff]
  %v2021 = vld [vmem:[%s2009 + $0x58] sm:$0xff]
  %v2022 = vld [vmem:[%s2009 + $0x60] sm:$0xff]
  %v2023 = vld [vmem:[%s2009 + $0x68] sm:$0xff]
  %v2024 = vld [vmem:[%s2009 + $0x70] sm:$0xff]
  %v2025 = vld [vmem:[%s2009 + $0x78] sm:$0xff]
  %v2026 = vld [vmem:[%s2009 + $0x80] sm:$0xff]
  %v2027 = vld [vmem:[%s2009 + $0x88] sm:$0xff]
  %v2028 = vld [vmem:[%s2009 + $0x90] sm:$0xff]
  %v2029 = vld [vmem:[%s2009 + $0x98] sm:$0xff]
  %v2030 = vld [vmem:[%s2009 + $0xa0] sm:$0xff]
  %v2031 = vld [vmem:[%s2009 + $0xa8] sm:$0xff]
  %v2032 = vld [vmem:[%s2009 + $0xb0] sm:$0xff]
  %v2033 = vld [vmem:[%s2009 + $0xb8] sm:$0xff]
  %v2034 = vld [vmem:[%s2009 + $0xc0] sm:$0xff]
  %v2035 = vld [vmem:[%s2009 + $0xc8] sm:$0xff]
  %v2036 = vld [vmem:[%s2009 + $0xd0] sm:$0xff]
  %v2037 = vld [vmem:[%s2009 + $0xd8] sm:$0xff]
  %v2038 = vld [vmem:[%s2009 + $0xe0] sm:$0xff]
  %v2039 = vld [vmem:[%s2009 + $0xe8] sm:$0xff]
  %v2040 = vld [vmem:[%s2009 + $0xf0] sm:$0xff]
  %v2041 = vld [vmem:[%s2009 + $0xf8] sm:$0xff]
  %2042 = vmatpush.msra.mxu0 %v2040
  %2043 = vmatpush.msra.mxu0 %v2038
  %2044 = vmatpush.msra.mxu0 %v2036
  %2045 = vmatpush.msra.mxu0 %v2034
  %2046 = vmatpush.msra.mxu0 %v2032
  %2047 = vmatpush.msra.mxu0 %v2030
  %2048 = vmatpush.msra.mxu0 %v2028
  %2049 = vmatpush.msra.mxu0 %v2026
  %2050 = vmatpush.msra.mxu0 %v2024
  %2051 = vmatpush.msra.mxu0 %v2022
  %2052 = vmatpush.msra.mxu0 %v2020
  %2053 = vmatpush.msra.mxu0 %v2018
  %2054 = vmatpush.msra.mxu0 %v2016
  %2055 = vmatpush.msra.mxu0 %v2014
  %2056 = vmatpush.msra.mxu0 %v2012
  %2057 = vmatpush.msra.mxu0 %v2010
  %2058 = vmatmul.f32.gmra.mxu0 %v2007
  %v2059 = vpop.f32.mrf.mxu0
  %v2060 = vadd.f32 0.0, %v2059
  %2061 = vdwg.mxu0
  %2062 = vmatpush.msra.mxu0 %v2041
  %2063 = vmatpush.msra.mxu0 %v2039
  %2064 = vmatpush.msra.mxu0 %v2037
  %2065 = vmatpush.msra.mxu0 %v2035
  %2066 = vmatpush.msra.mxu0 %v2033
  %2067 = vmatpush.msra.mxu0 %v2031
  %2068 = vmatpush.msra.mxu0 %v2029
  %2069 = vmatpush.msra.mxu0 %v2027
  %2070 = vmatpush.msra.mxu0 %v2025
  %2071 = vmatpush.msra.mxu0 %v2023
  %2072 = vmatpush.msra.mxu0 %v2021
  %2073 = vmatpush.msra.mxu0 %v2019
  %2074 = vmatpush.msra.mxu0 %v2017
  %2075 = vmatpush.msra.mxu0 %v2015
  %2076 = vmatpush.msra.mxu0 %v2013
  %2077 = vmatpush.msra.mxu0 %v2011
  %2078 = vmatmul.f32.gmra.mxu0 %v2007
  %v2079 = vpop.f32.mrf.mxu0
  %v2080 = vadd.f32 0.0, %v2079
  %2081 = vdwg.mxu0
  %v2082 = vadd.f32 %v1962, %v2060
  %v2083 = vadd.f32 %v1982, %v2080
  %s2084 = scalar_lea.vmem %s12, 6
  %v2085 = vld [vmem:[%s2084] sm:$0x3]
  %v2087 = vsel %vm1790, %v2085, 0
  %2089 = vmatpush.msra.mxu0 0.0
  %2090 = vmatpush.msra.mxu0 0.0
  %2091 = vmatpush.msra.mxu0 0.0
  %2092 = vmatpush.msra.mxu0 0.0
  %2093 = vmatpush.msra.mxu0 0.0
  %2094 = vmatpush.msra.mxu0 0.0
  %2095 = vmatpush.msra.mxu0 0.0
  %2096 = vmatpush.msra.mxu0 0.0
  %2097 = vmatpush.msra.mxu0 0.0
  %2098 = vmatpush.msra.mxu0 0.0
  %2099 = vmatpush.msra.mxu0 0.0
  %2100 = vmatpush.msra.mxu0 0.0
  %2101 = vmatpush.msra.mxu0 0.0
  %2102 = vmatpush.msra.mxu0 0.0
  %2103 = vmatpush.msra.mxu0 0.0
  %2104 = vmatpush.msra.mxu0 %v1788
  %2105 = vmatmul.f32.gmra.mxu0 %v2087
  %v2106 = vpop.f32.mrf.mxu0
  %v2107 = vadd.f32 0.0, %v2106
  %2108 = vdwg.mxu0
  %s2109 = scalar_lea.vmem %s13, 768
  %v2110 = vld [vmem:[%s2109] sm:$0xff]
  %v2111 = vld [vmem:[%s2109 + $0x8] sm:$0xff]
  %v2112 = vld [vmem:[%s2109 + $0x10] sm:$0xff]
  %v2113 = vld [vmem:[%s2109 + $0x18] sm:$0xff]
  %v2114 = vld [vmem:[%s2109 + $0x20] sm:$0xff]
  %v2115 = vld [vmem:[%s2109 + $0x28] sm:$0xff]
  %v2116 = vld [vmem:[%s2109 + $0x30] sm:$0xff]
  %v2117 = vld [vmem:[%s2109 + $0x38] sm:$0xff]
  %v2118 = vld [vmem:[%s2109 + $0x40] sm:$0xff]
  %v2119 = vld [vmem:[%s2109 + $0x48] sm:$0xff]
  %v2120 = vld [vmem:[%s2109 + $0x50] sm:$0xff]
  %v2121 = vld [vmem:[%s2109 + $0x58] sm:$0xff]
  %v2122 = vld [vmem:[%s2109 + $0x60] sm:$0xff]
  %v2123 = vld [vmem:[%s2109 + $0x68] sm:$0xff]
  %v2124 = vld [vmem:[%s2109 + $0x70] sm:$0xff]
  %v2125 = vld [vmem:[%s2109 + $0x78] sm:$0xff]
  %v2126 = vld [vmem:[%s2109 + $0x80] sm:$0xff]
  %v2127 = vld [vmem:[%s2109 + $0x88] sm:$0xff]
  %v2128 = vld [vmem:[%s2109 + $0x90] sm:$0xff]
  %v2129 = vld [vmem:[%s2109 + $0x98] sm:$0xff]
  %v2130 = vld [vmem:[%s2109 + $0xa0] sm:$0xff]
  %v2131 = vld [vmem:[%s2109 + $0xa8] sm:$0xff]
  %v2132 = vld [vmem:[%s2109 + $0xb0] sm:$0xff]
  %v2133 = vld [vmem:[%s2109 + $0xb8] sm:$0xff]
  %v2134 = vld [vmem:[%s2109 + $0xc0] sm:$0xff]
  %v2135 = vld [vmem:[%s2109 + $0xc8] sm:$0xff]
  %v2136 = vld [vmem:[%s2109 + $0xd0] sm:$0xff]
  %v2137 = vld [vmem:[%s2109 + $0xd8] sm:$0xff]
  %v2138 = vld [vmem:[%s2109 + $0xe0] sm:$0xff]
  %v2139 = vld [vmem:[%s2109 + $0xe8] sm:$0xff]
  %v2140 = vld [vmem:[%s2109 + $0xf0] sm:$0xff]
  %v2141 = vld [vmem:[%s2109 + $0xf8] sm:$0xff]
  %2142 = vmatpush.msra.mxu0 %v2140
  %2143 = vmatpush.msra.mxu0 %v2138
  %2144 = vmatpush.msra.mxu0 %v2136
  %2145 = vmatpush.msra.mxu0 %v2134
  %2146 = vmatpush.msra.mxu0 %v2132
  %2147 = vmatpush.msra.mxu0 %v2130
  %2148 = vmatpush.msra.mxu0 %v2128
  %2149 = vmatpush.msra.mxu0 %v2126
  %2150 = vmatpush.msra.mxu0 %v2124
  %2151 = vmatpush.msra.mxu0 %v2122
  %2152 = vmatpush.msra.mxu0 %v2120
  %2153 = vmatpush.msra.mxu0 %v2118
  %2154 = vmatpush.msra.mxu0 %v2116
  %2155 = vmatpush.msra.mxu0 %v2114
  %2156 = vmatpush.msra.mxu0 %v2112
  %2157 = vmatpush.msra.mxu0 %v2110
  %2158 = vmatmul.f32.gmra.mxu0 %v2107
  %v2159 = vpop.f32.mrf.mxu0
  %v2160 = vadd.f32 0.0, %v2159
  %2161 = vdwg.mxu0
  %2162 = vmatpush.msra.mxu0 %v2141
  %2163 = vmatpush.msra.mxu0 %v2139
  %2164 = vmatpush.msra.mxu0 %v2137
  %2165 = vmatpush.msra.mxu0 %v2135
  %2166 = vmatpush.msra.mxu0 %v2133
  %2167 = vmatpush.msra.mxu0 %v2131
  %2168 = vmatpush.msra.mxu0 %v2129
  %2169 = vmatpush.msra.mxu0 %v2127
  %2170 = vmatpush.msra.mxu0 %v2125
  %2171 = vmatpush.msra.mxu0 %v2123
  %2172 = vmatpush.msra.mxu0 %v2121
  %2173 = vmatpush.msra.mxu0 %v2119
  %2174 = vmatpush.msra.mxu0 %v2117
  %2175 = vmatpush.msra.mxu0 %v2115
  %2176 = vmatpush.msra.mxu0 %v2113
  %2177 = vmatpush.msra.mxu0 %v2111
  %2178 = vmatmul.f32.gmra.mxu0 %v2107
  %v2179 = vpop.f32.mrf.mxu0
  %v2180 = vadd.f32 0.0, %v2179
  %2181 = vdwg.mxu0
  %v2182 = vadd.f32 %v2082, %v2160
  %v2183 = vadd.f32 %v2083, %v2180
  %vm2184 = vcmask 1041408
  %v2185 = vsel %vm2184, %v2182, 0.0
  %v2186 = vrot.slane %v2185, 4
  %v2187 = vadd.f32 %v2185, %v2186
  %v2188 = vrot.slane %v2187, 2
  %v2189 = vadd.f32 %v2187, %v2188
  %v2190 = vrot.slane %v2189, 1
  %v2191 = vadd.f32 %v2189, %v2190
  %v2192 = vsel %vm2184, %v2183, 0.0
  %v2193 = vrot.slane %v2192, 4
  %v2194 = vadd.f32 %v2192, %v2193
  %v2195 = vrot.slane %v2194, 2
  %v2196 = vadd.f32 %v2194, %v2195
  %v2197 = vrot.slane %v2196, 1
  %v2198 = vadd.f32 %v2196, %v2197
  %v2199 = vmul.f32 %v2191, 0.5
  %v2200 = vmul.f32 %v2198, 0.5
  %v2201 = vsub.f32 %v2182, %v2199
  %v2202 = vsub.f32 %v2183, %v2200
  %v2203 = vmul.f32 %v2201, %v2201
  %v2204 = vmul.f32 %v2202, %v2202
  %v2205 = vsel %vm2184, %v2203, 0.0
  %v2206 = vrot.slane %v2205, 4
  %v2207 = vadd.f32 %v2205, %v2206
  %v2208 = vrot.slane %v2207, 2
  %v2209 = vadd.f32 %v2207, %v2208
  %v2210 = vrot.slane %v2209, 1
  %v2211 = vadd.f32 %v2209, %v2210
  %v2212 = vsel %vm2184, %v2204, 0.0
  %v2213 = vrot.slane %v2212, 4
  %v2214 = vadd.f32 %v2212, %v2213
  %v2215 = vrot.slane %v2214, 2
  %v2216 = vadd.f32 %v2214, %v2215
  %v2217 = vrot.slane %v2216, 1
  %v2218 = vadd.f32 %v2216, %v2217
  %v2219 = vmul.f32 %v2211, 0.5
  %v2220 = vmul.f32 %v2218, 0.5
  %v2221 = vld [vmem:[%s14] sm:$0x3]
  %v2222 = vadd.f32 %v2219, 1e-05
  %v2223 = vadd.f32 %v2220, 1e-05
  %v2224 = vrsqrt.pop %v2222
  %v2225 = vmul.f32 %v2224, %v2222
  %v2226 = vmul.f32 %v2225, %v2224
  %v2227 = vmul.f32 0.5, %v2226
  %v2228 = vsub.f32 1.5, %v2227
  %v2229 = vmul.f32 %v2224, %v2228
  %vm2230 = vweird.f32 %v2222
  %vm2231 = vweird.f32 %v2224
  %vm2232 = vmor %vm2230, %vm2231
  %v2233 = vsel %vm2232, %v2224, %v2229
  %v2234 = vrsqrt.pop %v2223
  %v2235 = vmul.f32 %v2234, %v2223
  %v2236 = vmul.f32 %v2235, %v2234
  %v2237 = vmul.f32 0.5, %v2236
  %v2238 = vsub.f32 1.5, %v2237
  %v2239 = vmul.f32 %v2234, %v2238
  %vm2240 = vweird.f32 %v2223
  %vm2241 = vweird.f32 %v2234
  %vm2242 = vmor %vm2240, %vm2241
  %v2243 = vsel %vm2242, %v2234, %v2239
  %v2246 = vrot.slane %v2243, 7
  %vm2247 = vcmask 1040384
  %v2248 = vsel %vm2247, %v2233, %v2246
  %v2250 = vmul.f32 %v2221, %v2248
  %v2252 = vperm.slane %v2250, 0
  %v2253 = vperm.slane %v2250, 1
  %v2256 = vmul.f32 %v2201, %v2252
  %v2257 = vmul.f32 %v2202, %v2253
  %v2258 = vld [vmem:[%s15] sm:$0x3]
  %v2260 = vperm.slane %v2258, 0
  %v2261 = vperm.slane %v2258, 1
  %v2264 = vadd.f32 %v2256, %v2260
  %v2265 = vadd.f32 %v2257, %v2261
  %vm2266 = vcmp.gt.f32.partialorder %v2264, 0.0
  %vm2267 = vcmp.gt.f32.partialorder %v2265, 0.0
  %v2268 = vmul.f32 %v2264, 0.01
  %v2269 = vmul.f32 %v2265, 0.01
  %v2270 = vsel %vm2266, %v2264, %v2268
  %v2271 = vsel %vm2267, %v2265, %v2269
  %v2272 = vld [vmem:[%s16] sm:$0xff]
  %v2273 = vld [vmem:[%s16 + $0x8] sm:$0xff]
  %v2274 = vld [vmem:[%s16 + $0x10] sm:$0xff]
  %v2275 = vld [vmem:[%s16 + $0x18] sm:$0xff]
  %v2276 = vld [vmem:[%s16 + $0x20] sm:$0xff]
  %v2277 = vld [vmem:[%s16 + $0x28] sm:$0xff]
  %v2278 = vld [vmem:[%s16 + $0x30] sm:$0xff]
  %v2279 = vld [vmem:[%s16 + $0x38] sm:$0xff]
  %v2280 = vld [vmem:[%s16 + $0x40] sm:$0xff]
  %v2281 = vld [vmem:[%s16 + $0x48] sm:$0xff]
  %v2282 = vld [vmem:[%s16 + $0x50] sm:$0xff]
  %v2283 = vld [vmem:[%s16 + $0x58] sm:$0xff]
  %v2284 = vld [vmem:[%s16 + $0x60] sm:$0xff]
  %v2285 = vld [vmem:[%s16 + $0x68] sm:$0xff]
  %v2286 = vld [vmem:[%s16 + $0x70] sm:$0xff]
  %v2287 = vld [vmem:[%s16 + $0x78] sm:$0xff]
  %v2288 = vld [vmem:[%s16 + $0x80] sm:$0xff]
  %v2289 = vld [vmem:[%s16 + $0x88] sm:$0xff]
  %v2290 = vld [vmem:[%s16 + $0x90] sm:$0xff]
  %v2291 = vld [vmem:[%s16 + $0x98] sm:$0xff]
  %v2292 = vld [vmem:[%s16 + $0xa0] sm:$0xff]
  %v2293 = vld [vmem:[%s16 + $0xa8] sm:$0xff]
  %v2294 = vld [vmem:[%s16 + $0xb0] sm:$0xff]
  %v2295 = vld [vmem:[%s16 + $0xb8] sm:$0xff]
  %v2296 = vld [vmem:[%s16 + $0xc0] sm:$0xff]
  %v2297 = vld [vmem:[%s16 + $0xc8] sm:$0xff]
  %v2298 = vld [vmem:[%s16 + $0xd0] sm:$0xff]
  %v2299 = vld [vmem:[%s16 + $0xd8] sm:$0xff]
  %v2300 = vld [vmem:[%s16 + $0xe0] sm:$0xff]
  %v2301 = vld [vmem:[%s16 + $0xe8] sm:$0xff]
  %v2302 = vld [vmem:[%s16 + $0xf0] sm:$0xff]
  %v2303 = vld [vmem:[%s16 + $0xf8] sm:$0xff]
  %v2304 = vld [vmem:[%s16 + $0x100] sm:$0xff]
  %v2305 = vld [vmem:[%s16 + $0x108] sm:$0xff]
  %v2306 = vld [vmem:[%s16 + $0x110] sm:$0xff]
  %v2307 = vld [vmem:[%s16 + $0x118] sm:$0xff]
  %v2308 = vld [vmem:[%s16 + $0x120] sm:$0xff]
  %v2309 = vld [vmem:[%s16 + $0x128] sm:$0xff]
  %v2310 = vld [vmem:[%s16 + $0x130] sm:$0xff]
  %v2311 = vld [vmem:[%s16 + $0x138] sm:$0xff]
  %v2312 = vld [vmem:[%s16 + $0x140] sm:$0xff]
  %v2313 = vld [vmem:[%s16 + $0x148] sm:$0xff]
  %v2314 = vld [vmem:[%s16 + $0x150] sm:$0xff]
  %v2315 = vld [vmem:[%s16 + $0x158] sm:$0xff]
  %v2316 = vld [vmem:[%s16 + $0x160] sm:$0xff]
  %v2317 = vld [vmem:[%s16 + $0x168] sm:$0xff]
  %v2318 = vld [vmem:[%s16 + $0x170] sm:$0xff]
  %v2319 = vld [vmem:[%s16 + $0x178] sm:$0xff]
  %v2320 = vld [vmem:[%s16 + $0x180] sm:$0xff]
  %v2321 = vld [vmem:[%s16 + $0x188] sm:$0xff]
  %v2322 = vld [vmem:[%s16 + $0x190] sm:$0xff]
  %v2323 = vld [vmem:[%s16 + $0x198] sm:$0xff]
  %v2324 = vld [vmem:[%s16 + $0x1a0] sm:$0xff]
  %v2325 = vld [vmem:[%s16 + $0x1a8] sm:$0xff]
  %v2326 = vld [vmem:[%s16 + $0x1b0] sm:$0xff]
  %v2327 = vld [vmem:[%s16 + $0x1b8] sm:$0xff]
  %v2328 = vld [vmem:[%s16 + $0x1c0] sm:$0xff]
  %v2329 = vld [vmem:[%s16 + $0x1c8] sm:$0xff]
  %v2330 = vld [vmem:[%s16 + $0x1d0] sm:$0xff]
  %v2331 = vld [vmem:[%s16 + $0x1d8] sm:$0xff]
  %v2332 = vld [vmem:[%s16 + $0x1e0] sm:$0xff]
  %v2333 = vld [vmem:[%s16 + $0x1e8] sm:$0xff]
  %v2334 = vld [vmem:[%s16 + $0x1f0] sm:$0xff]
  %v2335 = vld [vmem:[%s16 + $0x1f8] sm:$0xff]
  %v2336 = vld [vmem:[%s17] sm:$0x3]
  %v2338 = vperm.slane %v2336, 0
  %v2339 = vperm.slane %v2336, 1
  %2342 = vmatpush.msra.mxu0 %v2302
  %2343 = vmatpush.msra.mxu0 %v2300
  %2344 = vmatpush.msra.mxu0 %v2298
  %2345 = vmatpush.msra.mxu0 %v2296
  %2346 = vmatpush.msra.mxu0 %v2294
  %2347 = vmatpush.msra.mxu0 %v2292
  %2348 = vmatpush.msra.mxu0 %v2290
  %2349 = vmatpush.msra.mxu0 %v2288
  %2350 = vmatpush.msra.mxu0 %v2286
  %2351 = vmatpush.msra.mxu0 %v2284
  %2352 = vmatpush.msra.mxu0 %v2282
  %2353 = vmatpush.msra.mxu0 %v2280
  %2354 = vmatpush.msra.mxu0 %v2278
  %2355 = vmatpush.msra.mxu0 %v2276
  %2356 = vmatpush.msra.mxu0 %v2274
  %2357 = vmatpush.msra.mxu0 %v2272
  %2358 = vmatmul.f32.gmra.mxu0 %v2270
  %v2359 = vpop.f32.mrf.mxu0
  %v2360 = vadd.f32 %v2338, %v2359
  %2361 = vdwg.mxu0
  %2362 = vmatpush.msra.mxu0 %v2334
  %2363 = vmatpush.msra.mxu0 %v2332
  %2364 = vmatpush.msra.mxu0 %v2330
  %2365 = vmatpush.msra.mxu0 %v2328
  %2366 = vmatpush.msra.mxu0 %v2326
  %2367 = vmatpush.msra.mxu0 %v2324
  %2368 = vmatpush.msra.mxu0 %v2322
  %2369 = vmatpush.msra.mxu0 %v2320
  %2370 = vmatpush.msra.mxu0 %v2318
  %2371 = vmatpush.msra.mxu0 %v2316
  %2372 = vmatpush.msra.mxu0 %v2314
  %2373 = vmatpush.msra.mxu0 %v2312
  %2374 = vmatpush.msra.mxu0 %v2310
  %2375 = vmatpush.msra.mxu0 %v2308
  %2376 = vmatpush.msra.mxu0 %v2306
  %2377 = vmatpush.msra.mxu0 %v2304
  %2378 = vmatmul.f32.gmra.mxu0 %v2271
  %v2379 = vpop.f32.mrf.mxu0
  %v2380 = vadd.f32 %v2360, %v2379
  %2381 = vdwg.mxu0
  %2382 = vmatpush.msra.mxu0 %v2303
  %2383 = vmatpush.msra.mxu0 %v2301
  %2384 = vmatpush.msra.mxu0 %v2299
  %2385 = vmatpush.msra.mxu0 %v2297
  %2386 = vmatpush.msra.mxu0 %v2295
  %2387 = vmatpush.msra.mxu0 %v2293
  %2388 = vmatpush.msra.mxu0 %v2291
  %2389 = vmatpush.msra.mxu0 %v2289
  %2390 = vmatpush.msra.mxu0 %v2287
  %2391 = vmatpush.msra.mxu0 %v2285
  %2392 = vmatpush.msra.mxu0 %v2283
  %2393 = vmatpush.msra.mxu0 %v2281
  %2394 = vmatpush.msra.mxu0 %v2279
  %2395 = vmatpush.msra.mxu0 %v2277
  %2396 = vmatpush.msra.mxu0 %v2275
  %2397 = vmatpush.msra.mxu0 %v2273
  %2398 = vmatmul.f32.gmra.mxu0 %v2270
  %v2399 = vpop.f32.mrf.mxu0
  %v2400 = vadd.f32 %v2339, %v2399
  %2401 = vdwg.mxu0
  %2402 = vmatpush.msra.mxu0 %v2335
  %2403 = vmatpush.msra.mxu0 %v2333
  %2404 = vmatpush.msra.mxu0 %v2331
  %2405 = vmatpush.msra.mxu0 %v2329
  %2406 = vmatpush.msra.mxu0 %v2327
  %2407 = vmatpush.msra.mxu0 %v2325
  %2408 = vmatpush.msra.mxu0 %v2323
  %2409 = vmatpush.msra.mxu0 %v2321
  %2410 = vmatpush.msra.mxu0 %v2319
  %2411 = vmatpush.msra.mxu0 %v2317
  %2412 = vmatpush.msra.mxu0 %v2315
  %2413 = vmatpush.msra.mxu0 %v2313
  %2414 = vmatpush.msra.mxu0 %v2311
  %2415 = vmatpush.msra.mxu0 %v2309
  %2416 = vmatpush.msra.mxu0 %v2307
  %2417 = vmatpush.msra.mxu0 %v2305
  %2418 = vmatmul.f32.gmra.mxu0 %v2271
  %v2419 = vpop.f32.mrf.mxu0
  %v2420 = vadd.f32 %v2400, %v2419
  %2421 = vdwg.mxu0
  %v2424 = vrot.slane %v2420, 6
  %v2425 = vsel %vm2184, %v2380, %v2424
  %2427 = vst [vmem:[%s18] sm:$0xf] %v2425
  // Predicated region
  $region74: #{_lambda_.1} parent=0 // pred_check
    _
  $region75: #{_lambda_.1} parent=0 // pred_check_branch
    %2429 = sbr.rel (0) target = $region77
  $region76: #{_lambda_.1} parent=0 // pred_region
    _
  $region77: #{_lambda_.1} parent=0 // pred_fallthru
    _
  // Predicated region
  $region78: #{_lambda_.1} parent=0 // pred_check
    _
  $region79: #{_lambda_.1} parent=0 // pred_check_branch
    %2431 = sbr.rel (0) target = $region81
  $region80: #{_lambda_.1} parent=0 // pred_region
    _
  $region81: #{_lambda_.1} parent=0 // pred_fallthru
    _

</llo_original>
